<compile_context>
chip_gen: v7x
topology: tpu7x:2x2x1
jax: 0.10.0
libtpu: 0.0.40
codegen_flags: <defaults>
</compile_context>

<pallas_src>
import math
from functools import partial

import jax
import jax.numpy as jnp
from jax.experimental import pallas as pl
from jax.experimental.pallas import tpu as pltpu

# Actual VMEM use is <1 MiB at these shapes; 32 MiB is safe on v5e/v6e/v7x.
# At realistic ViT sizes raise this per-generation (<=48 MiB on v7x).
_VMEM_LIMIT = 32 * 1024 * 1024


def _round_up(x, m):
    return ((x + m - 1) // m) * m


# ----------------------------------------------------------------------------
# The single fused backbone kernel.
#
# grid = (depth,).  Kernel args:
#   slot_ref                     scalar-prefetch (depth,) int32 slot table
#   patches .. s2s bias          19 inputs (see wrapper)
#   s2s_ref                      output (1, B*N, OUT_PAD) block, slot-mapped
#   xscr                         VMEM scratch (B*T, D) f32, persists over grid
# ----------------------------------------------------------------------------
def _backbone_kernel(slot_ref,
                     patches_ref, pew_ref, peb_ref, clsp_ref, posr_ref,
                     ln1g_ref, ln1b_ref, qkvw_ref, qkvb_ref, pw_ref, pb_ref,
                     ln2g_ref, ln2b_ref, w1_ref, b1_ref, w2_ref, b2_ref,
                     s2sw_ref, s2sb_ref,
                     s2s_ref,
                     xscr,
                     *, B, T, nh, eps):
    del slot_ref  # only used inside the index_maps
    D = xscr.shape[-1]
    N = T - 1
    dh = D // nh
    scale = 1.0 / math.sqrt(dh)

    # ---- layer 0: fused patch-embed (Conv2d k=P,s=P) + cls token + pos-embed
    @pl.when(pl.program_id(0) == 0)
    def _embed():
        tok = jnp.dot(patches_ref[...].astype(jnp.bfloat16), pew_ref[...],
                      preferred_element_type=jnp.float32)          # (B*N, D)
        tok = tok + peb_ref[...].astype(jnp.float32)
        cls0 = clsp_ref[...].astype(jnp.float32)                   # (1, D)  cls + pos[0]
        pos_tok = posr_ref[...].astype(jnp.float32)                # (N, D)  pos[1:]
        for b in range(B):
            xscr[b * T:b * T + 1, :] = cls0
            xscr[b * T + 1:(b + 1) * T, :] = tok[b * N:(b + 1) * N, :] + pos_tok

    x = xscr[...]                                                  # (B*T, D) f32

    def layernorm(v, g_ref, b_ref):
        mu = jnp.mean(v, axis=-1, keepdims=True)
        var = jnp.mean(jnp.square(v - mu), axis=-1, keepdims=True)
        return ((v - mu) * jax.lax.rsqrt(var + eps)
                * g_ref[0].astype(jnp.float32) + b_ref[0].astype(jnp.float32))

    # ---- attention half: LN1 -> QKV -> per-head attention -> proj -> +res ---
    h1 = layernorm(x, ln1g_ref, ln1b_ref)
    qkv = jnp.dot(h1.astype(jnp.bfloat16), qkvw_ref[0],
                  preferred_element_type=jnp.float32)
    qkv = qkv + qkvb_ref[0].astype(jnp.float32)                    # (B*T, 3D)

    # head split: batch the einsum over (b, h) = B*nh in one shot.
    q = jnp.stack([qkv[b * T:(b + 1) * T, h * dh:(h + 1) * dh]
                   for b in range(B) for h in range(nh)], axis=0) * scale
    k = jnp.stack([qkv[b * T:(b + 1) * T, D + h * dh:D + (h + 1) * dh]
                   for b in range(B) for h in range(nh)], axis=0)
    v = jnp.stack([qkv[b * T:(b + 1) * T, 2 * D + h * dh:2 * D + (h + 1) * dh]
                   for b in range(B) for h in range(nh)], axis=0)  # (B*nh, T, dh)

    s = jnp.einsum('hqd,hkd->hqk',
                   q.astype(jnp.bfloat16), k.astype(jnp.bfloat16),
                   preferred_element_type=jnp.float32)             # (B*nh, T, T)
    s = s - jnp.max(s, axis=-1, keepdims=True)
    p = jnp.exp(s)
    p = p / jnp.sum(p, axis=-1, keepdims=True)                     # exact softmax
    ctx = jnp.einsum('hqk,hkd->hqd',
                     p.astype(jnp.bfloat16), v.astype(jnp.bfloat16),
                     preferred_element_type=jnp.float32)           # (B*nh, T, dh)

    ctx2d = jnp.concatenate(
        [jnp.concatenate([ctx[b * nh + h] for h in range(nh)], axis=-1)
         for b in range(B)], axis=0)                               # (B*T, D)

    attn_out = jnp.dot(ctx2d.astype(jnp.bfloat16), pw_ref[0],
                       preferred_element_type=jnp.float32)
    x = x + attn_out + pb_ref[0].astype(jnp.float32)

    # ---- MLP half: LN2 -> fc1 -> GELU -> fc2 -> +residual (all in VMEM) ----
    h2 = layernorm(x, ln2g_ref, ln2b_ref)
    m1 = jnp.dot(h2.astype(jnp.bfloat16), w1_ref[0],
                 preferred_element_type=jnp.float32)
    m1 = m1 + b1_ref[0].astype(jnp.float32)
    # TODO(synk): torch.nn.GELU() default is erf-exact; tanh approximation kept
    # for guaranteed Mosaic lowering (EUP tanh), ~1e-3 rel tolerance.
    m1 = jax.nn.gelu(m1, approximate=True)
    m2 = jnp.dot(m1.astype(jnp.bfloat16), w2_ref[0],
                 preferred_element_type=jnp.float32)
    x = x + m2 + b2_ref[0].astype(jnp.float32)
    xscr[...] = x.astype(xscr.dtype)

    # ---- hooked feature -> Sequence2Spatial 1x1 conv, fused in-kernel -------
    # hook: rearrange(qkv_out, 'b n (t c) -> t b n c')[1]  == keys feature.
    # TODO(synk): Sequence2SpatialBlock source not provided; assumed cls-token
    # drop + "(h w) c -> c h w" + 1x1 Conv2d.  Non-hooked layers land in a
    # dummy output slot that the wrapper discards.
    keys_tok = jnp.concatenate(
        [qkv[b * T + 1:(b + 1) * T, D:2 * D] for b in range(B)], axis=0)  # (B*N, D)
    y = jnp.dot(keys_tok.astype(jnp.bfloat16), s2sw_ref[0],
                preferred_element_type=jnp.float32)
    y = y + s2sb_ref[0].astype(jnp.float32)                        # (B*N, OUT_PAD)
    s2s_ref[0] = y.astype(s2s_ref.dtype)


# ----------------------------------------------------------------------------
# Parameter construction (deterministic, synthetic).  Matmul weights are
# stored stacked per layer and pre-cast to bf16; biases / LN params stay f32.
# ----------------------------------------------------------------------------
def init_params(key, cfg):
    P, C, D = cfg["patch"], cfg["in_ch"], cfg["dim"]
    depth, out_dim = cfg["depth"], cfg["out_dim"]
    Hd = D * cfg["mlp_ratio"]
    T = (cfg["img"] // P) ** 2 + 1
    n_hooked = len(cfg["feature_layers"])
    n_slots = n_hooked + 1                       # +1 dummy slot for non-hooked layers
    OP = _round_up(out_dim, 128)                 # lane-dense s2s output columns

    keys = iter(jax.random.split(key, 32))

    def nrm(shape, dtype=jnp.float32, scale=0.02):
        return (scale * jax.random.normal(next(keys), shape)).astype(dtype)

    s2s_w = jnp.zeros((n_slots, D, OP), jnp.float32)
    s2s_w = s2s_w.at[:n_hooked, :, :out_dim].set(
        0.02 * jax.random.normal(next(keys), (n_hooked, D, out_dim)))
    s2s_b = jnp.zeros((n_slots, 1, OP), jnp.float32)
    s2s_b = s2s_b.at[:n_hooked, :, :out_dim].set(
        0.02 * jax.random.normal(next(keys), (n_hooked, 1, out_dim)))

    return dict(
        # Conv2d(C, D, k=P, s=P) flattened to a per-patch linear; flattening
        # order matches weight.reshape(D, C*P*P).T with (C, ph, pw).
        patch_w=nrm((C * P * P, D), jnp.bfloat16),
        patch_b=nrm((1, D)),
        cls=nrm((1, D)),
        pos=nrm((T, D)),
        ln1_g=jnp.ones((depth, 1, D), jnp.float32),
        ln1_b=jnp.zeros((depth, 1, D), jnp.float32),
        qkv_w=nrm((depth, D, 3 * D), jnp.bfloat16),
        qkv_b=nrm((depth, 1, 3 * D)),
        proj_w=nrm((depth, D, D), jnp.bfloat16),
        proj_b=nrm((depth, 1, D)),
        ln2_g=jnp.ones((depth, 1, D), jnp.float32),
        ln2_b=jnp.zeros((depth, 1, D), jnp.float32),
        fc1_w=nrm((depth, D, Hd), jnp.bfloat16),
        fc1_b=nrm((depth, 1, Hd)),
        fc2_w=nrm((depth, Hd, D), jnp.bfloat16),
        fc2_b=nrm((depth, 1, D)),
        s2s_w=s2s_w.astype(jnp.bfloat16),
        s2s_b=s2s_b,
    )


# ----------------------------------------------------------------------------
# FeatureBackbone.forward
# ----------------------------------------------------------------------------
def feature_backbone_forward(params, x, cfg):
    P, D, nh, depth = cfg["patch"], cfg["dim"], cfg["heads"], cfg["depth"]
    out_dim = cfg["out_dim"]
    feats = tuple(cfg["feature_layers"])
    n_hooked = len(feats)

    B, C, H, W = x.shape
    gh, gw = H // P, W // P
    N = gh * gw
    T = N + 1
    CPP = C * P * P
    Hd = params["fc1_w"].shape[-1]
    OP = params["s2s_w"].shape[-1]
    n_slots = params["s2s_w"].shape[0]

    # im2col for the stride-P patch conv (tiny, one-off XLA relayout).
    patches = (x.reshape(B, C, gh, P, gw, P)
                .transpose(0, 2, 4, 1, 3, 5)
                .reshape(B * N, CPP))

    # fold cls+pos[0] / pos[1:] into the kernel's embedding step.
    cls_pos0 = params["cls"] + params["pos"][0:1]            # (1, D)
    pos_rest = params["pos"][1:]                             # (N, D)

    # slot table: hooked layer -> its Sequence2Spatial slot; else dummy slot.
    slot_map = jnp.array(
        [feats.index(l) if l in feats else n_hooked for l in range(depth)],
        dtype=jnp.int32)

    def full_spec(shape):
        nd = len(shape)
        return pl.BlockSpec(shape, lambda l, sm, _nd=nd: (0,) * _nd)

    def layer_spec(shape):   # array stacked as (depth, *shape)
        nz = len(shape)
        return pl.BlockSpec((1,) + shape, lambda l, sm, _nz=nz: (l,) + (0,) * _nz)

    def slot_spec(shape):    # array stacked as (n_slots, *shape)
        nz = len(shape)
        return pl.BlockSpec((1,) + shape, lambda l, sm, _nz=nz: (sm[l],) + (0,) * _nz)

    in_specs = [
        full_spec((B * N, CPP)),        # patches
        full_spec((CPP, D)),            # patch_w (bf16)
        full_spec((1, D)),              # patch_b
        full_spec((1, D)),              # cls + pos[0]
        full_spec((N, D)),              # pos[1:]
        layer_spec((1, D)),             # ln1_g
        layer_spec((1, D)),             # ln1_b
        layer_spec((D, 3 * D)),         # qkv_w (bf16)
        layer_spec((1, 3 * D)),         # qkv_b
        layer_spec((D, D)),             # proj_w (bf16)
        layer_spec((1, D)),             # proj_b
        layer_spec((1, D)),             # ln2_g
        layer_spec((1, D)),             # ln2_b
        layer_spec((D, Hd)),            # fc1_w (bf16)
        layer_spec((1, Hd)),            # fc1_b
        layer_spec((Hd, D)),            # fc2_w (bf16)
        layer_spec((1, D)),             # fc2_b
        slot_spec((D, OP)),             # s2s_w (bf16)
        slot_spec((1, OP)),             # s2s_b
    ]

    res = pl.pallas_call(
        partial(_backbone_kernel, B=B, T=T, nh=nh, eps=1e-6),
        out_shape=jax.ShapeDtypeStruct((n_slots, B * N, OP), jnp.float32),
        grid_spec=pltpu.PrefetchScalarGridSpec(
            num_scalar_prefetch=1,
            grid=(depth,),
            in_specs=in_specs,
            out_specs=slot_spec((B * N, OP)),
            scratch_shapes=[pltpu.VMEM((B * T, D), jnp.float32)]),
        compiler_params=pltpu.CompilerParams(
            dimension_semantics=("arbitrary",),     # layers are sequential via scratch
            vmem_limit_bytes=_VMEM_LIMIT),
    )(slot_map,
      patches, params["patch_w"], params["patch_b"], cls_pos0, pos_rest,
      params["ln1_g"], params["ln1_b"], params["qkv_w"], params["qkv_b"],
      params["proj_w"], params["proj_b"], params["ln2_g"], params["ln2_b"],
      params["fc1_w"], params["fc1_b"], params["fc2_w"], params["fc2_b"],
      params["s2s_w"], params["s2s_b"])

    # self._features -> sequence_to_spatial[i](feature); dummy slot discarded.
    outputs = []
    for i in range(n_hooked):
        y = res[i, :, :out_dim].reshape(B, gh, gw, out_dim).transpose(0, 3, 1, 2)
        outputs.append(y)                                    # NCHW like nn.Conv2d
    return outputs


if __name__ == "__main__":
    cfg = dict(img=32, patch=8, in_ch=3, dim=32, depth=3, heads=4,
               mlp_ratio=4, out_dim=16, feature_layers=(1, 2))
    key = jax.random.PRNGKey(0)
    pkey, xkey = jax.random.split(key)
    params = init_params(pkey, cfg)
    x = jax.random.normal(xkey, (2, cfg["in_ch"], cfg["img"], cfg["img"]), jnp.float32)

    fwd = jax.jit(partial(feature_backbone_forward, cfg=cfg))
    outs = jax.block_until_ready(fwd(params, x))

    gh = cfg["img"] // cfg["patch"]
    assert len(outs) == len(cfg["feature_layers"])
    for o in outs:
        assert o.shape == (2, cfg["out_dim"], gh, gh)
        assert bool(jnp.all(jnp.isfinite(o)))
    print("KERNEL_OK")
</pallas_src>

<mosaic_0001>
module attributes {stable_mosaic.version = 11 : i64} {
  func.func @_backbone_kernel(%arg0: i32, %arg1: memref<3xi32, #tpu.memory_space<smem>>, %arg2: memref<32x192xf32, #tpu.memory_space<vmem>>, %arg3: memref<192x32xbf16, #tpu.memory_space<vmem>>, %arg4: memref<1x32xf32, #tpu.memory_space<vmem>>, %arg5: memref<1x32xf32, #tpu.memory_space<vmem>>, %arg6: memref<16x32xf32, #tpu.memory_space<vmem>>, %arg7: memref<1x1x32xf32, #tpu.memory_space<vmem>>, %arg8: memref<1x1x32xf32, #tpu.memory_space<vmem>>, %arg9: memref<1x32x96xbf16, #tpu.memory_space<vmem>>, %arg10: memref<1x1x96xf32, #tpu.memory_space<vmem>>, %arg11: memref<1x32x32xbf16, #tpu.memory_space<vmem>>, %arg12: memref<1x1x32xf32, #tpu.memory_space<vmem>>, %arg13: memref<1x1x32xf32, #tpu.memory_space<vmem>>, %arg14: memref<1x1x32xf32, #tpu.memory_space<vmem>>, %arg15: memref<1x32x128xbf16, #tpu.memory_space<vmem>>, %arg16: memref<1x1x128xf32, #tpu.memory_space<vmem>>, %arg17: memref<1x128x32xbf16, #tpu.memory_space<vmem>>, %arg18: memref<1x1x32xf32, #tpu.memory_space<vmem>>, %arg19: memref<1x32x128xbf16, #tpu.memory_space<vmem>>, %arg20: memref<1x1x128xf32, #tpu.memory_space<vmem>>, %arg21: memref<1x32x128xf32, #tpu.memory_space<vmem>>, %arg22: memref<34x32xf32, #tpu.memory_space<vmem>>) attributes {dimension_semantics = [#tpu.dimension_semantics<arbitrary>], iteration_bounds = array<i64: 3>, scalar_prefetch = 1 : i64, scratch_operands = 1 : i64, tpu.core_type = #tpu.core_type<tc>, window_params = [{pipeline_mode = #tpu.pipeline_mode<synchronous>, transform_indices = @transform_0, window_bounds = array<i64: 32, 192>}, {pipeline_mode = #tpu.pipeline_mode<synchronous>, transform_indices = @transform_1, window_bounds = array<i64: 192, 32>}, {pipeline_mode = #tpu.pipeline_mode<synchronous>, transform_indices = @transform_2, window_bounds = array<i64: 1, 32>}, {pipeline_mode = #tpu.pipeline_mode<synchronous>, transform_indices = @transform_3, window_bounds = array<i64: 1, 32>}, {pipeline_mode = #tpu.pipeline_mode<synchronous>, transform_indices = @transform_4, window_bounds = array<i64: 16, 32>}, {transform_indices = @transform_5, window_bounds = array<i64: 1, 1, 32>}, {transform_indices = @transform_6, window_bounds = array<i64: 1, 1, 32>}, {transform_indices = @transform_7, window_bounds = array<i64: 1, 32, 96>}, {transform_indices = @transform_8, window_bounds = array<i64: 1, 1, 96>}, {transform_indices = @transform_9, window_bounds = array<i64: 1, 32, 32>}, {transform_indices = @transform_10, window_bounds = array<i64: 1, 1, 32>}, {transform_indices = @transform_11, window_bounds = array<i64: 1, 1, 32>}, {transform_indices = @transform_12, window_bounds = array<i64: 1, 1, 32>}, {transform_indices = @transform_13, window_bounds = array<i64: 1, 32, 128>}, {transform_indices = @transform_14, window_bounds = array<i64: 1, 1, 128>}, {transform_indices = @transform_15, window_bounds = array<i64: 1, 128, 32>}, {transform_indices = @transform_16, window_bounds = array<i64: 1, 1, 32>}, {transform_indices = @transform_17, window_bounds = array<i64: 1, 32, 128>}, {transform_indices = @transform_18, window_bounds = array<i64: 1, 1, 128>}, {transform_indices = @transform_19, window_bounds = array<i64: 1, 32, 128>}]} {
    %c0_i32 = arith.constant 0 : i32
    %0 = arith.cmpi eq, %arg0, %c0_i32 : i32
    %1 = arith.extui %0 : i1 to i32
    %c0_i32_0 = arith.constant 0 : i32
    %2 = arith.cmpi ne, %1, %c0_i32_0 : i32
    scf.if %2 {
      %c0_72 = arith.constant 0 : index
      %c0_73 = arith.constant 0 : index
      %205 = vector.load %arg2[%c0_72, %c0_73] : memref<32x192xf32, #tpu.memory_space<vmem>>, vector<32x192xf32>
      %206 = arith.truncf %205 : vector<32x192xf32> to vector<32x192xbf16>
      %c0_74 = arith.constant 0 : index
      %c0_75 = arith.constant 0 : index
      %207 = vector.load %arg3[%c0_74, %c0_75] : memref<192x32xbf16, #tpu.memory_space<vmem>>, vector<192x32xbf16>
      %cst_76 = arith.constant dense<0.000000e+00> : vector<32x32xf32>
      %208 = tpu.matmul %206, %207, %cst_76 {dimension_numbers = #tpu.dot_dimension_numbers<[1], [0], [0], [1], [0, 0, 1, 1], [], []>} : vector<32x192xbf16>, vector<192x32xbf16>, vector<32x32xf32> -> vector<32x32xf32>
      %c0_77 = arith.constant 0 : index
      %c0_78 = arith.constant 0 : index
      %209 = vector.load %arg4[%c0_77, %c0_78] : memref<1x32xf32, #tpu.memory_space<vmem>>, vector<1x32xf32>
      %210 = vector.broadcast %209 : vector<1x32xf32> to vector<32x32xf32>
      %211 = arith.addf %208, %210 : vector<32x32xf32>
      %c0_79 = arith.constant 0 : index
      %c0_80 = arith.constant 0 : index
      %212 = vector.load %arg5[%c0_79, %c0_80] : memref<1x32xf32, #tpu.memory_space<vmem>>, vector<1x32xf32>
      %c0_81 = arith.constant 0 : index
      %c0_82 = arith.constant 0 : index
      %213 = vector.load %arg6[%c0_81, %c0_82] : memref<16x32xf32, #tpu.memory_space<vmem>>, vector<16x32xf32>
      %c0_83 = arith.constant 0 : index
      %c0_84 = arith.constant 0 : index
      %214 = vector.load %arg22[%c0_83, %c0_84] : memref<34x32xf32, #tpu.memory_space<vmem>>, vector<1x32xf32>
      tpu.vector_store %arg22[%c0_83, %c0_84], %212 {strides = array<i32>} : memref<34x32xf32, #tpu.memory_space<vmem>>, vector<1x32xf32>,
      %215 = vector.extract_strided_slice %211 {offsets = [0, 0], sizes = [16, 32], strides = [1, 1]} : vector<32x32xf32> to vector<16x32xf32>
      %216 = arith.addf %215, %213 : vector<16x32xf32>
      %c1 = arith.constant 1 : index
      %c0_85 = arith.constant 0 : index
      %217 = vector.load %arg22[%c1, %c0_85] : memref<34x32xf32, #tpu.memory_space<vmem>>, vector<16x32xf32>
      tpu.vector_store %arg22[%c1, %c0_85], %216 {strides = array<i32>} : memref<34x32xf32, #tpu.memory_space<vmem>>, vector<16x32xf32>,
      %c17 = arith.constant 17 : index
      %c0_86 = arith.constant 0 : index
      %218 = vector.load %arg22[%c17, %c0_86] : memref<34x32xf32, #tpu.memory_space<vmem>>, vector<1x32xf32>
      tpu.vector_store %arg22[%c17, %c0_86], %212 {strides = array<i32>} : memref<34x32xf32, #tpu.memory_space<vmem>>, vector<1x32xf32>,
      %219 = vector.extract_strided_slice %211 {offsets = [16, 0], sizes = [16, 32], strides = [1, 1]} : vector<32x32xf32> to vector<16x32xf32>
      %220 = arith.addf %219, %213 : vector<16x32xf32>
      %c18 = arith.constant 18 : index
      %c0_87 = arith.constant 0 : index
      %221 = vector.load %arg22[%c18, %c0_87] : memref<34x32xf32, #tpu.memory_space<vmem>>, vector<16x32xf32>
      tpu.vector_store %arg22[%c18, %c0_87], %220 {strides = array<i32>} : memref<34x32xf32, #tpu.memory_space<vmem>>, vector<16x32xf32>,
    } else {
    }
    %c0 = arith.constant 0 : index
    %c0_1 = arith.constant 0 : index
    %3 = vector.load %arg22[%c0, %c0_1] : memref<34x32xf32, #tpu.memory_space<vmem>>, vector<34x32xf32>
    %cst = arith.constant dense<0.000000e+00> : vector<34xf32>
    %4 = vector.multi_reduction <add>, %3, %cst [1] : vector<34x32xf32> to vector<34xf32>
    %5 = vector.shape_cast %4 : vector<34xf32> to vector<34x1xf32>
    %cst_2 = arith.constant 3.200000e+01 : f32
    %6 = vector.broadcast %cst_2 : f32 to vector<34x1xf32>
    %7 = arith.divf %5, %6 : vector<34x1xf32>
    %8 = vector.broadcast %7 : vector<34x1xf32> to vector<34x32xf32>
    %9 = arith.subf %3, %8 : vector<34x32xf32>
    %10 = arith.mulf %9, %9 : vector<34x32xf32>
    %cst_3 = arith.constant dense<0.000000e+00> : vector<34xf32>
    %11 = vector.multi_reduction <add>, %10, %cst_3 [1] : vector<34x32xf32> to vector<34xf32>
    %12 = vector.shape_cast %11 : vector<34xf32> to vector<34x1xf32>
    %cst_4 = arith.constant 3.200000e+01 : f32
    %13 = vector.broadcast %cst_4 : f32 to vector<34x1xf32>
    %14 = arith.divf %12, %13 : vector<34x1xf32>
    %15 = vector.broadcast %7 : vector<34x1xf32> to vector<34x32xf32>
    %16 = arith.subf %3, %15 : vector<34x32xf32>
    %cst_5 = arith.constant 9.99999997E-7 : f32
    %17 = vector.broadcast %cst_5 : f32 to vector<34x1xf32>
    %18 = arith.addf %14, %17 : vector<34x1xf32>
    %19 = math.rsqrt %18 : vector<34x1xf32>
    %20 = vector.broadcast %19 : vector<34x1xf32> to vector<34x32xf32>
    %21 = arith.mulf %16, %20 : vector<34x32xf32>
    %c0_6 = arith.constant 0 : index
    %c0_7 = arith.constant 0 : index
    %c0_8 = arith.constant 0 : index
    %22 = vector.load %arg7[%c0_6, %c0_7, %c0_8] : memref<1x1x32xf32, #tpu.memory_space<vmem>>, vector<1x1x32xf32>
    %23 = vector.shape_cast %22 : vector<1x1x32xf32> to vector<1x32xf32>
    %24 = vector.broadcast %23 : vector<1x32xf32> to vector<34x32xf32>
    %25 = arith.mulf %21, %24 : vector<34x32xf32>
    %c0_9 = arith.constant 0 : index
    %c0_10 = arith.constant 0 : index
    %c0_11 = arith.constant 0 : index
    %26 = vector.load %arg8[%c0_9, %c0_10, %c0_11] : memref<1x1x32xf32, #tpu.memory_space<vmem>>, vector<1x1x32xf32>
    %27 = vector.shape_cast %26 : vector<1x1x32xf32> to vector<1x32xf32>
    %28 = vector.broadcast %27 : vector<1x32xf32> to vector<34x32xf32>
    %29 = arith.addf %25, %28 : vector<34x32xf32>
    %30 = arith.truncf %29 : vector<34x32xf32> to vector<34x32xbf16>
    %c0_12 = arith.constant 0 : index
    %c0_13 = arith.constant 0 : index
    %c0_14 = arith.constant 0 : index
    %31 = vector.load %arg9[%c0_12, %c0_13, %c0_14] : memref<1x32x96xbf16, #tpu.memory_space<vmem>>, vector<1x32x96xbf16>
    %32 = vector.shape_cast %31 : vector<1x32x96xbf16> to vector<32x96xbf16>
    %cst_15 = arith.constant dense<0.000000e+00> : vector<34x96xf32>
    %33 = tpu.matmul %30, %32, %cst_15 {dimension_numbers = #tpu.dot_dimension_numbers<[1], [0], [0], [1], [0, 0, 1, 1], [], []>} : vector<34x32xbf16>, vector<32x96xbf16>, vector<34x96xf32> -> vector<34x96xf32>
    %c0_16 = arith.constant 0 : index
    %c0_17 = arith.constant 0 : index
    %c0_18 = arith.constant 0 : index
    %34 = vector.load %arg10[%c0_16, %c0_17, %c0_18] : memref<1x1x96xf32, #tpu.memory_space<vmem>>, vector<1x1x96xf32>
    %35 = vector.shape_cast %34 : vector<1x1x96xf32> to vector<1x96xf32>
    %36 = vector.broadcast %35 : vector<1x96xf32> to vector<34x96xf32>
    %37 = arith.addf %33, %36 : vector<34x96xf32>
    %38 = vector.extract_strided_slice %37 {offsets = [0, 0], sizes = [17, 8], strides = [1, 1]} : vector<34x96xf32> to vector<17x8xf32>
    %39 = vector.extract_strided_slice %37 {offsets = [0, 8], sizes = [17, 8], strides = [1, 1]} : vector<34x96xf32> to vector<17x8xf32>
    %40 = vector.extract_strided_slice %37 {offsets = [0, 16], sizes = [17, 8], strides = [1, 1]} : vector<34x96xf32> to vector<17x8xf32>
    %41 = vector.extract_strided_slice %37 {offsets = [0, 24], sizes = [17, 8], strides = [1, 1]} : vector<34x96xf32> to vector<17x8xf32>
    %42 = vector.extract_strided_slice %37 {offsets = [17, 0], sizes = [17, 8], strides = [1, 1]} : vector<34x96xf32> to vector<17x8xf32>
    %43 = vector.extract_strided_slice %37 {offsets = [17, 8], sizes = [17, 8], strides = [1, 1]} : vector<34x96xf32> to vector<17x8xf32>
    %44 = vector.extract_strided_slice %37 {offsets = [17, 16], sizes = [17, 8], strides = [1, 1]} : vector<34x96xf32> to vector<17x8xf32>
    %45 = vector.extract_strided_slice %37 {offsets = [17, 24], sizes = [17, 8], strides = [1, 1]} : vector<34x96xf32> to vector<17x8xf32>
    %46 = vector.shape_cast %38 : vector<17x8xf32> to vector<1x17x8xf32>
    %47 = vector.shape_cast %39 : vector<17x8xf32> to vector<1x17x8xf32>
    %48 = vector.shape_cast %40 : vector<17x8xf32> to vector<1x17x8xf32>
    %49 = vector.shape_cast %41 : vector<17x8xf32> to vector<1x17x8xf32>
    %50 = vector.shape_cast %42 : vector<17x8xf32> to vector<1x17x8xf32>
    %51 = vector.shape_cast %43 : vector<17x8xf32> to vector<1x17x8xf32>
    %52 = vector.shape_cast %44 : vector<17x8xf32> to vector<1x17x8xf32>
    %53 = vector.shape_cast %45 : vector<17x8xf32> to vector<1x17x8xf32>
    %54 = tpu.concatenate %46, %47, %48, %49, %50, %51, %52, %53 in 0 : vector<1x17x8xf32>, vector<1x17x8xf32>, vector<1x17x8xf32>, vector<1x17x8xf32>, vector<1x17x8xf32>, vector<1x17x8xf32>, vector<1x17x8xf32>, vector<1x17x8xf32> -> vector<8x17x8xf32>
    %cst_19 = arith.constant 0.353553385 : f32
    %55 = vector.broadcast %cst_19 : f32 to vector<8x17x8xf32>
    %56 = arith.mulf %54, %55 : vector<8x17x8xf32>
    %57 = vector.extract_strided_slice %37 {offsets = [0, 32], sizes = [17, 8], strides = [1, 1]} : vector<34x96xf32> to vector<17x8xf32>
    %58 = vector.extract_strided_slice %37 {offsets = [0, 40], sizes = [17, 8], strides = [1, 1]} : vector<34x96xf32> to vector<17x8xf32>
    %59 = vector.extract_strided_slice %37 {offsets = [0, 48], sizes = [17, 8], strides = [1, 1]} : vector<34x96xf32> to vector<17x8xf32>
    %60 = vector.extract_strided_slice %37 {offsets = [0, 56], sizes = [17, 8], strides = [1, 1]} : vector<34x96xf32> to vector<17x8xf32>
    %61 = vector.extract_strided_slice %37 {offsets = [17, 32], sizes = [17, 8], strides = [1, 1]} : vector<34x96xf32> to vector<17x8xf32>
    %62 = vector.extract_strided_slice %37 {offsets = [17, 40], sizes = [17, 8], strides = [1, 1]} : vector<34x96xf32> to vector<17x8xf32>
    %63 = vector.extract_strided_slice %37 {offsets = [17, 48], sizes = [17, 8], strides = [1, 1]} : vector<34x96xf32> to vector<17x8xf32>
    %64 = vector.extract_strided_slice %37 {offsets = [17, 56], sizes = [17, 8], strides = [1, 1]} : vector<34x96xf32> to vector<17x8xf32>
    %65 = vector.shape_cast %57 : vector<17x8xf32> to vector<1x17x8xf32>
    %66 = vector.shape_cast %58 : vector<17x8xf32> to vector<1x17x8xf32>
    %67 = vector.shape_cast %59 : vector<17x8xf32> to vector<1x17x8xf32>
    %68 = vector.shape_cast %60 : vector<17x8xf32> to vector<1x17x8xf32>
    %69 = vector.shape_cast %61 : vector<17x8xf32> to vector<1x17x8xf32>
    %70 = vector.shape_cast %62 : vector<17x8xf32> to vector<1x17x8xf32>
    %71 = vector.shape_cast %63 : vector<17x8xf32> to vector<1x17x8xf32>
    %72 = vector.shape_cast %64 : vector<17x8xf32> to vector<1x17x8xf32>
    %73 = tpu.concatenate %65, %66, %67, %68, %69, %70, %71, %72 in 0 : vector<1x17x8xf32>, vector<1x17x8xf32>, vector<1x17x8xf32>, vector<1x17x8xf32>, vector<1x17x8xf32>, vector<1x17x8xf32>, vector<1x17x8xf32>, vector<1x17x8xf32> -> vector<8x17x8xf32>
    %74 = vector.extract_strided_slice %37 {offsets = [0, 64], sizes = [17, 8], strides = [1, 1]} : vector<34x96xf32> to vector<17x8xf32>
    %75 = vector.extract_strided_slice %37 {offsets = [0, 72], sizes = [17, 8], strides = [1, 1]} : vector<34x96xf32> to vector<17x8xf32>
    %76 = vector.extract_strided_slice %37 {offsets = [0, 80], sizes = [17, 8], strides = [1, 1]} : vector<34x96xf32> to vector<17x8xf32>
    %77 = vector.extract_strided_slice %37 {offsets = [0, 88], sizes = [17, 8], strides = [1, 1]} : vector<34x96xf32> to vector<17x8xf32>
    %78 = vector.extract_strided_slice %37 {offsets = [17, 64], sizes = [17, 8], strides = [1, 1]} : vector<34x96xf32> to vector<17x8xf32>
    %79 = vector.extract_strided_slice %37 {offsets = [17, 72], sizes = [17, 8], strides = [1, 1]} : vector<34x96xf32> to vector<17x8xf32>
    %80 = vector.extract_strided_slice %37 {offsets = [17, 80], sizes = [17, 8], strides = [1, 1]} : vector<34x96xf32> to vector<17x8xf32>
    %81 = vector.extract_strided_slice %37 {offsets = [17, 88], sizes = [17, 8], strides = [1, 1]} : vector<34x96xf32> to vector<17x8xf32>
    %82 = vector.shape_cast %74 : vector<17x8xf32> to vector<1x17x8xf32>
    %83 = vector.shape_cast %75 : vector<17x8xf32> to vector<1x17x8xf32>
    %84 = vector.shape_cast %76 : vector<17x8xf32> to vector<1x17x8xf32>
    %85 = vector.shape_cast %77 : vector<17x8xf32> to vector<1x17x8xf32>
    %86 = vector.shape_cast %78 : vector<17x8xf32> to vector<1x17x8xf32>
    %87 = vector.shape_cast %79 : vector<17x8xf32> to vector<1x17x8xf32>
    %88 = vector.shape_cast %80 : vector<17x8xf32> to vector<1x17x8xf32>
    %89 = vector.shape_cast %81 : vector<17x8xf32> to vector<1x17x8xf32>
    %90 = tpu.concatenate %82, %83, %84, %85, %86, %87, %88, %89 in 0 : vector<1x17x8xf32>, vector<1x17x8xf32>, vector<1x17x8xf32>, vector<1x17x8xf32>, vector<1x17x8xf32>, vector<1x17x8xf32>, vector<1x17x8xf32>, vector<1x17x8xf32> -> vector<8x17x8xf32>
    %91 = arith.truncf %56 : vector<8x17x8xf32> to vector<8x17x8xbf16>
    %92 = arith.truncf %73 : vector<8x17x8xf32> to vector<8x17x8xbf16>
    "tpu.trace_start"() <{level = 10 : i32, message = "hqd,hkd->hqk"}> : () -> ()
    %cst_20 = arith.constant dense<0.000000e+00> : vector<8x17x17xf32>
    %93 = tpu.matmul %91, %92, %cst_20 {dimension_numbers = #tpu.dot_dimension_numbers<[2], [2], [1], [1], [0, 0, 0, 1, 1, 1], [0], [0]>} : vector<8x17x8xbf16>, vector<8x17x8xbf16>, vector<8x17x17xf32> -> vector<8x17x17xf32>
    "tpu.trace_stop"() : () -> ()
    %cst_21 = arith.constant dense<0xFF800000> : vector<8x17xf32>
    %94 = vector.multi_reduction <maximumf>, %93, %cst_21 [2] : vector<8x17x17xf32> to vector<8x17xf32>
    %95 = vector.shape_cast %94 : vector<8x17xf32> to vector<8x17x1xf32>
    %96 = vector.broadcast %95 : vector<8x17x1xf32> to vector<8x17x17xf32>
    %97 = arith.subf %93, %96 : vector<8x17x17xf32>
    %98 = math.exp %97 : vector<8x17x17xf32>
    %cst_22 = arith.constant dense<0.000000e+00> : vector<8x17xf32>
    %99 = vector.multi_reduction <add>, %98, %cst_22 [2] : vector<8x17x17xf32> to vector<8x17xf32>
    %100 = vector.shape_cast %99 : vector<8x17xf32> to vector<8x17x1xf32>
    %101 = vector.broadcast %100 : vector<8x17x1xf32> to vector<8x17x17xf32>
    %102 = arith.divf %98, %101 : vector<8x17x17xf32>
    %103 = arith.truncf %102 : vector<8x17x17xf32> to vector<8x17x17xbf16>
    %104 = arith.truncf %90 : vector<8x17x8xf32> to vector<8x17x8xbf16>
    "tpu.trace_start"() <{level = 10 : i32, message = "hqk,hkd->hqd"}> : () -> ()
    %cst_23 = arith.constant dense<0.000000e+00> : vector<8x17x8xf32>
    %105 = tpu.matmul %103, %104, %cst_23 {dimension_numbers = #tpu.dot_dimension_numbers<[2], [1], [1], [2], [0, 0, 0, 1, 1, 2], [0], [0]>} : vector<8x17x17xbf16>, vector<8x17x8xbf16>, vector<8x17x8xf32> -> vector<8x17x8xf32>
    "tpu.trace_stop"() : () -> ()
    %106 = vector.extract_strided_slice %105 {offsets = [0, 0, 0], sizes = [1, 17, 8], strides = [1, 1, 1]} : vector<8x17x8xf32> to vector<1x17x8xf32>
    %107 = vector.shape_cast %106 : vector<1x17x8xf32> to vector<17x8xf32>
    %108 = vector.extract_strided_slice %105 {offsets = [1, 0, 0], sizes = [1, 17, 8], strides = [1, 1, 1]} : vector<8x17x8xf32> to vector<1x17x8xf32>
    %109 = vector.shape_cast %108 : vector<1x17x8xf32> to vector<17x8xf32>
    %110 = vector.extract_strided_slice %105 {offsets = [2, 0, 0], sizes = [1, 17, 8], strides = [1, 1, 1]} : vector<8x17x8xf32> to vector<1x17x8xf32>
    %111 = vector.shape_cast %110 : vector<1x17x8xf32> to vector<17x8xf32>
    %112 = vector.extract_strided_slice %105 {offsets = [3, 0, 0], sizes = [1, 17, 8], strides = [1, 1, 1]} : vector<8x17x8xf32> to vector<1x17x8xf32>
    %113 = vector.shape_cast %112 : vector<1x17x8xf32> to vector<17x8xf32>
    %114 = tpu.concatenate %107, %109, %111, %113 in 1 : vector<17x8xf32>, vector<17x8xf32>, vector<17x8xf32>, vector<17x8xf32> -> vector<17x32xf32>
    %115 = vector.extract_strided_slice %105 {offsets = [4, 0, 0], sizes = [1, 17, 8], strides = [1, 1, 1]} : vector<8x17x8xf32> to vector<1x17x8xf32>
    %116 = vector.shape_cast %115 : vector<1x17x8xf32> to vector<17x8xf32>
    %117 = vector.extract_strided_slice %105 {offsets = [5, 0, 0], sizes = [1, 17, 8], strides = [1, 1, 1]} : vector<8x17x8xf32> to vector<1x17x8xf32>
    %118 = vector.shape_cast %117 : vector<1x17x8xf32> to vector<17x8xf32>
    %119 = vector.extract_strided_slice %105 {offsets = [6, 0, 0], sizes = [1, 17, 8], strides = [1, 1, 1]} : vector<8x17x8xf32> to vector<1x17x8xf32>
    %120 = vector.shape_cast %119 : vector<1x17x8xf32> to vector<17x8xf32>
    %121 = vector.extract_strided_slice %105 {offsets = [7, 0, 0], sizes = [1, 17, 8], strides = [1, 1, 1]} : vector<8x17x8xf32> to vector<1x17x8xf32>
    %122 = vector.shape_cast %121 : vector<1x17x8xf32> to vector<17x8xf32>
    %123 = tpu.concatenate %116, %118, %120, %122 in 1 : vector<17x8xf32>, vector<17x8xf32>, vector<17x8xf32>, vector<17x8xf32> -> vector<17x32xf32>
    %124 = tpu.concatenate %114, %123 in 0 : vector<17x32xf32>, vector<17x32xf32> -> vector<34x32xf32>
    %125 = arith.truncf %124 : vector<34x32xf32> to vector<34x32xbf16>
    %c0_24 = arith.constant 0 : index
    %c0_25 = arith.constant 0 : index
    %c0_26 = arith.constant 0 : index
    %126 = vector.load %arg11[%c0_24, %c0_25, %c0_26] : memref<1x32x32xbf16, #tpu.memory_space<vmem>>, vector<1x32x32xbf16>
    %127 = vector.shape_cast %126 : vector<1x32x32xbf16> to vector<32x32xbf16>
    %cst_27 = arith.constant dense<0.000000e+00> : vector<34x32xf32>
    %128 = tpu.matmul %125, %127, %cst_27 {dimension_numbers = #tpu.dot_dimension_numbers<[1], [0], [0], [1], [0, 0, 1, 1], [], []>} : vector<34x32xbf16>, vector<32x32xbf16>, vector<34x32xf32> -> vector<34x32xf32>
    %129 = arith.addf %3, %128 : vector<34x32xf32>
    %c0_28 = arith.constant 0 : index
    %c0_29 = arith.constant 0 : index
    %c0_30 = arith.constant 0 : index
    %130 = vector.load %arg12[%c0_28, %c0_29, %c0_30] : memref<1x1x32xf32, #tpu.memory_space<vmem>>, vector<1x1x32xf32>
    %131 = vector.shape_cast %130 : vector<1x1x32xf32> to vector<1x32xf32>
    %132 = vector.broadcast %131 : vector<1x32xf32> to vector<34x32xf32>
    %133 = arith.addf %129, %132 : vector<34x32xf32>
    %cst_31 = arith.constant dense<0.000000e+00> : vector<34xf32>
    %134 = vector.multi_reduction <add>, %133, %cst_31 [1] : vector<34x32xf32> to vector<34xf32>
    %135 = vector.shape_cast %134 : vector<34xf32> to vector<34x1xf32>
    %cst_32 = arith.constant 3.200000e+01 : f32
    %136 = vector.broadcast %cst_32 : f32 to vector<34x1xf32>
    %137 = arith.divf %135, %136 : vector<34x1xf32>
    %138 = vector.broadcast %137 : vector<34x1xf32> to vector<34x32xf32>
    %139 = arith.subf %133, %138 : vector<34x32xf32>
    %140 = arith.mulf %139, %139 : vector<34x32xf32>
    %cst_33 = arith.constant dense<0.000000e+00> : vector<34xf32>
    %141 = vector.multi_reduction <add>, %140, %cst_33 [1] : vector<34x32xf32> to vector<34xf32>
    %142 = vector.shape_cast %141 : vector<34xf32> to vector<34x1xf32>
    %cst_34 = arith.constant 3.200000e+01 : f32
    %143 = vector.broadcast %cst_34 : f32 to vector<34x1xf32>
    %144 = arith.divf %142, %143 : vector<34x1xf32>
    %145 = vector.broadcast %137 : vector<34x1xf32> to vector<34x32xf32>
    %146 = arith.subf %133, %145 : vector<34x32xf32>
    %cst_35 = arith.constant 9.99999997E-7 : f32
    %147 = vector.broadcast %cst_35 : f32 to vector<34x1xf32>
    %148 = arith.addf %144, %147 : vector<34x1xf32>
    %149 = math.rsqrt %148 : vector<34x1xf32>
    %150 = vector.broadcast %149 : vector<34x1xf32> to vector<34x32xf32>
    %151 = arith.mulf %146, %150 : vector<34x32xf32>
    %c0_36 = arith.constant 0 : index
    %c0_37 = arith.constant 0 : index
    %c0_38 = arith.constant 0 : index
    %152 = vector.load %arg13[%c0_36, %c0_37, %c0_38] : memref<1x1x32xf32, #tpu.memory_space<vmem>>, vector<1x1x32xf32>
    %153 = vector.shape_cast %152 : vector<1x1x32xf32> to vector<1x32xf32>
    %154 = vector.broadcast %153 : vector<1x32xf32> to vector<34x32xf32>
    %155 = arith.mulf %151, %154 : vector<34x32xf32>
    %c0_39 = arith.constant 0 : index
    %c0_40 = arith.constant 0 : index
    %c0_41 = arith.constant 0 : index
    %156 = vector.load %arg14[%c0_39, %c0_40, %c0_41] : memref<1x1x32xf32, #tpu.memory_space<vmem>>, vector<1x1x32xf32>
    %157 = vector.shape_cast %156 : vector<1x1x32xf32> to vector<1x32xf32>
    %158 = vector.broadcast %157 : vector<1x32xf32> to vector<34x32xf32>
    %159 = arith.addf %155, %158 : vector<34x32xf32>
    %160 = arith.truncf %159 : vector<34x32xf32> to vector<34x32xbf16>
    %c0_42 = arith.constant 0 : index
    %c0_43 = arith.constant 0 : index
    %c0_44 = arith.constant 0 : index
    %161 = vector.load %arg15[%c0_42, %c0_43, %c0_44] : memref<1x32x128xbf16, #tpu.memory_space<vmem>>, vector<1x32x128xbf16>
    %162 = vector.shape_cast %161 : vector<1x32x128xbf16> to vector<32x128xbf16>
    %cst_45 = arith.constant dense<0.000000e+00> : vector<34x128xf32>
    %163 = tpu.matmul %160, %162, %cst_45 {dimension_numbers = #tpu.dot_dimension_numbers<[1], [0], [0], [1], [0, 0, 1, 1], [], []>} : vector<34x32xbf16>, vector<32x128xbf16>, vector<34x128xf32> -> vector<34x128xf32>
    %c0_46 = arith.constant 0 : index
    %c0_47 = arith.constant 0 : index
    %c0_48 = arith.constant 0 : index
    %164 = vector.load %arg16[%c0_46, %c0_47, %c0_48] : memref<1x1x128xf32, #tpu.memory_space<vmem>>, vector<1x1x128xf32>
    %165 = vector.shape_cast %164 : vector<1x1x128xf32> to vector<1x128xf32>
    %166 = vector.broadcast %165 : vector<1x128xf32> to vector<34x128xf32>
    %167 = arith.addf %163, %166 : vector<34x128xf32>
    %168 = arith.mulf %167, %167 : vector<34x128xf32>
    %169 = arith.mulf %167, %168 : vector<34x128xf32>
    %cst_49 = arith.constant 4.471500e-02 : f32
    %170 = vector.broadcast %cst_49 : f32 to vector<34x128xf32>
    %171 = arith.mulf %170, %169 : vector<34x128xf32>
    %172 = arith.addf %167, %171 : vector<34x128xf32>
    %cst_50 = arith.constant 0.797884583 : f32
    %173 = vector.broadcast %cst_50 : f32 to vector<34x128xf32>
    %174 = arith.mulf %173, %172 : vector<34x128xf32>
    %175 = math.tanh %174 : vector<34x128xf32>
    %cst_51 = arith.constant 1.000000e+00 : f32
    %176 = vector.broadcast %cst_51 : f32 to vector<34x128xf32>
    %177 = arith.addf %176, %175 : vector<34x128xf32>
    %cst_52 = arith.constant 5.000000e-01 : f32
    %178 = vector.broadcast %cst_52 : f32 to vector<34x128xf32>
    %179 = arith.mulf %178, %177 : vector<34x128xf32>
    %180 = arith.mulf %167, %179 : vector<34x128xf32>
    %181 = arith.truncf %180 : vector<34x128xf32> to vector<34x128xbf16>
    %c0_53 = arith.constant 0 : index
    %c0_54 = arith.constant 0 : index
    %c0_55 = arith.constant 0 : index
    %182 = vector.load %arg17[%c0_53, %c0_54, %c0_55] : memref<1x128x32xbf16, #tpu.memory_space<vmem>>, vector<1x128x32xbf16>
    %183 = vector.shape_cast %182 : vector<1x128x32xbf16> to vector<128x32xbf16>
    %cst_56 = arith.constant dense<0.000000e+00> : vector<34x32xf32>
    %184 = tpu.matmul %181, %183, %cst_56 {dimension_numbers = #tpu.dot_dimension_numbers<[1], [0], [0], [1], [0, 0, 1, 1], [], []>} : vector<34x128xbf16>, vector<128x32xbf16>, vector<34x32xf32> -> vector<34x32xf32>
    %185 = arith.addf %133, %184 : vector<34x32xf32>
    %c0_57 = arith.constant 0 : index
    %c0_58 = arith.constant 0 : index
    %c0_59 = arith.constant 0 : index
    %186 = vector.load %arg18[%c0_57, %c0_58, %c0_59] : memref<1x1x32xf32, #tpu.memory_space<vmem>>, vector<1x1x32xf32>
    %187 = vector.shape_cast %186 : vector<1x1x32xf32> to vector<1x32xf32>
    %188 = vector.broadcast %187 : vector<1x32xf32> to vector<34x32xf32>
    %189 = arith.addf %185, %188 : vector<34x32xf32>
    %c0_60 = arith.constant 0 : index
    %c0_61 = arith.constant 0 : index
    %190 = vector.load %arg22[%c0_60, %c0_61] : memref<34x32xf32, #tpu.memory_space<vmem>>, vector<34x32xf32>
    tpu.vector_store %arg22[%c0_60, %c0_61], %189 {strides = array<i32>} : memref<34x32xf32, #tpu.memory_space<vmem>>, vector<34x32xf32>,
    %191 = vector.extract_strided_slice %37 {offsets = [1, 32], sizes = [16, 32], strides = [1, 1]} : vector<34x96xf32> to vector<16x32xf32>
    %192 = vector.extract_strided_slice %37 {offsets = [18, 32], sizes = [16, 32], strides = [1, 1]} : vector<34x96xf32> to vector<16x32xf32>
    %193 = tpu.concatenate %191, %192 in 0 : vector<16x32xf32>, vector<16x32xf32> -> vector<32x32xf32>
    %194 = arith.truncf %193 : vector<32x32xf32> to vector<32x32xbf16>
    %c0_62 = arith.constant 0 : index
    %c0_63 = arith.constant 0 : index
    %c0_64 = arith.constant 0 : index
    %195 = vector.load %arg19[%c0_62, %c0_63, %c0_64] : memref<1x32x128xbf16, #tpu.memory_space<vmem>>, vector<1x32x128xbf16>
    %196 = vector.shape_cast %195 : vector<1x32x128xbf16> to vector<32x128xbf16>
    %cst_65 = arith.constant dense<0.000000e+00> : vector<32x128xf32>
    %197 = tpu.matmul %194, %196, %cst_65 {dimension_numbers = #tpu.dot_dimension_numbers<[1], [0], [0], [1], [0, 0, 1, 1], [], []>} : vector<32x32xbf16>, vector<32x128xbf16>, vector<32x128xf32> -> vector<32x128xf32>
    %c0_66 = arith.constant 0 : index
    %c0_67 = arith.constant 0 : index
    %c0_68 = arith.constant 0 : index
    %198 = vector.load %arg20[%c0_66, %c0_67, %c0_68] : memref<1x1x128xf32, #tpu.memory_space<vmem>>, vector<1x1x128xf32>
    %199 = vector.shape_cast %198 : vector<1x1x128xf32> to vector<1x128xf32>
    %200 = vector.broadcast %199 : vector<1x128xf32> to vector<32x128xf32>
    %201 = arith.addf %197, %200 : vector<32x128xf32>
    %c0_69 = arith.constant 0 : index
    %c0_70 = arith.constant 0 : index
    %c0_71 = arith.constant 0 : index
    %202 = vector.load %arg21[%c0_69, %c0_70, %c0_71] : memref<1x32x128xf32, #tpu.memory_space<vmem>>, vector<1x32x128xf32>
    %203 = vector.shape_cast %202 : vector<1x32x128xf32> to vector<32x128xf32>
    %204 = vector.shape_cast %201 : vector<32x128xf32> to vector<1x32x128xf32>
    tpu.vector_store %arg21[%c0_69, %c0_70, %c0_71], %204 {strides = array<i32>} : memref<1x32x128xf32, #tpu.memory_space<vmem>>, vector<1x32x128xf32>,
    return
  }
  func.func @transform_0(%arg0: i32, %arg1: memref<3xi32, #tpu.memory_space<smem>>) -> (i32, i32) {
    %c0_i32 = arith.constant 0 : i32
    %c0_i32_0 = arith.constant 0 : i32
    %c0_i32_1 = arith.constant 0 : i32
    return %c0_i32, %c0_i32_0 : i32, i32
  }
  func.func @transform_1(%arg0: i32, %arg1: memref<3xi32, #tpu.memory_space<smem>>) -> (i32, i32) {
    %c0_i32 = arith.constant 0 : i32
    %c0_i32_0 = arith.constant 0 : i32
    %c0_i32_1 = arith.constant 0 : i32
    return %c0_i32, %c0_i32_0 : i32, i32
  }
  func.func @transform_2(%arg0: i32, %arg1: memref<3xi32, #tpu.memory_space<smem>>) -> (i32, i32) {
    %c0_i32 = arith.constant 0 : i32
    %c0_i32_0 = arith.constant 0 : i32
    %c0_i32_1 = arith.constant 0 : i32
    return %c0_i32, %c0_i32_0 : i32, i32
  }
  func.func @transform_3(%arg0: i32, %arg1: memref<3xi32, #tpu.memory_space<smem>>) -> (i32, i32) {
    %c0_i32 = arith.constant 0 : i32
    %c0_i32_0 = arith.constant 0 : i32
    %c0_i32_1 = arith.constant 0 : i32
    return %c0_i32, %c0_i32_0 : i32, i32
  }
  func.func @transform_4(%arg0: i32, %arg1: memref<3xi32, #tpu.memory_space<smem>>) -> (i32, i32) {
    %c0_i32 = arith.constant 0 : i32
    %c0_i32_0 = arith.constant 0 : i32
    %c0_i32_1 = arith.constant 0 : i32
    return %c0_i32, %c0_i32_0 : i32, i32
  }
  func.func @transform_5(%arg0: i32, %arg1: memref<3xi32, #tpu.memory_space<smem>>) -> (i32, i32, i32) {
    %c0_i32 = arith.constant 0 : i32
    %c0_i32_0 = arith.constant 0 : i32
    %c0_i32_1 = arith.constant 0 : i32
    return %arg0, %c0_i32, %c0_i32_0 : i32, i32, i32
  }
  func.func @transform_6(%arg0: i32, %arg1: memref<3xi32, #tpu.memory_space<smem>>) -> (i32, i32, i32) {
    %c0_i32 = arith.constant 0 : i32
    %c0_i32_0 = arith.constant 0 : i32
    %c0_i32_1 = arith.constant 0 : i32
    return %arg0, %c0_i32, %c0_i32_0 : i32, i32, i32
  }
  func.func @transform_7(%arg0: i32, %arg1: memref<3xi32, #tpu.memory_space<smem>>) -> (i32, i32, i32) {
    %c0_i32 = arith.constant 0 : i32
    %c0_i32_0 = arith.constant 0 : i32
    %c0_i32_1 = arith.constant 0 : i32
    return %arg0, %c0_i32, %c0_i32_0 : i32, i32, i32
  }
  func.func @transform_8(%arg0: i32, %arg1: memref<3xi32, #tpu.memory_space<smem>>) -> (i32, i32, i32) {
    %c0_i32 = arith.constant 0 : i32
    %c0_i32_0 = arith.constant 0 : i32
    %c0_i32_1 = arith.constant 0 : i32
    return %arg0, %c0_i32, %c0_i32_0 : i32, i32, i32
  }
  func.func @transform_9(%arg0: i32, %arg1: memref<3xi32, #tpu.memory_space<smem>>) -> (i32, i32, i32) {
    %c0_i32 = arith.constant 0 : i32
    %c0_i32_0 = arith.constant 0 : i32
    %c0_i32_1 = arith.constant 0 : i32
    return %arg0, %c0_i32, %c0_i32_0 : i32, i32, i32
  }
  func.func @transform_10(%arg0: i32, %arg1: memref<3xi32, #tpu.memory_space<smem>>) -> (i32, i32, i32) {
    %c0_i32 = arith.constant 0 : i32
    %c0_i32_0 = arith.constant 0 : i32
    %c0_i32_1 = arith.constant 0 : i32
    return %arg0, %c0_i32, %c0_i32_0 : i32, i32, i32
  }
  func.func @transform_11(%arg0: i32, %arg1: memref<3xi32, #tpu.memory_space<smem>>) -> (i32, i32, i32) {
    %c0_i32 = arith.constant 0 : i32
    %c0_i32_0 = arith.constant 0 : i32
    %c0_i32_1 = arith.constant 0 : i32
    return %arg0, %c0_i32, %c0_i32_0 : i32, i32, i32
  }
  func.func @transform_12(%arg0: i32, %arg1: memref<3xi32, #tpu.memory_space<smem>>) -> (i32, i32, i32) {
    %c0_i32 = arith.constant 0 : i32
    %c0_i32_0 = arith.constant 0 : i32
    %c0_i32_1 = arith.constant 0 : i32
    return %arg0, %c0_i32, %c0_i32_0 : i32, i32, i32
  }
  func.func @transform_13(%arg0: i32, %arg1: memref<3xi32, #tpu.memory_space<smem>>) -> (i32, i32, i32) {
    %c0_i32 = arith.constant 0 : i32
    %c0_i32_0 = arith.constant 0 : i32
    %c0_i32_1 = arith.constant 0 : i32
    return %arg0, %c0_i32, %c0_i32_0 : i32, i32, i32
  }
  func.func @transform_14(%arg0: i32, %arg1: memref<3xi32, #tpu.memory_space<smem>>) -> (i32, i32, i32) {
    %c0_i32 = arith.constant 0 : i32
    %c0_i32_0 = arith.constant 0 : i32
    %c0_i32_1 = arith.constant 0 : i32
    return %arg0, %c0_i32, %c0_i32_0 : i32, i32, i32
  }
  func.func @transform_15(%arg0: i32, %arg1: memref<3xi32, #tpu.memory_space<smem>>) -> (i32, i32, i32) {
    %c0_i32 = arith.constant 0 : i32
    %c0_i32_0 = arith.constant 0 : i32
    %c0_i32_1 = arith.constant 0 : i32
    return %arg0, %c0_i32, %c0_i32_0 : i32, i32, i32
  }
  func.func @transform_16(%arg0: i32, %arg1: memref<3xi32, #tpu.memory_space<smem>>) -> (i32, i32, i32) {
    %c0_i32 = arith.constant 0 : i32
    %c0_i32_0 = arith.constant 0 : i32
    %c0_i32_1 = arith.constant 0 : i32
    return %arg0, %c0_i32, %c0_i32_0 : i32, i32, i32
  }
  func.func @transform_17(%arg0: i32, %arg1: memref<3xi32, #tpu.memory_space<smem>>) -> (i32, i32, i32) {
    %0 = arith.index_cast %arg0 : i32 to index
    %1 = memref.load %arg1[%0] : memref<3xi32, #tpu.memory_space<smem>>
    %c0_i32 = arith.constant 0 : i32
    %c0_i32_0 = arith.constant 0 : i32
    %c0_i32_1 = arith.constant 0 : i32
    return %1, %c0_i32, %c0_i32_0 : i32, i32, i32
  }
  func.func @transform_18(%arg0: i32, %arg1: memref<3xi32, #tpu.memory_space<smem>>) -> (i32, i32, i32) {
    %0 = arith.index_cast %arg0 : i32 to index
    %1 = memref.load %arg1[%0] : memref<3xi32, #tpu.memory_space<smem>>
    %c0_i32 = arith.constant 0 : i32
    %c0_i32_0 = arith.constant 0 : i32
    %c0_i32_1 = arith.constant 0 : i32
    return %1, %c0_i32, %c0_i32_0 : i32, i32, i32
  }
  func.func @transform_19(%arg0: i32, %arg1: memref<3xi32, #tpu.memory_space<smem>>) -> (i32, i32, i32) {
    %0 = arith.index_cast %arg0 : i32 to index
    %1 = memref.load %arg1[%0] : memref<3xi32, #tpu.memory_space<smem>>
    %c0_i32 = arith.constant 0 : i32
    %c0_i32_0 = arith.constant 0 : i32
    %c0_i32_1 = arith.constant 0 : i32
    return %1, %c0_i32, %c0_i32_0 : i32, i32, i32
  }
}

</mosaic_0001>

<llo_original>
// kernel: feature_backbone_forward.1
$region0: #{feature_backbone_forward.1}
  #allocation0 [shape = 'u32[]', space=smem, size = 0x4, offset = 0x4, fixed_abs, tag = 'smem constant byte address 0x4 - core index']
  #allocation1 [shape = 'u32[144,128]{1,0:T(1,128)}', space=vmem, size = 0x12000, scoped, tag = 'internal scratch']
  #allocation2 [shape = 'f32[34,32]{1,0:T(8,128)}', space=vmem, size = 0x5000, scoped, tag = 'scratch operand']
  #allocation3 [shape = 's32[1]{0}', space=sflag, size = 0x4, scoped, tag = 'scoped memory for feature_backbone_forward.1']
  #allocation4 [shape = 'u8[512]{0}', space=smem, size = 0x200, scoped, tag = 'prefetched SMEM operand 0']
  %s0 = inlined_call_operand.vmem [shape: s32[3], index: 0, kind: input, shape index: {}]
  %s1 = inlined_call_operand.vmem [shape: f32[32,192], index: 1, kind: input, shape index: {}]
  %s2 = inlined_call_operand.vmem [shape: bf16[192,32], index: 2, kind: input, shape index: {}]
  %s3 = inlined_call_operand.vmem [shape: f32[1,32], index: 3, kind: input, shape index: {}]
  %s4 = inlined_call_operand.vmem [shape: f32[1,32], index: 4, kind: input, shape index: {}]
  %s5 = inlined_call_operand.vmem [shape: f32[16,32], index: 5, kind: input, shape index: {}]
  %s6 = inlined_call_operand.vmem [shape: f32[3,1,32], index: 6, kind: input, shape index: {}]
  %s7 = inlined_call_operand.vmem [shape: f32[3,1,32], index: 7, kind: input, shape index: {}]
  %s8 = inlined_call_operand.vmem [shape: bf16[3,32,96], index: 8, kind: input, shape index: {}]
  %s9 = inlined_call_operand.vmem [shape: f32[3,1,96], index: 9, kind: input, shape index: {}]
  %s10 = inlined_call_operand.vmem [shape: bf16[3,32,32], index: 10, kind: input, shape index: {}]
  %s11 = inlined_call_operand.vmem [shape: f32[3,1,32], index: 11, kind: input, shape index: {}]
  %s12 = inlined_call_operand.vmem [shape: f32[3,1,32], index: 12, kind: input, shape index: {}]
  %s13 = inlined_call_operand.vmem [shape: f32[3,1,32], index: 13, kind: input, shape index: {}]
  %s14 = inlined_call_operand.vmem [shape: bf16[3,32,128], index: 14, kind: input, shape index: {}]
  %s15 = inlined_call_operand.vmem [shape: f32[3,1,128], index: 15, kind: input, shape index: {}]
  %s16 = inlined_call_operand.vmem [shape: bf16[3,128,32], index: 16, kind: input, shape index: {}]
  %s17 = inlined_call_operand.vmem [shape: f32[3,1,32], index: 17, kind: input, shape index: {}]
  %s18 = inlined_call_operand.vmem [shape: bf16[3,32,128], index: 18, kind: input, shape index: {}]
  %s19 = inlined_call_operand.vmem [shape: f32[3,1,128], index: 19, kind: input, shape index: {}]
  %s20 = inlined_call_operand.vmem [shape: f32[3,32,128], index: 20, kind: output, shape index: {}]
  %s21 = sld [smem:[#allocation0]]
  $region113: #{feature_backbone_forward.1} parent=0
    _
  %s23 = ssub.s32 1, %s21
  %s24 = scalar_select 0, %s23, %s21
  %s25 = sshll.u32 %s0, 4
  %s26 = int_to_ptr.vmem [resolvable:$true] %s25
  %28 = dma.vmem_to_smem %s26, 16, [#allocation4], [#allocation3]
  %29 = dma.done [#allocation3], 16
  %30 = sfence
  loop: start=0, step=1, limit=5
  $region2: #{feature_backbone_forward.1} parent=0 // loop_pre_header
    _
  $region3: #{feature_backbone_forward.1} parent=0 // loop_header
    %s32 = sphi 0, %s36
    %p33 = scmp.ge.s32.totalorder %s32, 5
    %s40 = sphi 0, %s40
    %s42 = sphi 0, %s40
    %s43 = sphi 0, %s42
    %s57 = sphi 0, %s43
    %s61 = sphi 0, %s61
    %s63 = sphi 0, %s61
    %s64 = sphi 0, %s63
    %s78 = sphi 0, %s64
    %s82 = sphi 0, %s82
    %s84 = sphi 0, %s82
    %s85 = sphi 0, %s84
    %s99 = sphi 0, %s85
    %s103 = sphi 0, %s103
    %s105 = sphi 0, %s103
    %s106 = sphi 0, %s105
    %s120 = sphi 0, %s106
    %s124 = sphi 0, %s124
    %s126 = sphi 0, %s124
    %s127 = sphi 0, %s126
    %s141 = sphi 0, %s127
    %s147 = sphi 0, %s149
    %s150 = sphi 0, %s147
    %s151 = sphi 0, %s150
    %s167 = sphi 0, %s151
    %s173 = sphi 0, %s175
    %s176 = sphi 0, %s173
    %s177 = sphi 0, %s176
    %s193 = sphi 0, %s177
    %s199 = sphi 0, %s201
    %s202 = sphi 0, %s199
    %s203 = sphi 0, %s202
    %s219 = sphi 0, %s203
    %s225 = sphi 0, %s227
    %s228 = sphi 0, %s225
    %s229 = sphi 0, %s228
    %s245 = sphi 0, %s229
    %s251 = sphi 0, %s253
    %s254 = sphi 0, %s251
    %s255 = sphi 0, %s254
    %s271 = sphi 0, %s255
    %s277 = sphi 0, %s279
    %s280 = sphi 0, %s277
    %s281 = sphi 0, %s280
    %s297 = sphi 0, %s281
    %s303 = sphi 0, %s305
    %s306 = sphi 0, %s303
    %s307 = sphi 0, %s306
    %s323 = sphi 0, %s307
    %s329 = sphi 0, %s331
    %s332 = sphi 0, %s329
    %s333 = sphi 0, %s332
    %s349 = sphi 0, %s333
    %s355 = sphi 0, %s357
    %s358 = sphi 0, %s355
    %s359 = sphi 0, %s358
    %s375 = sphi 0, %s359
    %s381 = sphi 0, %s383
    %s384 = sphi 0, %s381
    %s385 = sphi 0, %s384
    %s401 = sphi 0, %s385
    %s407 = sphi 0, %s409
    %s410 = sphi 0, %s407
    %s411 = sphi 0, %s410
    %s427 = sphi 0, %s411
    %s433 = sphi 0, %s435
    %s436 = sphi 0, %s433
    %s437 = sphi 0, %s436
    %s453 = sphi 0, %s437
    %s461 = sphi 0, %s463
    %s464 = sphi 0, %s461
    %s465 = sphi 0, %s464
    %s481 = sphi 0, %s465
    %s489 = sphi 0, %s491
    %s492 = sphi 0, %s489
    %s493 = sphi 0, %s492
    %s509 = sphi 0, %s493
    %s517 = sphi 0, %s519
    %s520 = sphi 0, %s517
    %s521 = sphi 0, %s520
    %s537 = sphi 0, %s521
  $region4: #{feature_backbone_forward.1} parent=0 // loop_header_branch
    %35 = sbr.rel (%p33) target = $region8
  $region5: #{feature_backbone_forward.1} parent=0 // loop_body
    %s37 = ssub.s32 %s32, 1
    %s38 = ssub.s32 %s32, 2
    %s39 = sadd.s32 %s32, 1
    %s41 = sadd.s32 %s40, 1
    %p44 = scmp.eq.s32.totalorder %s32, 2
    %p45 = scmp.ne.s32.totalorder %s40, %s42
    %p46 = scmp.eq.s32.totalorder %s32, 0
    %p47 = por %p45, %p46
    %p48 = scmp.ne.s32.totalorder %s40, %s42
    %p49 = scmp.eq.s32.totalorder %s37, 2
    %p50 = por %p48, %p49
    %p51 = scmp.ne.s32.totalorder %s42, %s43
    %p52 = scmp.eq.s32.totalorder %s37, 0
    %p53 = por %p51, %p52
    %p54 = scmp.ne.s32.totalorder %s42, %s43
    %p55 = scmp.eq.s32.totalorder %s38, 2
    %p56 = por %p54, %p55
    %p58 = scmp.ne.s32.totalorder %s43, %s57
    %p59 = scmp.eq.s32.totalorder %s38, 0
    %p60 = por %p58, %p59
    %s62 = sadd.s32 %s61, 1
    %p65 = scmp.eq.s32.totalorder %s32, 2
    %p66 = scmp.ne.s32.totalorder %s61, %s63
    %p67 = scmp.eq.s32.totalorder %s32, 0
    %p68 = por %p66, %p67
    %p69 = scmp.ne.s32.totalorder %s61, %s63
    %p70 = scmp.eq.s32.totalorder %s37, 2
    %p71 = por %p69, %p70
    %p72 = scmp.ne.s32.totalorder %s63, %s64
    %p73 = scmp.eq.s32.totalorder %s37, 0
    %p74 = por %p72, %p73
    %p75 = scmp.ne.s32.totalorder %s63, %s64
    %p76 = scmp.eq.s32.totalorder %s38, 2
    %p77 = por %p75, %p76
    %p79 = scmp.ne.s32.totalorder %s64, %s78
    %p80 = scmp.eq.s32.totalorder %s38, 0
    %p81 = por %p79, %p80
    %s83 = sadd.s32 %s82, 1
    %p86 = scmp.eq.s32.totalorder %s32, 2
    %p87 = scmp.ne.s32.totalorder %s82, %s84
    %p88 = scmp.eq.s32.totalorder %s32, 0
    %p89 = por %p87, %p88
    %p90 = scmp.ne.s32.totalorder %s82, %s84
    %p91 = scmp.eq.s32.totalorder %s37, 2
    %p92 = por %p90, %p91
    %p93 = scmp.ne.s32.totalorder %s84, %s85
    %p94 = scmp.eq.s32.totalorder %s37, 0
    %p95 = por %p93, %p94
    %p96 = scmp.ne.s32.totalorder %s84, %s85
    %p97 = scmp.eq.s32.totalorder %s38, 2
    %p98 = por %p96, %p97
    %p100 = scmp.ne.s32.totalorder %s85, %s99
    %p101 = scmp.eq.s32.totalorder %s38, 0
    %p102 = por %p100, %p101
    %s104 = sadd.s32 %s103, 1
    %p107 = scmp.eq.s32.totalorder %s32, 2
    %p108 = scmp.ne.s32.totalorder %s103, %s105
    %p109 = scmp.eq.s32.totalorder %s32, 0
    %p110 = por %p108, %p109
    %p111 = scmp.ne.s32.totalorder %s103, %s105
    %p112 = scmp.eq.s32.totalorder %s37, 2
    %p113 = por %p111, %p112
    %p114 = scmp.ne.s32.totalorder %s105, %s106
    %p115 = scmp.eq.s32.totalorder %s37, 0
    %p116 = por %p114, %p115
    %p117 = scmp.ne.s32.totalorder %s105, %s106
    %p118 = scmp.eq.s32.totalorder %s38, 2
    %p119 = por %p117, %p118
    %p121 = scmp.ne.s32.totalorder %s106, %s120
    %p122 = scmp.eq.s32.totalorder %s38, 0
    %p123 = por %p121, %p122
    %s125 = sadd.s32 %s124, 1
    %p128 = scmp.eq.s32.totalorder %s32, 2
    %p129 = scmp.ne.s32.totalorder %s124, %s126
    %p130 = scmp.eq.s32.totalorder %s32, 0
    %p131 = por %p129, %p130
    %p132 = scmp.ne.s32.totalorder %s124, %s126
    %p133 = scmp.eq.s32.totalorder %s37, 2
    %p134 = por %p132, %p133
    %p135 = scmp.ne.s32.totalorder %s126, %s127
    %p136 = scmp.eq.s32.totalorder %s37, 0
    %p137 = por %p135, %p136
    %p138 = scmp.ne.s32.totalorder %s126, %s127
    %p139 = scmp.eq.s32.totalorder %s38, 2
    %p140 = por %p138, %p139
    %p142 = scmp.ne.s32.totalorder %s127, %s141
    %p143 = scmp.eq.s32.totalorder %s38, 0
    %p144 = por %p142, %p143
    %s145 = ssub.s32 %s32, %s39
    %p146 = scmp.eq.s32.totalorder %s145, 0
    %s148 = sadd.s32 %s147, 1
    %s149 = scalar_select %p146, %s147, %s148
    %p152 = pneg %p146
    %p153 = scmp.eq.s32.totalorder %s32, 2
    %p154 = por %p152, %p153
    %p155 = scmp.ne.s32.totalorder %s147, %s150
    %p156 = scmp.eq.s32.totalorder %s32, 0
    %p157 = por %p155, %p156
    %p158 = scmp.ne.s32.totalorder %s147, %s150
    %p159 = scmp.eq.s32.totalorder %s37, 2
    %p160 = por %p158, %p159
    %p161 = scmp.ne.s32.totalorder %s150, %s151
    %p162 = scmp.eq.s32.totalorder %s37, 0
    %p163 = por %p161, %p162
    %p164 = scmp.ne.s32.totalorder %s150, %s151
    %p165 = scmp.eq.s32.totalorder %s38, 2
    %p166 = por %p164, %p165
    %p168 = scmp.ne.s32.totalorder %s151, %s167
    %p169 = scmp.eq.s32.totalorder %s38, 0
    %p170 = por %p168, %p169
    %s171 = ssub.s32 %s32, %s39
    %p172 = scmp.eq.s32.totalorder %s171, 0
    %s174 = sadd.s32 %s173, 1
    %s175 = scalar_select %p172, %s173, %s174
    %p178 = pneg %p172
    %p179 = scmp.eq.s32.totalorder %s32, 2
    %p180 = por %p178, %p179
    %p181 = scmp.ne.s32.totalorder %s173, %s176
    %p182 = scmp.eq.s32.totalorder %s32, 0
    %p183 = por %p181, %p182
    %p184 = scmp.ne.s32.totalorder %s173, %s176
    %p185 = scmp.eq.s32.totalorder %s37, 2
    %p186 = por %p184, %p185
    %p187 = scmp.ne.s32.totalorder %s176, %s177
    %p188 = scmp.eq.s32.totalorder %s37, 0
    %p189 = por %p187, %p188
    %p190 = scmp.ne.s32.totalorder %s176, %s177
    %p191 = scmp.eq.s32.totalorder %s38, 2
    %p192 = por %p190, %p191
    %p194 = scmp.ne.s32.totalorder %s177, %s193
    %p195 = scmp.eq.s32.totalorder %s38, 0
    %p196 = por %p194, %p195
    %s197 = ssub.s32 %s32, %s39
    %p198 = scmp.eq.s32.totalorder %s197, 0
    %s200 = sadd.s32 %s199, 1
    %s201 = scalar_select %p198, %s199, %s200
    %p204 = pneg %p198
    %p205 = scmp.eq.s32.totalorder %s32, 2
    %p206 = por %p204, %p205
    %p207 = scmp.ne.s32.totalorder %s199, %s202
    %p208 = scmp.eq.s32.totalorder %s32, 0
    %p209 = por %p207, %p208
    %p210 = scmp.ne.s32.totalorder %s199, %s202
    %p211 = scmp.eq.s32.totalorder %s37, 2
    %p212 = por %p210, %p211
    %p213 = scmp.ne.s32.totalorder %s202, %s203
    %p214 = scmp.eq.s32.totalorder %s37, 0
    %p215 = por %p213, %p214
    %p216 = scmp.ne.s32.totalorder %s202, %s203
    %p217 = scmp.eq.s32.totalorder %s38, 2
    %p218 = por %p216, %p217
    %p220 = scmp.ne.s32.totalorder %s203, %s219
    %p221 = scmp.eq.s32.totalorder %s38, 0
    %p222 = por %p220, %p221
    %s223 = ssub.s32 %s32, %s39
    %p224 = scmp.eq.s32.totalorder %s223, 0
    %s226 = sadd.s32 %s225, 1
    %s227 = scalar_select %p224, %s225, %s226
    %p230 = pneg %p224
    %p231 = scmp.eq.s32.totalorder %s32, 2
    %p232 = por %p230, %p231
    %p233 = scmp.ne.s32.totalorder %s225, %s228
    %p234 = scmp.eq.s32.totalorder %s32, 0
    %p235 = por %p233, %p234
    %p236 = scmp.ne.s32.totalorder %s225, %s228
    %p237 = scmp.eq.s32.totalorder %s37, 2
    %p238 = por %p236, %p237
    %p239 = scmp.ne.s32.totalorder %s228, %s229
    %p240 = scmp.eq.s32.totalorder %s37, 0
    %p241 = por %p239, %p240
    %p242 = scmp.ne.s32.totalorder %s228, %s229
    %p243 = scmp.eq.s32.totalorder %s38, 2
    %p244 = por %p242, %p243
    %p246 = scmp.ne.s32.totalorder %s229, %s245
    %p247 = scmp.eq.s32.totalorder %s38, 0
    %p248 = por %p246, %p247
    %s249 = ssub.s32 %s32, %s39
    %p250 = scmp.eq.s32.totalorder %s249, 0
    %s252 = sadd.s32 %s251, 1
    %s253 = scalar_select %p250, %s251, %s252
    %p256 = pneg %p250
    %p257 = scmp.eq.s32.totalorder %s32, 2
    %p258 = por %p256, %p257
    %p259 = scmp.ne.s32.totalorder %s251, %s254
    %p260 = scmp.eq.s32.totalorder %s32, 0
    %p261 = por %p259, %p260
    %p262 = scmp.ne.s32.totalorder %s251, %s254
    %p263 = scmp.eq.s32.totalorder %s37, 2
    %p264 = por %p262, %p263
    %p265 = scmp.ne.s32.totalorder %s254, %s255
    %p266 = scmp.eq.s32.totalorder %s37, 0
    %p267 = por %p265, %p266
    %p268 = scmp.ne.s32.totalorder %s254, %s255
    %p269 = scmp.eq.s32.totalorder %s38, 2
    %p270 = por %p268, %p269
    %p272 = scmp.ne.s32.totalorder %s255, %s271
    %p273 = scmp.eq.s32.totalorder %s38, 0
    %p274 = por %p272, %p273
    %s275 = ssub.s32 %s32, %s39
    %p276 = scmp.eq.s32.totalorder %s275, 0
    %s278 = sadd.s32 %s277, 1
    %s279 = scalar_select %p276, %s277, %s278
    %p282 = pneg %p276
    %p283 = scmp.eq.s32.totalorder %s32, 2
    %p284 = por %p282, %p283
    %p285 = scmp.ne.s32.totalorder %s277, %s280
    %p286 = scmp.eq.s32.totalorder %s32, 0
    %p287 = por %p285, %p286
    %p288 = scmp.ne.s32.totalorder %s277, %s280
    %p289 = scmp.eq.s32.totalorder %s37, 2
    %p290 = por %p288, %p289
    %p291 = scmp.ne.s32.totalorder %s280, %s281
    %p292 = scmp.eq.s32.totalorder %s37, 0
    %p293 = por %p291, %p292
    %p294 = scmp.ne.s32.totalorder %s280, %s281
    %p295 = scmp.eq.s32.totalorder %s38, 2
    %p296 = por %p294, %p295
    %p298 = scmp.ne.s32.totalorder %s281, %s297
    %p299 = scmp.eq.s32.totalorder %s38, 0
    %p300 = por %p298, %p299
    %s301 = ssub.s32 %s32, %s39
    %p302 = scmp.eq.s32.totalorder %s301, 0
    %s304 = sadd.s32 %s303, 1
    %s305 = scalar_select %p302, %s303, %s304
    %p308 = pneg %p302
    %p309 = scmp.eq.s32.totalorder %s32, 2
    %p310 = por %p308, %p309
    %p311 = scmp.ne.s32.totalorder %s303, %s306
    %p312 = scmp.eq.s32.totalorder %s32, 0
    %p313 = por %p311, %p312
    %p314 = scmp.ne.s32.totalorder %s303, %s306
    %p315 = scmp.eq.s32.totalorder %s37, 2
    %p316 = por %p314, %p315
    %p317 = scmp.ne.s32.totalorder %s306, %s307
    %p318 = scmp.eq.s32.totalorder %s37, 0
    %p319 = por %p317, %p318
    %p320 = scmp.ne.s32.totalorder %s306, %s307
    %p321 = scmp.eq.s32.totalorder %s38, 2
    %p322 = por %p320, %p321
    %p324 = scmp.ne.s32.totalorder %s307, %s323
    %p325 = scmp.eq.s32.totalorder %s38, 0
    %p326 = por %p324, %p325
    %s327 = ssub.s32 %s32, %s39
    %p328 = scmp.eq.s32.totalorder %s327, 0
    %s330 = sadd.s32 %s329, 1
    %s331 = scalar_select %p328, %s329, %s330
    %p334 = pneg %p328
    %p335 = scmp.eq.s32.totalorder %s32, 2
    %p336 = por %p334, %p335
    %p337 = scmp.ne.s32.totalorder %s329, %s332
    %p338 = scmp.eq.s32.totalorder %s32, 0
    %p339 = por %p337, %p338
    %p340 = scmp.ne.s32.totalorder %s329, %s332
    %p341 = scmp.eq.s32.totalorder %s37, 2
    %p342 = por %p340, %p341
    %p343 = scmp.ne.s32.totalorder %s332, %s333
    %p344 = scmp.eq.s32.totalorder %s37, 0
    %p345 = por %p343, %p344
    %p346 = scmp.ne.s32.totalorder %s332, %s333
    %p347 = scmp.eq.s32.totalorder %s38, 2
    %p348 = por %p346, %p347
    %p350 = scmp.ne.s32.totalorder %s333, %s349
    %p351 = scmp.eq.s32.totalorder %s38, 0
    %p352 = por %p350, %p351
    %s353 = ssub.s32 %s32, %s39
    %p354 = scmp.eq.s32.totalorder %s353, 0
    %s356 = sadd.s32 %s355, 1
    %s357 = scalar_select %p354, %s355, %s356
    %p360 = pneg %p354
    %p361 = scmp.eq.s32.totalorder %s32, 2
    %p362 = por %p360, %p361
    %p363 = scmp.ne.s32.totalorder %s355, %s358
    %p364 = scmp.eq.s32.totalorder %s32, 0
    %p365 = por %p363, %p364
    %p366 = scmp.ne.s32.totalorder %s355, %s358
    %p367 = scmp.eq.s32.totalorder %s37, 2
    %p368 = por %p366, %p367
    %p369 = scmp.ne.s32.totalorder %s358, %s359
    %p370 = scmp.eq.s32.totalorder %s37, 0
    %p371 = por %p369, %p370
    %p372 = scmp.ne.s32.totalorder %s358, %s359
    %p373 = scmp.eq.s32.totalorder %s38, 2
    %p374 = por %p372, %p373
    %p376 = scmp.ne.s32.totalorder %s359, %s375
    %p377 = scmp.eq.s32.totalorder %s38, 0
    %p378 = por %p376, %p377
    %s379 = ssub.s32 %s32, %s39
    %p380 = scmp.eq.s32.totalorder %s379, 0
    %s382 = sadd.s32 %s381, 1
    %s383 = scalar_select %p380, %s381, %s382
    %p386 = pneg %p380
    %p387 = scmp.eq.s32.totalorder %s32, 2
    %p388 = por %p386, %p387
    %p389 = scmp.ne.s32.totalorder %s381, %s384
    %p390 = scmp.eq.s32.totalorder %s32, 0
    %p391 = por %p389, %p390
    %p392 = scmp.ne.s32.totalorder %s381, %s384
    %p393 = scmp.eq.s32.totalorder %s37, 2
    %p394 = por %p392, %p393
    %p395 = scmp.ne.s32.totalorder %s384, %s385
    %p396 = scmp.eq.s32.totalorder %s37, 0
    %p397 = por %p395, %p396
    %p398 = scmp.ne.s32.totalorder %s384, %s385
    %p399 = scmp.eq.s32.totalorder %s38, 2
    %p400 = por %p398, %p399
    %p402 = scmp.ne.s32.totalorder %s385, %s401
    %p403 = scmp.eq.s32.totalorder %s38, 0
    %p404 = por %p402, %p403
    %s405 = ssub.s32 %s32, %s39
    %p406 = scmp.eq.s32.totalorder %s405, 0
    %s408 = sadd.s32 %s407, 1
    %s409 = scalar_select %p406, %s407, %s408
    %p412 = pneg %p406
    %p413 = scmp.eq.s32.totalorder %s32, 2
    %p414 = por %p412, %p413
    %p415 = scmp.ne.s32.totalorder %s407, %s410
    %p416 = scmp.eq.s32.totalorder %s32, 0
    %p417 = por %p415, %p416
    %p418 = scmp.ne.s32.totalorder %s407, %s410
    %p419 = scmp.eq.s32.totalorder %s37, 2
    %p420 = por %p418, %p419
    %p421 = scmp.ne.s32.totalorder %s410, %s411
    %p422 = scmp.eq.s32.totalorder %s37, 0
    %p423 = por %p421, %p422
    %p424 = scmp.ne.s32.totalorder %s410, %s411
    %p425 = scmp.eq.s32.totalorder %s38, 2
    %p426 = por %p424, %p425
    %p428 = scmp.ne.s32.totalorder %s411, %s427
    %p429 = scmp.eq.s32.totalorder %s38, 0
    %p430 = por %p428, %p429
    %s431 = ssub.s32 %s32, %s39
    %p432 = scmp.eq.s32.totalorder %s431, 0
    %s434 = sadd.s32 %s433, 1
    %s435 = scalar_select %p432, %s433, %s434
    %p438 = pneg %p432
    %p439 = scmp.eq.s32.totalorder %s32, 2
    %p440 = por %p438, %p439
    %p441 = scmp.ne.s32.totalorder %s433, %s436
    %p442 = scmp.eq.s32.totalorder %s32, 0
    %p443 = por %p441, %p442
    %p444 = scmp.ne.s32.totalorder %s433, %s436
    %p445 = scmp.eq.s32.totalorder %s37, 2
    %p446 = por %p444, %p445
    %p447 = scmp.ne.s32.totalorder %s436, %s437
    %p448 = scmp.eq.s32.totalorder %s37, 0
    %p449 = por %p447, %p448
    %p450 = scmp.ne.s32.totalorder %s436, %s437
    %p451 = scmp.eq.s32.totalorder %s38, 2
    %p452 = por %p450, %p451
    %p454 = scmp.ne.s32.totalorder %s437, %s453
    %p455 = scmp.eq.s32.totalorder %s38, 0
    %p456 = por %p454, %p455
    %s457 = sld [smem:[#allocation4 + %s32]]
    %s458 = sld [smem:[#allocation4 + %s39]]
    %s459 = ssub.s32 %s457, %s458
    %p460 = scmp.eq.s32.totalorder %s459, 0
    %s462 = sadd.s32 %s461, 1
    %s463 = scalar_select %p460, %s461, %s462
    %p466 = pneg %p460
    %p467 = scmp.eq.s32.totalorder %s32, 2
    %p468 = por %p466, %p467
    %p469 = scmp.ne.s32.totalorder %s461, %s464
    %p470 = scmp.eq.s32.totalorder %s32, 0
    %p471 = por %p469, %p470
    %p472 = scmp.ne.s32.totalorder %s461, %s464
    %p473 = scmp.eq.s32.totalorder %s37, 2
    %p474 = por %p472, %p473
    %p475 = scmp.ne.s32.totalorder %s464, %s465
    %p476 = scmp.eq.s32.totalorder %s37, 0
    %p477 = por %p475, %p476
    %p478 = scmp.ne.s32.totalorder %s464, %s465
    %p479 = scmp.eq.s32.totalorder %s38, 2
    %p480 = por %p478, %p479
    %p482 = scmp.ne.s32.totalorder %s465, %s481
    %p483 = scmp.eq.s32.totalorder %s38, 0
    %p484 = por %p482, %p483
    %s485 = sld [smem:[#allocation4 + %s32]]
    %s486 = sld [smem:[#allocation4 + %s39]]
    %s487 = ssub.s32 %s485, %s486
    %p488 = scmp.eq.s32.totalorder %s487, 0
    %s490 = sadd.s32 %s489, 1
    %s491 = scalar_select %p488, %s489, %s490
    %p494 = pneg %p488
    %p495 = scmp.eq.s32.totalorder %s32, 2
    %p496 = por %p494, %p495
    %p497 = scmp.ne.s32.totalorder %s489, %s492
    %p498 = scmp.eq.s32.totalorder %s32, 0
    %p499 = por %p497, %p498
    %p500 = scmp.ne.s32.totalorder %s489, %s492
    %p501 = scmp.eq.s32.totalorder %s37, 2
    %p502 = por %p500, %p501
    %p503 = scmp.ne.s32.totalorder %s492, %s493
    %p504 = scmp.eq.s32.totalorder %s37, 0
    %p505 = por %p503, %p504
    %p506 = scmp.ne.s32.totalorder %s492, %s493
    %p507 = scmp.eq.s32.totalorder %s38, 2
    %p508 = por %p506, %p507
    %p510 = scmp.ne.s32.totalorder %s493, %s509
    %p511 = scmp.eq.s32.totalorder %s38, 0
    %p512 = por %p510, %p511
    %s513 = sld [smem:[#allocation4 + %s32]]
    %s514 = sld [smem:[#allocation4 + %s39]]
    %s515 = ssub.s32 %s513, %s514
    %p516 = scmp.eq.s32.totalorder %s515, 0
    %s518 = sadd.s32 %s517, 1
    %s519 = scalar_select %p516, %s517, %s518
    %p522 = pneg %p516
    %p523 = scmp.eq.s32.totalorder %s32, 2
    %p524 = por %p522, %p523
    %p525 = scmp.ne.s32.totalorder %s517, %s520
    %p526 = scmp.eq.s32.totalorder %s32, 0
    %p527 = por %p525, %p526
    %p528 = scmp.ne.s32.totalorder %s517, %s520
    %p529 = scmp.eq.s32.totalorder %s37, 2
    %p530 = por %p528, %p529
    %p531 = scmp.ne.s32.totalorder %s520, %s521
    %p532 = scmp.eq.s32.totalorder %s37, 0
    %p533 = por %p531, %p532
    %p534 = scmp.ne.s32.totalorder %s520, %s521
    %p535 = scmp.eq.s32.totalorder %s38, 2
    %p536 = por %p534, %p535
    %p538 = scmp.ne.s32.totalorder %s521, %s537
    %p539 = scmp.eq.s32.totalorder %s38, 0
    %p540 = por %p538, %p539
    %p541 = scmp.le.s32.totalorder 1, %s32
    %p542 = scmp.lt.s32.totalorder %s32, 4
    %p543 = pnand %p541, %p542
    %p544 = pneg %p543
    // Predicated region
    $region9: #{feature_backbone_forward.1} parent=5 // pred_check
      _
    $region10: #{feature_backbone_forward.1} parent=5 // pred_check_branch
      %546 = sbr.rel (%p543) target = $region12
    $region11: #{feature_backbone_forward.1} parent=5 // pred_region
      %s547 = ssub.s32 %s32, 1
      // Predicated region
      $region13: #{feature_backbone_forward.1} parent=11 // pred_check
        %p548 = pneg %p53
      $region14: #{feature_backbone_forward.1} parent=11 // pred_check_branch
        %550 = sbr.rel (%p548) target = $region16
      $region15: #{feature_backbone_forward.1} parent=11 // pred_region
        _
      $region16: #{feature_backbone_forward.1} parent=11 // pred_fallthru
        _
      // Predicated region
      $region17: #{feature_backbone_forward.1} parent=11 // pred_check
        %p551 = pneg %p74
      $region18: #{feature_backbone_forward.1} parent=11 // pred_check_branch
        %553 = sbr.rel (%p551) target = $region20
      $region19: #{feature_backbone_forward.1} parent=11 // pred_region
        _
      $region20: #{feature_backbone_forward.1} parent=11 // pred_fallthru
        _
      // Predicated region
      $region21: #{feature_backbone_forward.1} parent=11 // pred_check
        %p554 = pneg %p95
      $region22: #{feature_backbone_forward.1} parent=11 // pred_check_branch
        %556 = sbr.rel (%p554) target = $region24
      $region23: #{feature_backbone_forward.1} parent=11 // pred_region
        _
      $region24: #{feature_backbone_forward.1} parent=11 // pred_fallthru
        _
      // Predicated region
      $region25: #{feature_backbone_forward.1} parent=11 // pred_check
        %p557 = pneg %p116
      $region26: #{feature_backbone_forward.1} parent=11 // pred_check_branch
        %559 = sbr.rel (%p557) target = $region28
      $region27: #{feature_backbone_forward.1} parent=11 // pred_region
        _
      $region28: #{feature_backbone_forward.1} parent=11 // pred_fallthru
        _
      // Predicated region
      $region29: #{feature_backbone_forward.1} parent=11 // pred_check
        %p560 = pneg %p137
      $region30: #{feature_backbone_forward.1} parent=11 // pred_check_branch
        %562 = sbr.rel (%p560) target = $region32
      $region31: #{feature_backbone_forward.1} parent=11 // pred_region
        _
      $region32: #{feature_backbone_forward.1} parent=11 // pred_fallthru
        _
    $region12: #{feature_backbone_forward.1} parent=5 // pred_fallthru
      _
    %p563 = scmp.lt.s32.totalorder %s32, 3
    // Predicated region
    $region33: #{feature_backbone_forward.1} parent=5 // pred_check
      %p564 = pneg %p563
    $region34: #{feature_backbone_forward.1} parent=5 // pred_check_branch
      %566 = sbr.rel (%p564) target = $region36
    $region35: #{feature_backbone_forward.1} parent=5 // pred_region
      // Predicated region
      $region37: #{feature_backbone_forward.1} parent=35 // pred_check
        %p567 = pneg %p157
      $region38: #{feature_backbone_forward.1} parent=35 // pred_check_branch
        %569 = sbr.rel (%p567) target = $region40
      $region39: #{feature_backbone_forward.1} parent=35 // pred_region
        %p570 = scmp.lt.s32.totalorder %s32, 2
        %s571 = scalar_select %p570, %s32, 2
        %s572 = scalar_lea.vmem %s6, %s571
      $region40: #{feature_backbone_forward.1} parent=35 // pred_fallthru
        _
      // Predicated region
      $region41: #{feature_backbone_forward.1} parent=35 // pred_check
        %p573 = pneg %p183
      $region42: #{feature_backbone_forward.1} parent=35 // pred_check_branch
        %575 = sbr.rel (%p573) target = $region44
      $region43: #{feature_backbone_forward.1} parent=35 // pred_region
        %p576 = scmp.lt.s32.totalorder %s32, 2
        %s577 = scalar_select %p576, %s32, 2
        %s578 = scalar_lea.vmem %s7, %s577
      $region44: #{feature_backbone_forward.1} parent=35 // pred_fallthru
        _
      // Predicated region
      $region45: #{feature_backbone_forward.1} parent=35 // pred_check
        %p579 = pneg %p209
      $region46: #{feature_backbone_forward.1} parent=35 // pred_check_branch
        %581 = sbr.rel (%p579) target = $region48
      $region47: #{feature_backbone_forward.1} parent=35 // pred_region
        %p582 = scmp.lt.s32.totalorder %s32, 2
        %s583 = scalar_select %p582, %s32, 2
        %s584 = smul.addr %s583, 4
        %s585 = smul.addr %s584, 4
        %s586 = scalar_lea.vmem %s8, %s585
      $region48: #{feature_backbone_forward.1} parent=35 // pred_fallthru
        _
      // Predicated region
      $region49: #{feature_backbone_forward.1} parent=35 // pred_check
        %p587 = pneg %p235
      $region50: #{feature_backbone_forward.1} parent=35 // pred_check_branch
        %589 = sbr.rel (%p587) target = $region52
      $region51: #{feature_backbone_forward.1} parent=35 // pred_region
        %p590 = scmp.lt.s32.totalorder %s32, 2
        %s591 = scalar_select %p590, %s32, 2
        %s592 = scalar_lea.vmem %s9, %s591
      $region52: #{feature_backbone_forward.1} parent=35 // pred_fallthru
        _
      // Predicated region
      $region53: #{feature_backbone_forward.1} parent=35 // pred_check
        %p593 = pneg %p261
      $region54: #{feature_backbone_forward.1} parent=35 // pred_check_branch
        %595 = sbr.rel (%p593) target = $region56
      $region55: #{feature_backbone_forward.1} parent=35 // pred_region
        %p596 = scmp.lt.s32.totalorder %s32, 2
        %s597 = scalar_select %p596, %s32, 2
        %s598 = smul.addr %s597, 4
        %s599 = smul.addr %s598, 4
        %s600 = scalar_lea.vmem %s10, %s599
      $region56: #{feature_backbone_forward.1} parent=35 // pred_fallthru
        _
      // Predicated region
      $region57: #{feature_backbone_forward.1} parent=35 // pred_check
        %p601 = pneg %p287
      $region58: #{feature_backbone_forward.1} parent=35 // pred_check_branch
        %603 = sbr.rel (%p601) target = $region60
      $region59: #{feature_backbone_forward.1} parent=35 // pred_region
        %p604 = scmp.lt.s32.totalorder %s32, 2
        %s605 = scalar_select %p604, %s32, 2
        %s606 = scalar_lea.vmem %s11, %s605
      $region60: #{feature_backbone_forward.1} parent=35 // pred_fallthru
        _
      // Predicated region
      $region61: #{feature_backbone_forward.1} parent=35 // pred_check
        %p607 = pneg %p313
      $region62: #{feature_backbone_forward.1} parent=35 // pred_check_branch
        %609 = sbr.rel (%p607) target = $region64
      $region63: #{feature_backbone_forward.1} parent=35 // pred_region
        %p610 = scmp.lt.s32.totalorder %s32, 2
        %s611 = scalar_select %p610, %s32, 2
        %s612 = scalar_lea.vmem %s12, %s611
      $region64: #{feature_backbone_forward.1} parent=35 // pred_fallthru
        _
      // Predicated region
      $region65: #{feature_backbone_forward.1} parent=35 // pred_check
        %p613 = pneg %p339
      $region66: #{feature_backbone_forward.1} parent=35 // pred_check_branch
        %615 = sbr.rel (%p613) target = $region68
      $region67: #{feature_backbone_forward.1} parent=35 // pred_region
        %p616 = scmp.lt.s32.totalorder %s32, 2
        %s617 = scalar_select %p616, %s32, 2
        %s618 = scalar_lea.vmem %s13, %s617
      $region68: #{feature_backbone_forward.1} parent=35 // pred_fallthru
        _
      // Predicated region
      $region69: #{feature_backbone_forward.1} parent=35 // pred_check
        %p619 = pneg %p365
      $region70: #{feature_backbone_forward.1} parent=35 // pred_check_branch
        %621 = sbr.rel (%p619) target = $region72
      $region71: #{feature_backbone_forward.1} parent=35 // pred_region
        %p622 = scmp.lt.s32.totalorder %s32, 2
        %s623 = scalar_select %p622, %s32, 2
        %s624 = smul.addr %s623, 4
        %s625 = smul.addr %s624, 4
        %s626 = scalar_lea.vmem %s14, %s625
      $region72: #{feature_backbone_forward.1} parent=35 // pred_fallthru
        _
      // Predicated region
      $region73: #{feature_backbone_forward.1} parent=35 // pred_check
        %p627 = pneg %p391
      $region74: #{feature_backbone_forward.1} parent=35 // pred_check_branch
        %629 = sbr.rel (%p627) target = $region76
      $region75: #{feature_backbone_forward.1} parent=35 // pred_region
        %p630 = scmp.lt.s32.totalorder %s32, 2
        %s631 = scalar_select %p630, %s32, 2
        %s632 = scalar_lea.vmem %s15, %s631
      $region76: #{feature_backbone_forward.1} parent=35 // pred_fallthru
        _
      // Predicated region
      $region77: #{feature_backbone_forward.1} parent=35 // pred_check
        %p633 = pneg %p417
      $region78: #{feature_backbone_forward.1} parent=35 // pred_check_branch
        %635 = sbr.rel (%p633) target = $region80
      $region79: #{feature_backbone_forward.1} parent=35 // pred_region
        %p636 = scmp.lt.s32.totalorder %s32, 2
        %s637 = scalar_select %p636, %s32, 2
        %s638 = smul.addr %s637, 16
        %s639 = smul.addr %s638, 4
        %s640 = scalar_lea.vmem %s16, %s639
      $region80: #{feature_backbone_forward.1} parent=35 // pred_fallthru
        _
      // Predicated region
      $region81: #{feature_backbone_forward.1} parent=35 // pred_check
        %p641 = pneg %p443
      $region82: #{feature_backbone_forward.1} parent=35 // pred_check_branch
        %643 = sbr.rel (%p641) target = $region84
      $region83: #{feature_backbone_forward.1} parent=35 // pred_region
        %p644 = scmp.lt.s32.totalorder %s32, 2
        %s645 = scalar_select %p644, %s32, 2
        %s646 = scalar_lea.vmem %s17, %s645
      $region84: #{feature_backbone_forward.1} parent=35 // pred_fallthru
        _
      // Predicated region
      $region85: #{feature_backbone_forward.1} parent=35 // pred_check
        %p647 = pneg %p471
      $region86: #{feature_backbone_forward.1} parent=35 // pred_check_branch
        %649 = sbr.rel (%p647) target = $region88
      $region87: #{feature_backbone_forward.1} parent=35 // pred_region
        %s650 = sld [smem:[#allocation4 + %s32]]
        %p651 = scmp.lt.s32.totalorder %s650, 2
        %s652 = scalar_select %p651, %s650, 2
        %s653 = smul.addr %s652, 4
        %s654 = smul.addr %s653, 4
        %s655 = scalar_lea.vmem %s18, %s654
        %s656 = sld [smem:[#allocation4 + %s32]]
      $region88: #{feature_backbone_forward.1} parent=35 // pred_fallthru
        _
      // Predicated region
      $region89: #{feature_backbone_forward.1} parent=35 // pred_check
        %p657 = pneg %p499
      $region90: #{feature_backbone_forward.1} parent=35 // pred_check_branch
        %659 = sbr.rel (%p657) target = $region92
      $region91: #{feature_backbone_forward.1} parent=35 // pred_region
        %s660 = sld [smem:[#allocation4 + %s32]]
        %p661 = scmp.lt.s32.totalorder %s660, 2
        %s662 = scalar_select %p661, %s660, 2
        %s663 = scalar_lea.vmem %s19, %s662
        %s664 = sld [smem:[#allocation4 + %s32]]
      $region92: #{feature_backbone_forward.1} parent=35 // pred_fallthru
        _
    $region36: #{feature_backbone_forward.1} parent=5 // pred_fallthru
      _
    %p665 = scmp.le.s32.totalorder 1, %s32
    %p666 = scmp.lt.s32.totalorder %s32, 4
    %p667 = pnand %p665, %p666
    %p668 = pneg %p667
    // Predicated region
    $region93: #{feature_backbone_forward.1} parent=5 // pred_check
      _
    $region94: #{feature_backbone_forward.1} parent=5 // pred_check_branch
      %670 = sbr.rel (%p667) target = $region96
    $region95: #{feature_backbone_forward.1} parent=5 // pred_region
      %s671 = ssub.s32 %s32, 1
      %p672 = pneg %p53
      %p673 = pneg %p50
      %p674 = pneg %p74
      %p675 = pneg %p71
      %p676 = pneg %p95
      %p677 = pneg %p92
      %p678 = pneg %p116
      %p679 = pneg %p113
      %p680 = pneg %p137
      %p681 = pneg %p134
      %p682 = scmp.lt.s32.totalorder %s37, 2
      %s683 = scalar_select %p682, %s37, 2
      %s684 = scalar_lea.vmem %s6, %s683
      %p685 = pneg %p163
      %p686 = pneg %p160
      %p687 = scmp.lt.s32.totalorder %s37, 2
      %s688 = scalar_select %p687, %s37, 2
      %s689 = scalar_lea.vmem %s7, %s688
      %p690 = pneg %p189
      %p691 = pneg %p186
      %p692 = scmp.lt.s32.totalorder %s37, 2
      %s693 = scalar_select %p692, %s37, 2
      %s694 = smul.addr %s693, 4
      %s695 = smul.addr %s694, 4
      %s696 = scalar_lea.vmem %s8, %s695
      %p697 = pneg %p215
      %p698 = pneg %p212
      %p699 = scmp.lt.s32.totalorder %s37, 2
      %s700 = scalar_select %p699, %s37, 2
      %s701 = scalar_lea.vmem %s9, %s700
      %p702 = pneg %p241
      %p703 = pneg %p238
      %p704 = scmp.lt.s32.totalorder %s37, 2
      %s705 = scalar_select %p704, %s37, 2
      %s706 = smul.addr %s705, 4
      %s707 = smul.addr %s706, 4
      %s708 = scalar_lea.vmem %s10, %s707
      %p709 = pneg %p267
      %p710 = pneg %p264
      %p711 = scmp.lt.s32.totalorder %s37, 2
      %s712 = scalar_select %p711, %s37, 2
      %s713 = scalar_lea.vmem %s11, %s712
      %p714 = pneg %p293
      %p715 = pneg %p290
      %p716 = scmp.lt.s32.totalorder %s37, 2
      %s717 = scalar_select %p716, %s37, 2
      %s718 = scalar_lea.vmem %s12, %s717
      %p719 = pneg %p319
      %p720 = pneg %p316
      %p721 = scmp.lt.s32.totalorder %s37, 2
      %s722 = scalar_select %p721, %s37, 2
      %s723 = scalar_lea.vmem %s13, %s722
      %p724 = pneg %p345
      %p725 = pneg %p342
      %p726 = scmp.lt.s32.totalorder %s37, 2
      %s727 = scalar_select %p726, %s37, 2
      %s728 = smul.addr %s727, 4
      %s729 = smul.addr %s728, 4
      %s730 = scalar_lea.vmem %s14, %s729
      %p731 = pneg %p371
      %p732 = pneg %p368
      %p733 = scmp.lt.s32.totalorder %s37, 2
      %s734 = scalar_select %p733, %s37, 2
      %s735 = scalar_lea.vmem %s15, %s734
      %p736 = pneg %p397
      %p737 = pneg %p394
      %p738 = scmp.lt.s32.totalorder %s37, 2
      %s739 = scalar_select %p738, %s37, 2
      %s740 = smul.addr %s739, 16
      %s741 = smul.addr %s740, 4
      %s742 = scalar_lea.vmem %s16, %s741
      %p743 = pneg %p423
      %p744 = pneg %p420
      %p745 = scmp.lt.s32.totalorder %s37, 2
      %s746 = scalar_select %p745, %s37, 2
      %s747 = scalar_lea.vmem %s17, %s746
      %p748 = pneg %p449
      %p749 = pneg %p446
      %s750 = sld [smem:[#allocation4 + %s37]]
      %p751 = scmp.lt.s32.totalorder %s750, 2
      %s752 = scalar_select %p751, %s750, 2
      %s753 = smul.addr %s752, 4
      %s754 = smul.addr %s753, 4
      %s755 = scalar_lea.vmem %s18, %s754
      %p756 = pneg %p477
      %p757 = pneg %p474
      %s758 = sld [smem:[#allocation4 + %s37]]
      %p759 = scmp.lt.s32.totalorder %s758, 2
      %s760 = scalar_select %p759, %s758, 2
      %s761 = scalar_lea.vmem %s19, %s760
      %p762 = pneg %p505
      %p763 = pneg %p502
      %p764 = pneg %p533
      %p765 = pneg %p530
      %s766 = sld [smem:[#allocation4 + %s37]]
      %p767 = scmp.lt.s32.totalorder %s766, 2
      %s768 = scalar_select %p767, %s766, 2
      %s769 = smul.addr %s768, 4
      %s770 = smul.addr %s769, 8
      %s771 = scalar_lea.vmem %s20, %s770
      %p772 = scmp.lt.s32.totalorder %s37, 2
      %s773 = scalar_select %p772, %s37, 2
      %s774 = scalar_lea.vmem %s6, %s773
      %p775 = scmp.lt.s32.totalorder %s37, 2
      %s776 = scalar_select %p775, %s37, 2
      %s777 = scalar_lea.vmem %s7, %s776
      %p778 = scmp.lt.s32.totalorder %s37, 2
      %s779 = scalar_select %p778, %s37, 2
      %s780 = smul.addr %s779, 4
      %s781 = smul.addr %s780, 4
      %s782 = scalar_lea.vmem %s8, %s781
      %p783 = scmp.lt.s32.totalorder %s37, 2
      %s784 = scalar_select %p783, %s37, 2
      %s785 = scalar_lea.vmem %s9, %s784
      %p786 = scmp.lt.s32.totalorder %s37, 2
      %s787 = scalar_select %p786, %s37, 2
      %s788 = smul.addr %s787, 4
      %s789 = smul.addr %s788, 4
      %s790 = scalar_lea.vmem %s10, %s789
      %p791 = scmp.lt.s32.totalorder %s37, 2
      %s792 = scalar_select %p791, %s37, 2
      %s793 = scalar_lea.vmem %s11, %s792
      %p794 = scmp.lt.s32.totalorder %s37, 2
      %s795 = scalar_select %p794, %s37, 2
      %s796 = scalar_lea.vmem %s12, %s795
      %p797 = scmp.lt.s32.totalorder %s37, 2
      %s798 = scalar_select %p797, %s37, 2
      %s799 = scalar_lea.vmem %s13, %s798
      %p800 = scmp.lt.s32.totalorder %s37, 2
      %s801 = scalar_select %p800, %s37, 2
      %s802 = smul.addr %s801, 4
      %s803 = smul.addr %s802, 4
      %s804 = scalar_lea.vmem %s14, %s803
      %p805 = scmp.lt.s32.totalorder %s37, 2
      %s806 = scalar_select %p805, %s37, 2
      %s807 = scalar_lea.vmem %s15, %s806
      %p808 = scmp.lt.s32.totalorder %s37, 2
      %s809 = scalar_select %p808, %s37, 2
      %s810 = smul.addr %s809, 16
      %s811 = smul.addr %s810, 4
      %s812 = scalar_lea.vmem %s16, %s811
      %p813 = scmp.lt.s32.totalorder %s37, 2
      %s814 = scalar_select %p813, %s37, 2
      %s815 = scalar_lea.vmem %s17, %s814
      %s816 = sld [smem:[#allocation4 + %s37]]
      %p817 = scmp.lt.s32.totalorder %s816, 2
      %s818 = scalar_select %p817, %s816, 2
      %s819 = smul.addr %s818, 4
      %s820 = smul.addr %s819, 4
      %s821 = scalar_lea.vmem %s18, %s820
      %s822 = sld [smem:[#allocation4 + %s37]]
      %s823 = sld [smem:[#allocation4 + %s37]]
      %p824 = scmp.lt.s32.totalorder %s823, 2
      %s825 = scalar_select %p824, %s823, 2
      %s826 = scalar_lea.vmem %s19, %s825
      %s827 = sld [smem:[#allocation4 + %s37]]
      %s828 = sld [smem:[#allocation4 + %s37]]
      %p829 = scmp.lt.s32.totalorder %s828, 2
      %s830 = scalar_select %p829, %s828, 2
      %s831 = smul.addr %s830, 4
      %s832 = smul.addr %s831, 8
      %s833 = scalar_lea.vmem %s20, %s832
      %s834 = sld [smem:[#allocation4 + %s37]]
      %p836 = scmp.eq.s32.totalorder %s37, 0
      // Predicated region
      $region97: #{feature_backbone_forward.1} parent=95 // pred_check
        %p837 = pneg %p836
      $region98: #{feature_backbone_forward.1} parent=95 // pred_check_branch
        %839 = sbr.rel (%p837) target = $region100
      $region99: #{feature_backbone_forward.1} parent=95 // pred_region
        %v840 = vld [vmem:[%s1] sm:$0xff]
        %v841 = vld [vmem:[%s1 + $0x8] sm:$0xff]
        %v842 = vld [vmem:[%s1 + $0x10] sm:$0xff]
        %v843 = vld [vmem:[%s1 + $0x18] sm:$0xff]
        %v844 = vld [vmem:[%s1 + $0x20] sm:$0xff]
        %v845 = vld [vmem:[%s1 + $0x28] sm:$0xff]
        %v846 = vld [vmem:[%s1 + $0x30] sm:$0xff]
        %v847 = vld [vmem:[%s1 + $0x38] sm:$0xff]
        %v848 = vpack.c.bf16 %v842, %v840
        %v849 = vpack.c.bf16 %v843, %v841
        %v850 = vpack.c.bf16 %v846, %v844
        %v851 = vpack.c.bf16 %v847, %v845
        %v852 = vld [vmem:[%s2] sm:$0xf]
        %v853 = vld [vmem:[%s2 + $0x4] sm:$0xf]
        %v854 = vld [vmem:[%s2 + $0x8] sm:$0xf]
        %v855 = vld [vmem:[%s2 + $0xc] sm:$0xf]
        %v856 = vld [vmem:[%s2 + $0x10] sm:$0xf]
        %v857 = vld [vmem:[%s2 + $0x14] sm:$0xf]
        %v858 = vld [vmem:[%s2 + $0x18] sm:$0xf]
        %v859 = vld [vmem:[%s2 + $0x1c] sm:$0xf]
        %v860 = vld [vmem:[%s2 + $0x20] sm:$0xf]
        %v861 = vld [vmem:[%s2 + $0x24] sm:$0xf]
        %v862 = vld [vmem:[%s2 + $0x28] sm:$0xf]
        %v863 = vld [vmem:[%s2 + $0x2c] sm:$0xf]
        %v864 = vld [vmem:[%s2 + $0x30] sm:$0xf]
        %v865 = vld [vmem:[%s2 + $0x34] sm:$0xf]
        %v866 = vld [vmem:[%s2 + $0x38] sm:$0xf]
        %v867 = vld [vmem:[%s2 + $0x3c] sm:$0xf]
        %v868 = vld [vmem:[%s2 + $0x40] sm:$0xf]
        %v869 = vld [vmem:[%s2 + $0x44] sm:$0xf]
        %v870 = vld [vmem:[%s2 + $0x48] sm:$0xf]
        %v871 = vld [vmem:[%s2 + $0x4c] sm:$0xf]
        %v872 = vld [vmem:[%s2 + $0x50] sm:$0xf]
        %v873 = vld [vmem:[%s2 + $0x54] sm:$0xf]
        %v874 = vld [vmem:[%s2 + $0x58] sm:$0xf]
        %v875 = vld [vmem:[%s2 + $0x5c] sm:$0xf]
        %v876 = vld [vmem:[%s3] sm:$0x1]
        %v878 = vlaneseq
        %v879 = vshrl.u32 %v878, 7
        %v880 = vsub.s32 0, %v879
        %v881 = vrot.slane %v876, %v880
        %v907 = vunpack.c.l.b16 %v852
        %v908 = vunpack.c.l.b16 %v853
        %v909 = vunpack.c.l.b16 %v854
        %v910 = vunpack.c.l.b16 %v855
        %v911 = vunpack.c.l.b16 %v856
        %v912 = vunpack.c.l.b16 %v857
        %v913 = vunpack.c.l.b16 %v858
        %v914 = vunpack.c.l.b16 %v859
        %v915 = vunpack.c.l.b16 %v860
        %v916 = vunpack.c.l.b16 %v861
        %v917 = vunpack.c.l.b16 %v862
        %v918 = vunpack.c.l.b16 %v863
        %v919 = vunpack.c.l.b16 %v864
        %v920 = vunpack.c.l.b16 %v865
        %v921 = vunpack.c.l.b16 %v866
        %v922 = vunpack.c.l.b16 %v867
        %v923 = vunpack.c.l.b16 %v868
        %v924 = vunpack.c.l.b16 %v869
        %v925 = vunpack.c.l.b16 %v870
        %v926 = vunpack.c.l.b16 %v871
        %v927 = vunpack.c.l.b16 %v872
        %v928 = vunpack.c.l.b16 %v873
        %v929 = vunpack.c.l.b16 %v874
        %v930 = vunpack.c.l.b16 %v875
        %v931 = vpack.c.b16 %v908, %v907
        %v932 = vpack.c.b16 %v910, %v909
        %v933 = vpack.c.b16 %v912, %v911
        %v934 = vpack.c.b16 %v914, %v913
        %v935 = vpack.c.b16 %v916, %v915
        %v936 = vpack.c.b16 %v918, %v917
        %v937 = vpack.c.b16 %v920, %v919
        %v938 = vpack.c.b16 %v922, %v921
        %v939 = vpack.c.b16 %v924, %v923
        %v940 = vpack.c.b16 %v926, %v925
        %v941 = vpack.c.b16 %v928, %v927
        %v942 = vpack.c.b16 %v930, %v929
        %vm955 = vcmask 523264
        %v957 = vsel %vm955, %v849, 0
        %v960 = vsel %vm955, %v851, 0
        %962 = vmatprep.subr.bf16.mxu0 0
        %963 = vmatpush1.bf16.msra.mxu0 %v931
        %964 = vmatprep.subr.bf16.mxu0 0
        %965 = vmatpush1.bf16.msra.mxu0 %v932
        %966 = vmatprep.subr.bf16.mxu0 0
        %967 = vmatpush1.bf16.msra.mxu0 %v933
        %968 = vmatprep.subr.bf16.mxu0 0
        %969 = vmatpush1.bf16.msra.mxu0 %v934
        %970 = vmatprep.subr.bf16.mxu0 0
        %971 = vmatpush1.bf16.msra.mxu0 %v935
        %972 = vmatprep.subr.bf16.mxu0 0
        %973 = vmatpush1.bf16.msra.mxu0 %v936
        %974 = vmatprep.subr.bf16.mxu0 0
        %975 = vmatpush1.bf16.msra.mxu0 %v937
        %976 = vmatprep.subr.bf16.mxu0 0
        %977 = vmatpush1.bf16.msra.mxu0 %v938
        %978 = vmatprep.subr.bf16.mxu0 0
        %979 = vmatpush1.bf16.msra.mxu0 %v939
        %980 = vmatprep.subr.bf16.mxu0 0
        %981 = vmatpush1.bf16.msra.mxu0 %v940
        %982 = vmatprep.subr.bf16.mxu0 0
        %983 = vmatpush1.bf16.msra.mxu0 %v941
        %984 = vmatprep.subr.bf16.mxu0 0
        %985 = vmatpush1.bf16.msra.mxu0 %v942
        %986 = vmatprep.subr.bf16.mxu0 0
        %987 = vmatpush1.bf16.msra.mxu0 0
        %988 = vmatprep.subr.bf16.mxu0 0
        %989 = vmatpush1.bf16.msra.mxu0 0
        %990 = vmatprep.subr.bf16.mxu0 0
        %991 = vmatpush1.bf16.msra.mxu0 0
        %992 = vmatprep.subr.bf16.mxu0 0
        %993 = vmatpush1.bf16.msra.mxu0 0
        %994 = vmatprep.mubr.bf16.mxu0 %v957
        %995 = vmatmul.mubr.bf16.gmra.mrb[0].mxu0 %v848
        %v996 = vpop.f32.mrb[0].mxu0
        %v997 = vadd.f32 %v881, %v996
        %v998 = vpop.f32.mrb[0].mxu0
        %v999 = vpop.f32.mrb[0].mxu0
        %v1000 = vadd.f32 %v881, %v999
        %v1001 = vpop.f32.mrb[0].mxu0
        %1002 = vmatprep.mubr.bf16.mxu0 %v960
        %1003 = vmatmul.mubr.bf16.gmra.mrb[0].mxu0 %v850
        %v1004 = vpop.f32.mrb[0].mxu0
        %v1005 = vadd.f32 %v881, %v1004
        %v1006 = vpop.f32.mrb[0].mxu0
        %v1007 = vpop.f32.mrb[0].mxu0
        %v1008 = vadd.f32 %v881, %v1007
        %v1009 = vpop.f32.mrb[0].mxu0
        %1010 = vdwg.mxu0
        %v1011 = vld [vmem:[%s4] sm:$0x1]
        %v1012 = vld [vmem:[%s5] sm:$0xff]
        %v1013 = vld [vmem:[%s5 + $0x8] sm:$0xff]
        %vm1014 = vcmask 253952
        %1015 = vst.msk [vmem:[#allocation2] sm:$0x1] %vm1014, %v1011
        %v1016 = vadd.f32 %v997, %v1012
        %v1017 = vadd.f32 %v1000, %v1013
        %vm1018 = vcmask 261120
        %1019 = vst.msk [vmem:[#allocation2 + $0x1] sm:$0xff] %vm1018, %v1016
        %1020 = vst.msk [vmem:[#allocation2 + $0x9] sm:$0xff] %vm1018, %v1017
        %1021 = vst.msk [vmem:[#allocation2 + $0x11] sm:$0x1] %vm1014, %v1011
        %v1022 = vadd.f32 %v1005, %v1012
        %v1023 = vadd.f32 %v1008, %v1013
        %1024 = vst.msk [vmem:[#allocation2 + $0x12] sm:$0xff] %vm1018, %v1022
        %1025 = vst.msk [vmem:[#allocation2 + $0x1a] sm:$0xff] %vm1018, %v1023
      $region100: #{feature_backbone_forward.1} parent=95 // pred_fallthru
        _
      %v1026 = vld [vmem:[#allocation2] sm:$0xff]
      %v1027 = vld [vmem:[#allocation2 + $0x8] sm:$0xff]
      %v1028 = vld [vmem:[#allocation2 + $0x10] sm:$0xff]
      %v1029 = vld [vmem:[#allocation2 + $0x18] sm:$0xff]
      %v1030 = vld [vmem:[#allocation2 + $0x20] sm:$0x3]
      %vm1031 = vcmask 261120
      %v1032 = vsel %vm1031, %v1026, 0.0
      %1033 = vadd.xlane.f32.xlu0 %v1032
      %v1034 = vpop.xlane.xlu0 %1033
      %v1035 = vsel %vm1031, %v1027, 0.0
      %1036 = vadd.xlane.f32.xlu0 %v1035
      %v1037 = vpop.xlane.xlu0 %1036
      %v1038 = vsel %vm1031, %v1028, 0.0
      %1039 = vadd.xlane.f32.xlu0 %v1038
      %v1040 = vpop.xlane.xlu0 %1039
      %v1041 = vsel %vm1031, %v1029, 0.0
      %1042 = vadd.xlane.f32.xlu0 %v1041
      %v1043 = vpop.xlane.xlu0 %1042
      %vm1044 = vcmask 254976
      %v1045 = vsel %vm1044, %v1030, 0.0
      %1046 = vadd.xlane.f32.xlu0 %v1045
      %v1047 = vpop.xlane.xlu0 %1046
      %v1048 = vrcp.pop 32.0
      %v1049 = vmul.f32 %v1034, %v1048
      %v1050 = vmul.f32 %v1037, %v1048
      %v1051 = vmul.f32 %v1040, %v1048
      %v1052 = vmul.f32 %v1043, %v1048
      %v1053 = vmul.f32 %v1047, %v1048
      %v1054 = vsub.f32 %v1026, %v1049
      %v1055 = vsub.f32 %v1027, %v1050
      %v1056 = vsub.f32 %v1028, %v1051
      %v1057 = vsub.f32 %v1029, %v1052
      %v1058 = vsub.f32 %v1030, %v1053
      %v1059 = vmul.f32 %v1054, %v1054
      %v1060 = vmul.f32 %v1055, %v1055
      %v1061 = vmul.f32 %v1056, %v1056
      %v1062 = vmul.f32 %v1057, %v1057
      %v1063 = vmul.f32 %v1058, %v1058
      %v1064 = vsel %vm1031, %v1059, 0.0
      %1065 = vadd.xlane.f32.xlu0 %v1064
      %v1066 = vpop.xlane.xlu0 %1065
      %v1067 = vsel %vm1031, %v1060, 0.0
      %1068 = vadd.xlane.f32.xlu0 %v1067
      %v1069 = vpop.xlane.xlu0 %1068
      %v1070 = vsel %vm1031, %v1061, 0.0
      %1071 = vadd.xlane.f32.xlu0 %v1070
      %v1072 = vpop.xlane.xlu0 %1071
      %v1073 = vsel %vm1031, %v1062, 0.0
      %1074 = vadd.xlane.f32.xlu0 %v1073
      %v1075 = vpop.xlane.xlu0 %1074
      %v1076 = vsel %vm1044, %v1063, 0.0
      %1077 = vadd.xlane.f32.xlu0 %v1076
      %v1078 = vpop.xlane.xlu0 %1077
      %v1079 = vmul.f32 %v1066, %v1048
      %v1080 = vmul.f32 %v1069, %v1048
      %v1081 = vmul.f32 %v1072, %v1048
      %v1082 = vmul.f32 %v1075, %v1048
      %v1083 = vmul.f32 %v1078, %v1048
      %v1084 = vadd.f32 %v1079, 1e-06
      %v1085 = vadd.f32 %v1080, 1e-06
      %v1086 = vadd.f32 %v1081, 1e-06
      %v1087 = vadd.f32 %v1082, 1e-06
      %v1088 = vadd.f32 %v1083, 1e-06
      %v1089 = vrsqrt.pop %v1084
      %v1090 = vrsqrt.pop %v1085
      %v1091 = vrsqrt.pop %v1086
      %v1092 = vrsqrt.pop %v1087
      %v1093 = vrsqrt.pop %v1088
      %v1094 = vmul.f32 %v1054, %v1089
      %v1095 = vmul.f32 %v1055, %v1090
      %v1096 = vmul.f32 %v1056, %v1091
      %v1097 = vmul.f32 %v1057, %v1092
      %v1098 = vmul.f32 %v1058, %v1093
      %v1099 = vld [vmem:[%s774] sm:$0x1]
      %v1101 = vlaneseq
      %v1102 = vshrl.u32 %v1101, 7
      %v1103 = vsub.s32 0, %v1102
      %v1104 = vrot.slane %v1099, %v1103
      %v1106 = vmul.f32 %v1094, %v1104
      %v1107 = vmul.f32 %v1095, %v1104
      %v1108 = vmul.f32 %v1096, %v1104
      %v1109 = vmul.f32 %v1097, %v1104
      %v1110 = vmul.f32 %v1098, %v1104
      %v1111 = vld [vmem:[%s777] sm:$0x1]
      %v1113 = vlaneseq
      %v1114 = vshrl.u32 %v1113, 7
      %v1115 = vsub.s32 0, %v1114
      %v1116 = vrot.slane %v1111, %v1115
      %v1118 = vadd.f32 %v1106, %v1116
      %v1119 = vadd.f32 %v1107, %v1116
      %v1120 = vadd.f32 %v1108, %v1116
      %v1121 = vadd.f32 %v1109, %v1116
      %v1122 = vadd.f32 %v1110, %v1116
      %v1123 = vpack.c.bf16 %v1119, %v1118
      %v1124 = vpack.c.bf16 %v1121, %v1120
      %v1125 = vpack.c.bf16 %v1122, %v1122
      %v1126 = vld [vmem:[%s782] sm:$0xf]
      %v1127 = vld [vmem:[%s782 + $0x4] sm:$0xf]
      %v1128 = vld [vmem:[%s782 + $0x8] sm:$0xf]
      %v1129 = vld [vmem:[%s782 + $0xc] sm:$0xf]
      %v1130 = vld [vmem:[%s785] sm:$0x1]
      %v1132 = vlaneseq
      %v1133 = vshrl.u32 %v1132, 7
      %v1134 = vsub.s32 0, %v1133
      %v1135 = vrot.slane %v1130, %v1134
      %v1141 = vunpack.c.l.b16 %v1126
      %v1142 = vunpack.c.l.b16 %v1127
      %v1143 = vunpack.c.l.b16 %v1128
      %v1144 = vunpack.c.l.b16 %v1129
      %v1145 = vpack.c.b16 %v1142, %v1141
      %v1146 = vpack.c.b16 %v1144, %v1143
      %v1150 = vsel %vm1031, %v1123, 0
      %v1153 = vsel %vm1031, %v1124, 0
      %v1156 = vsel %vm1031, %v1125, 0
      %1158 = vmatprep.subr.bf16.mxu0 0
      %1159 = vmatpush1.bf16.msra.mxu0 %v1145
      %1160 = vmatprep.subr.bf16.mxu0 0
      %1161 = vmatpush1.bf16.msra.mxu0 %v1146
      %1162 = vmatprep.subr.bf16.mxu0 0
      %1163 = vmatpush1.bf16.msra.mxu0 0
      %1164 = vmatprep.subr.bf16.mxu0 0
      %1165 = vmatpush1.bf16.msra.mxu0 0
      %1166 = vmatprep.subr.bf16.mxu0 0
      %1167 = vmatpush1.bf16.msra.mxu0 0
      %1168 = vmatprep.subr.bf16.mxu0 0
      %1169 = vmatpush1.bf16.msra.mxu0 0
      %1170 = vmatprep.subr.bf16.mxu0 0
      %1171 = vmatpush1.bf16.msra.mxu0 0
      %1172 = vmatprep.subr.bf16.mxu0 0
      %1173 = vmatpush1.bf16.msra.mxu0 0
      %1174 = vmatprep.subr.bf16.mxu0 0
      %1175 = vmatpush1.bf16.msra.mxu0 0
      %1176 = vmatprep.subr.bf16.mxu0 0
      %1177 = vmatpush1.bf16.msra.mxu0 0
      %1178 = vmatprep.subr.bf16.mxu0 0
      %1179 = vmatpush1.bf16.msra.mxu0 0
      %1180 = vmatprep.subr.bf16.mxu0 0
      %1181 = vmatpush1.bf16.msra.mxu0 0
      %1182 = vmatprep.subr.bf16.mxu0 0
      %1183 = vmatpush1.bf16.msra.mxu0 0
      %1184 = vmatprep.subr.bf16.mxu0 0
      %1185 = vmatpush1.bf16.msra.mxu0 0
      %1186 = vmatprep.subr.bf16.mxu0 0
      %1187 = vmatpush1.bf16.msra.mxu0 0
      %1188 = vmatprep.subr.bf16.mxu0 0
      %1189 = vmatpush1.bf16.msra.mxu0 0
      %1190 = vmatprep.mubr.bf16.mxu0 0
      %1191 = vmatmul.mubr.bf16.gmra.mrb[0].mxu0 %v1150
      %v1192 = vpop.f32.mrb[0].mxu0
      %v1193 = vadd.f32 %v1135, %v1192
      %v1194 = vpop.f32.mrb[0].mxu0
      %v1195 = vpop.f32.mrb[0].mxu0
      %v1196 = vadd.f32 %v1135, %v1195
      %v1197 = vpop.f32.mrb[0].mxu0
      %1198 = vmatprep.mubr.bf16.mxu0 0
      %1199 = vmatmul.mubr.bf16.gmra.mrb[0].mxu0 %v1153
      %v1200 = vpop.f32.mrb[0].mxu0
      %v1201 = vadd.f32 %v1135, %v1200
      %v1202 = vpop.f32.mrb[0].mxu0
      %v1203 = vpop.f32.mrb[0].mxu0
      %v1204 = vadd.f32 %v1135, %v1203
      %v1205 = vpop.f32.mrb[0].mxu0
      %1206 = vmatprep.mubr.bf16.mxu0 0
      %1207 = vmatmul.mubr.bf16.gmra.mrb[0].mxu0 %v1156
      %v1208 = vpop.f32.mrb[0].mxu0
      %v1209 = vadd.f32 %v1135, %v1208
      %v1210 = vpop.f32.mrb[0].mxu0
      %v1211 = vpop.f32.mrb[0].mxu0
      %v1212 = vpop.f32.mrb[0].mxu0
      %1213 = vdwg.mxu0
      %1217 = vrot.lane.b32.xlu0 %v1193, 120
      %v1218 = vpop.permute.xlu0 %1217
      %1219 = vrot.lane.b32.xlu0 %v1196, 120
      %v1220 = vpop.permute.xlu0 %1219
      %1221 = vrot.lane.b32.xlu0 %v1201, 120
      %v1222 = vpop.permute.xlu0 %1221
      %1226 = vrot.lane.b32.xlu0 %v1193, 112
      %v1227 = vpop.permute.xlu0 %1226
      %1228 = vrot.lane.b32.xlu0 %v1196, 112
      %v1229 = vpop.permute.xlu0 %1228
      %1230 = vrot.lane.b32.xlu0 %v1201, 112
      %v1231 = vpop.permute.xlu0 %1230
      %1235 = vrot.lane.b32.xlu0 %v1193, 104
      %v1236 = vpop.permute.xlu0 %1235
      %1237 = vrot.lane.b32.xlu0 %v1196, 104
      %v1238 = vpop.permute.xlu0 %1237
      %1239 = vrot.lane.b32.xlu0 %v1201, 104
      %v1240 = vpop.permute.xlu0 %1239
      %vm1246 = vcmask 1046528
      %v1247 = vrot.slane %v1201, 1
      %v1248 = vrot.slane %v1204, 1
      %v1249 = vsel %vm1246, %v1247, %v1248
      %v1250 = vrot.slane %v1209, 1
      %v1251 = vsel %vm1246, %v1248, %v1250
      %1255 = vrot.lane.b32.xlu0 %v1249, 120
      %v1256 = vpop.permute.xlu0 %1255
      %1257 = vrot.lane.b32.xlu0 %v1251, 120
      %v1258 = vpop.permute.xlu0 %1257
      %1259 = vrot.lane.b32.xlu0 %v1250, 120
      %v1260 = vpop.permute.xlu0 %1259
      %1264 = vrot.lane.b32.xlu0 %v1249, 112
      %v1265 = vpop.permute.xlu0 %1264
      %1266 = vrot.lane.b32.xlu0 %v1251, 112
      %v1267 = vpop.permute.xlu0 %1266
      %1268 = vrot.lane.b32.xlu0 %v1250, 112
      %v1269 = vpop.permute.xlu0 %1268
      %1273 = vrot.lane.b32.xlu0 %v1249, 104
      %v1274 = vpop.permute.xlu0 %1273
      %1275 = vrot.lane.b32.xlu0 %v1251, 104
      %v1276 = vpop.permute.xlu0 %1275
      %1277 = vrot.lane.b32.xlu0 %v1250, 104
      %v1278 = vpop.permute.xlu0 %1277
      %v1282 = vmul.f32 %v1193, 0.35355338
      %v1283 = vmul.f32 %v1196, 0.35355338
      %v1284 = vmul.f32 %v1201, 0.35355338
      %v1285 = vmul.f32 %v1218, 0.35355338
      %v1286 = vmul.f32 %v1220, 0.35355338
      %v1287 = vmul.f32 %v1222, 0.35355338
      %v1288 = vmul.f32 %v1227, 0.35355338
      %v1289 = vmul.f32 %v1229, 0.35355338
      %v1290 = vmul.f32 %v1231, 0.35355338
      %v1291 = vmul.f32 %v1236, 0.35355338
      %v1292 = vmul.f32 %v1238, 0.35355338
      %v1293 = vmul.f32 %v1240, 0.35355338
      %v1294 = vmul.f32 %v1249, 0.35355338
      %v1295 = vmul.f32 %v1251, 0.35355338
      %v1296 = vmul.f32 %v1250, 0.35355338
      %v1297 = vmul.f32 %v1256, 0.35355338
      %v1298 = vmul.f32 %v1258, 0.35355338
      %v1299 = vmul.f32 %v1260, 0.35355338
      %v1300 = vmul.f32 %v1265, 0.35355338
      %v1301 = vmul.f32 %v1267, 0.35355338
      %v1302 = vmul.f32 %v1269, 0.35355338
      %v1303 = vmul.f32 %v1274, 0.35355338
      %v1304 = vmul.f32 %v1276, 0.35355338
      %v1305 = vmul.f32 %v1278, 0.35355338
      %v1306 = vpack.c.bf16 %v1283, %v1282
      %v1307 = vpack.c.bf16 %v1284, %v1284
      %v1308 = vpack.c.bf16 %v1286, %v1285
      %v1309 = vpack.c.bf16 %v1287, %v1287
      %v1310 = vpack.c.bf16 %v1289, %v1288
      %v1311 = vpack.c.bf16 %v1290, %v1290
      %v1312 = vpack.c.bf16 %v1292, %v1291
      %v1313 = vpack.c.bf16 %v1293, %v1293
      %v1314 = vpack.c.bf16 %v1295, %v1294
      %v1315 = vpack.c.bf16 %v1296, %v1296
      %v1316 = vpack.c.bf16 %v1298, %v1297
      %v1317 = vpack.c.bf16 %v1299, %v1299
      %v1318 = vpack.c.bf16 %v1301, %v1300
      %v1319 = vpack.c.bf16 %v1302, %v1302
      %v1320 = vpack.c.bf16 %v1304, %v1303
      %v1321 = vpack.c.bf16 %v1305, %v1305
      %v1322 = vpack.c.bf16 %v1196, %v1193
      %v1323 = vpack.c.bf16 %v1201, %v1201
      %v1324 = vpack.c.bf16 %v1220, %v1218
      %v1325 = vpack.c.bf16 %v1222, %v1222
      %v1326 = vpack.c.bf16 %v1229, %v1227
      %v1327 = vpack.c.bf16 %v1231, %v1231
      %v1328 = vpack.c.bf16 %v1238, %v1236
      %v1329 = vpack.c.bf16 %v1240, %v1240
      %v1330 = vpack.c.bf16 %v1251, %v1249
      %v1331 = vpack.c.bf16 %v1250, %v1250
      %v1332 = vpack.c.bf16 %v1258, %v1256
      %v1333 = vpack.c.bf16 %v1260, %v1260
      %v1334 = vpack.c.bf16 %v1267, %v1265
      %v1335 = vpack.c.bf16 %v1269, %v1269
      %v1336 = vpack.c.bf16 %v1276, %v1274
      %v1337 = vpack.c.bf16 %v1278, %v1278
      %1340 = vrot.lane.b32.xlu0 %v1322, 96
      %v1341 = vpop.permute.xlu0 %1340
      %1342 = vrot.lane.b32.xlu0 %v1323, 96
      %v1343 = vpop.permute.xlu0 %1342
      %vm1344 = vcmask 64512
      %v1346 = vsel %vm1344, %v1306, 0
      %v1349 = vsel %vm1344, %v1307, 0
      %v1352 = vsel %vm1344, %v1341, 0
      %v1355 = vsel %vm1344, %v1343, 0
      %1357 = vmatprep.subr.bf16.mxu0 0
      %1358 = vmatpush1.bf16.xpose.msra.mxu0 %v1352
      %1359 = vmatprep.subr.bf16.mxu0 0
      %1360 = vmatpush1.bf16.xpose.msra.mxu0 %v1355
      %1361 = vmatprep.subr.bf16.mxu0 0
      %1362 = vmatpush1.bf16.xpose.msra.mxu0 0
      %1363 = vmatprep.subr.bf16.mxu0 0
      %1364 = vmatpush1.bf16.xpose.msra.mxu0 0
      %1365 = vmatprep.subr.bf16.mxu0 0
      %1366 = vmatpush1.bf16.xpose.msra.mxu0 0
      %1367 = vmatprep.subr.bf16.mxu0 0
      %1368 = vmatpush1.bf16.xpose.msra.mxu0 0
      %1369 = vmatprep.subr.bf16.mxu0 0
      %1370 = vmatpush1.bf16.xpose.msra.mxu0 0
      %1371 = vmatprep.subr.bf16.mxu0 0
      %1372 = vmatpush1.bf16.xpose.msra.mxu0 0
      %1373 = vmatprep.subr.bf16.mxu0 0
      %1374 = vmatpush1.bf16.xpose.msra.mxu0 0
      %1375 = vmatprep.subr.bf16.mxu0 0
      %1376 = vmatpush1.bf16.xpose.msra.mxu0 0
      %1377 = vmatprep.subr.bf16.mxu0 0
      %1378 = vmatpush1.bf16.xpose.msra.mxu0 0
      %1379 = vmatprep.subr.bf16.mxu0 0
      %1380 = vmatpush1.bf16.xpose.msra.mxu0 0
      %1381 = vmatprep.subr.bf16.mxu0 0
      %1382 = vmatpush1.bf16.xpose.msra.mxu0 0
      %1383 = vmatprep.subr.bf16.mxu0 0
      %1384 = vmatpush1.bf16.xpose.msra.mxu0 0
      %1385 = vmatprep.subr.bf16.mxu0 0
      %1386 = vmatpush1.bf16.xpose.msra.mxu0 0
      %1387 = vmatprep.subr.bf16.mxu0 0
      %1388 = vmatpush1.bf16.xpose.msra.mxu0 0
      %1389 = vmatprep.mubr.bf16.mxu0 0
      %1390 = vmatmul.mubr.bf16.gmra.mrb[0].mxu0 %v1346
      %v1391 = vpop.f32.mrb[0].mxu0
      %v1392 = vadd.f32 0.0, %v1391
      %v1393 = vpop.f32.mrb[0].mxu0
      %v1394 = vpop.f32.mrb[0].mxu0
      %v1395 = vadd.f32 0.0, %v1394
      %v1396 = vpop.f32.mrb[0].mxu0
      %1397 = vmatprep.mubr.bf16.mxu0 0
      %1398 = vmatmul.mubr.bf16.gmra.mrb[0].mxu0 %v1349
      %v1399 = vpop.f32.mrb[0].mxu0
      %v1400 = vadd.f32 0.0, %v1399
      %v1401 = vpop.f32.mrb[0].mxu0
      %v1402 = vpop.f32.mrb[0].mxu0
      %v1403 = vpop.f32.mrb[0].mxu0
      %1404 = vdwg.mxu0
      %1407 = vrot.lane.b32.xlu0 %v1324, 96
      %v1408 = vpop.permute.xlu0 %1407
      %1409 = vrot.lane.b32.xlu0 %v1325, 96
      %v1410 = vpop.permute.xlu0 %1409
      %v1412 = vsel %vm1344, %v1308, 0
      %v1415 = vsel %vm1344, %v1309, 0
      %v1418 = vsel %vm1344, %v1408, 0
      %v1421 = vsel %vm1344, %v1410, 0
      %1423 = vmatprep.subr.bf16.mxu0 0
      %1424 = vmatpush1.bf16.xpose.msra.mxu0 %v1418
      %1425 = vmatprep.subr.bf16.mxu0 0
      %1426 = vmatpush1.bf16.xpose.msra.mxu0 %v1421
      %1427 = vmatprep.subr.bf16.mxu0 0
      %1428 = vmatpush1.bf16.xpose.msra.mxu0 0
      %1429 = vmatprep.subr.bf16.mxu0 0
      %1430 = vmatpush1.bf16.xpose.msra.mxu0 0
      %1431 = vmatprep.subr.bf16.mxu0 0
      %1432 = vmatpush1.bf16.xpose.msra.mxu0 0
      %1433 = vmatprep.subr.bf16.mxu0 0
      %1434 = vmatpush1.bf16.xpose.msra.mxu0 0
      %1435 = vmatprep.subr.bf16.mxu0 0
      %1436 = vmatpush1.bf16.xpose.msra.mxu0 0
      %1437 = vmatprep.subr.bf16.mxu0 0
      %1438 = vmatpush1.bf16.xpose.msra.mxu0 0
      %1439 = vmatprep.subr.bf16.mxu0 0
      %1440 = vmatpush1.bf16.xpose.msra.mxu0 0
      %1441 = vmatprep.subr.bf16.mxu0 0
      %1442 = vmatpush1.bf16.xpose.msra.mxu0 0
      %1443 = vmatprep.subr.bf16.mxu0 0
      %1444 = vmatpush1.bf16.xpose.msra.mxu0 0
      %1445 = vmatprep.subr.bf16.mxu0 0
      %1446 = vmatpush1.bf16.xpose.msra.mxu0 0
      %1447 = vmatprep.subr.bf16.mxu0 0
      %1448 = vmatpush1.bf16.xpose.msra.mxu0 0
      %1449 = vmatprep.subr.bf16.mxu0 0
      %1450 = vmatpush1.bf16.xpose.msra.mxu0 0
      %1451 = vmatprep.subr.bf16.mxu0 0
      %1452 = vmatpush1.bf16.xpose.msra.mxu0 0
      %1453 = vmatprep.subr.bf16.mxu0 0
      %1454 = vmatpush1.bf16.xpose.msra.mxu0 0
      %1455 = vmatprep.mubr.bf16.mxu0 0
      %1456 = vmatmul.mubr.bf16.gmra.mrb[0].mxu0 %v1412
      %v1457 = vpop.f32.mrb[0].mxu0
      %v1458 = vadd.f32 0.0, %v1457
      %v1459 = vpop.f32.mrb[0].mxu0
      %v1460 = vpop.f32.mrb[0].mxu0
      %v1461 = vadd.f32 0.0, %v1460
      %v1462 = vpop.f32.mrb[0].mxu0
      %1463 = vmatprep.mubr.bf16.mxu0 0
      %1464 = vmatmul.mubr.bf16.gmra.mrb[0].mxu0 %v1415
      %v1465 = vpop.f32.mrb[0].mxu0
      %v1466 = vadd.f32 0.0, %v1465
      %v1467 = vpop.f32.mrb[0].mxu0
      %v1468 = vpop.f32.mrb[0].mxu0
      %v1469 = vpop.f32.mrb[0].mxu0
      %1470 = vdwg.mxu0
      %1473 = vrot.lane.b32.xlu0 %v1326, 96
      %v1474 = vpop.permute.xlu0 %1473
      %1475 = vrot.lane.b32.xlu0 %v1327, 96
      %v1476 = vpop.permute.xlu0 %1475
      %v1478 = vsel %vm1344, %v1310, 0
      %v1481 = vsel %vm1344, %v1311, 0
      %v1484 = vsel %vm1344, %v1474, 0
      %v1487 = vsel %vm1344, %v1476, 0
      %1489 = vmatprep.subr.bf16.mxu0 0
      %1490 = vmatpush1.bf16.xpose.msra.mxu0 %v1484
      %1491 = vmatprep.subr.bf16.mxu0 0
      %1492 = vmatpush1.bf16.xpose.msra.mxu0 %v1487
      %1493 = vmatprep.subr.bf16.mxu0 0
      %1494 = vmatpush1.bf16.xpose.msra.mxu0 0
      %1495 = vmatprep.subr.bf16.mxu0 0
      %1496 = vmatpush1.bf16.xpose.msra.mxu0 0
      %1497 = vmatprep.subr.bf16.mxu0 0
      %1498 = vmatpush1.bf16.xpose.msra.mxu0 0
      %1499 = vmatprep.subr.bf16.mxu0 0
      %1500 = vmatpush1.bf16.xpose.msra.mxu0 0
      %1501 = vmatprep.subr.bf16.mxu0 0
      %1502 = vmatpush1.bf16.xpose.msra.mxu0 0
      %1503 = vmatprep.subr.bf16.mxu0 0
      %1504 = vmatpush1.bf16.xpose.msra.mxu0 0
      %1505 = vmatprep.subr.bf16.mxu0 0
      %1506 = vmatpush1.bf16.xpose.msra.mxu0 0
      %1507 = vmatprep.subr.bf16.mxu0 0
      %1508 = vmatpush1.bf16.xpose.msra.mxu0 0
      %1509 = vmatprep.subr.bf16.mxu0 0
      %1510 = vmatpush1.bf16.xpose.msra.mxu0 0
      %1511 = vmatprep.subr.bf16.mxu0 0
      %1512 = vmatpush1.bf16.xpose.msra.mxu0 0
      %1513 = vmatprep.subr.bf16.mxu0 0
      %1514 = vmatpush1.bf16.xpose.msra.mxu0 0
      %1515 = vmatprep.subr.bf16.mxu0 0
      %1516 = vmatpush1.bf16.xpose.msra.mxu0 0
      %1517 = vmatprep.subr.bf16.mxu0 0
      %1518 = vmatpush1.bf16.xpose.msra.mxu0 0
      %1519 = vmatprep.subr.bf16.mxu0 0
      %1520 = vmatpush1.bf16.xpose.msra.mxu0 0
      %1521 = vmatprep.mubr.bf16.mxu0 0
      %1522 = vmatmul.mubr.bf16.gmra.mrb[0].mxu0 %v1478
      %v1523 = vpop.f32.mrb[0].mxu0
      %v1524 = vadd.f32 0.0, %v1523
      %v1525 = vpop.f32.mrb[0].mxu0
      %v1526 = vpop.f32.mrb[0].mxu0
      %v1527 = vadd.f32 0.0, %v1526
      %v1528 = vpop.f32.mrb[0].mxu0
      %1529 = vmatprep.mubr.bf16.mxu0 0
      %1530 = vmatmul.mubr.bf16.gmra.mrb[0].mxu0 %v1481
      %v1531 = vpop.f32.mrb[0].mxu0
      %v1532 = vadd.f32 0.0, %v1531
      %v1533 = vpop.f32.mrb[0].mxu0
      %v1534 = vpop.f32.mrb[0].mxu0
      %v1535 = vpop.f32.mrb[0].mxu0
      %1536 = vdwg.mxu0
      %1539 = vrot.lane.b32.xlu0 %v1328, 96
      %v1540 = vpop.permute.xlu0 %1539
      %1541 = vrot.lane.b32.xlu0 %v1329, 96
      %v1542 = vpop.permute.xlu0 %1541
      %v1544 = vsel %vm1344, %v1312, 0
      %v1547 = vsel %vm1344, %v1313, 0
      %v1550 = vsel %vm1344, %v1540, 0
      %v1553 = vsel %vm1344, %v1542, 0
      %1555 = vmatprep.subr.bf16.mxu0 0
      %1556 = vmatpush1.bf16.xpose.msra.mxu0 %v1550
      %1557 = vmatprep.subr.bf16.mxu0 0
      %1558 = vmatpush1.bf16.xpose.msra.mxu0 %v1553
      %1559 = vmatprep.subr.bf16.mxu0 0
      %1560 = vmatpush1.bf16.xpose.msra.mxu0 0
      %1561 = vmatprep.subr.bf16.mxu0 0
      %1562 = vmatpush1.bf16.xpose.msra.mxu0 0
      %1563 = vmatprep.subr.bf16.mxu0 0
      %1564 = vmatpush1.bf16.xpose.msra.mxu0 0
      %1565 = vmatprep.subr.bf16.mxu0 0
      %1566 = vmatpush1.bf16.xpose.msra.mxu0 0
      %1567 = vmatprep.subr.bf16.mxu0 0
      %1568 = vmatpush1.bf16.xpose.msra.mxu0 0
      %1569 = vmatprep.subr.bf16.mxu0 0
      %1570 = vmatpush1.bf16.xpose.msra.mxu0 0
      %1571 = vmatprep.subr.bf16.mxu0 0
      %1572 = vmatpush1.bf16.xpose.msra.mxu0 0
      %1573 = vmatprep.subr.bf16.mxu0 0
      %1574 = vmatpush1.bf16.xpose.msra.mxu0 0
      %1575 = vmatprep.subr.bf16.mxu0 0
      %1576 = vmatpush1.bf16.xpose.msra.mxu0 0
      %1577 = vmatprep.subr.bf16.mxu0 0
      %1578 = vmatpush1.bf16.xpose.msra.mxu0 0
      %1579 = vmatprep.subr.bf16.mxu0 0
      %1580 = vmatpush1.bf16.xpose.msra.mxu0 0
      %1581 = vmatprep.subr.bf16.mxu0 0
      %1582 = vmatpush1.bf16.xpose.msra.mxu0 0
      %1583 = vmatprep.subr.bf16.mxu0 0
      %1584 = vmatpush1.bf16.xpose.msra.mxu0 0
      %1585 = vmatprep.subr.bf16.mxu0 0
      %1586 = vmatpush1.bf16.xpose.msra.mxu0 0
      %1587 = vmatprep.mubr.bf16.mxu0 0
      %1588 = vmatmul.mubr.bf16.gmra.mrb[0].mxu0 %v1544
      %v1589 = vpop.f32.mrb[0].mxu0
      %v1590 = vadd.f32 0.0, %v1589
      %v1591 = vpop.f32.mrb[0].mxu0
      %v1592 = vpop.f32.mrb[0].mxu0
      %v1593 = vadd.f32 0.0, %v1592
      %v1594 = vpop.f32.mrb[0].mxu0
      %1595 = vmatprep.mubr.bf16.mxu0 0
      %1596 = vmatmul.mubr.bf16.gmra.mrb[0].mxu0 %v1547
      %v1597 = vpop.f32.mrb[0].mxu0
      %v1598 = vadd.f32 0.0, %v1597
      %v1599 = vpop.f32.mrb[0].mxu0
      %v1600 = vpop.f32.mrb[0].mxu0
      %v1601 = vpop.f32.mrb[0].mxu0
      %1602 = vdwg.mxu0
      %1605 = vrot.lane.b32.xlu0 %v1330, 96
      %v1606 = vpop.permute.xlu0 %1605
      %1607 = vrot.lane.b32.xlu0 %v1331, 96
      %v1608 = vpop.permute.xlu0 %1607
      %v1610 = vsel %vm1344, %v1314, 0
      %v1613 = vsel %vm1344, %v1315, 0
      %v1616 = vsel %vm1344, %v1606, 0
      %v1619 = vsel %vm1344, %v1608, 0
      %1621 = vmatprep.subr.bf16.mxu0 0
      %1622 = vmatpush1.bf16.xpose.msra.mxu0 %v1616
      %1623 = vmatprep.subr.bf16.mxu0 0
      %1624 = vmatpush1.bf16.xpose.msra.mxu0 %v1619
      %1625 = vmatprep.subr.bf16.mxu0 0
      %1626 = vmatpush1.bf16.xpose.msra.mxu0 0
      %1627 = vmatprep.subr.bf16.mxu0 0
      %1628 = vmatpush1.bf16.xpose.msra.mxu0 0
      %1629 = vmatprep.subr.bf16.mxu0 0
      %1630 = vmatpush1.bf16.xpose.msra.mxu0 0
      %1631 = vmatprep.subr.bf16.mxu0 0
      %1632 = vmatpush1.bf16.xpose.msra.mxu0 0
      %1633 = vmatprep.subr.bf16.mxu0 0
      %1634 = vmatpush1.bf16.xpose.msra.mxu0 0
      %1635 = vmatprep.subr.bf16.mxu0 0
      %1636 = vmatpush1.bf16.xpose.msra.mxu0 0
      %1637 = vmatprep.subr.bf16.mxu0 0
      %1638 = vmatpush1.bf16.xpose.msra.mxu0 0
      %1639 = vmatprep.subr.bf16.mxu0 0
      %1640 = vmatpush1.bf16.xpose.msra.mxu0 0
      %1641 = vmatprep.subr.bf16.mxu0 0
      %1642 = vmatpush1.bf16.xpose.msra.mxu0 0
      %1643 = vmatprep.subr.bf16.mxu0 0
      %1644 = vmatpush1.bf16.xpose.msra.mxu0 0
      %1645 = vmatprep.subr.bf16.mxu0 0
      %1646 = vmatpush1.bf16.xpose.msra.mxu0 0
      %1647 = vmatprep.subr.bf16.mxu0 0
      %1648 = vmatpush1.bf16.xpose.msra.mxu0 0
      %1649 = vmatprep.subr.bf16.mxu0 0
      %1650 = vmatpush1.bf16.xpose.msra.mxu0 0
      %1651 = vmatprep.subr.bf16.mxu0 0
      %1652 = vmatpush1.bf16.xpose.msra.mxu0 0
      %1653 = vmatprep.mubr.bf16.mxu0 0
      %1654 = vmatmul.mubr.bf16.gmra.mrb[0].mxu0 %v1610
      %v1655 = vpop.f32.mrb[0].mxu0
      %v1656 = vadd.f32 0.0, %v1655
      %v1657 = vpop.f32.mrb[0].mxu0
      %v1658 = vpop.f32.mrb[0].mxu0
      %v1659 = vadd.f32 0.0, %v1658
      %v1660 = vpop.f32.mrb[0].mxu0
      %1661 = vmatprep.mubr.bf16.mxu0 0
      %1662 = vmatmul.mubr.bf16.gmra.mrb[0].mxu0 %v1613
      %v1663 = vpop.f32.mrb[0].mxu0
      %v1664 = vadd.f32 0.0, %v1663
      %v1665 = vpop.f32.mrb[0].mxu0
      %v1666 = vpop.f32.mrb[0].mxu0
      %v1667 = vpop.f32.mrb[0].mxu0
      %1668 = vdwg.mxu0
      %1671 = vrot.lane.b32.xlu0 %v1332, 96
      %v1672 = vpop.permute.xlu0 %1671
      %1673 = vrot.lane.b32.xlu0 %v1333, 96
      %v1674 = vpop.permute.xlu0 %1673
      %v1676 = vsel %vm1344, %v1316, 0
      %v1679 = vsel %vm1344, %v1317, 0
      %v1682 = vsel %vm1344, %v1672, 0
      %v1685 = vsel %vm1344, %v1674, 0
      %1687 = vmatprep.subr.bf16.mxu0 0
      %1688 = vmatpush1.bf16.xpose.msra.mxu0 %v1682
      %1689 = vmatprep.subr.bf16.mxu0 0
      %1690 = vmatpush1.bf16.xpose.msra.mxu0 %v1685
      %1691 = vmatprep.subr.bf16.mxu0 0
      %1692 = vmatpush1.bf16.xpose.msra.mxu0 0
      %1693 = vmatprep.subr.bf16.mxu0 0
      %1694 = vmatpush1.bf16.xpose.msra.mxu0 0
      %1695 = vmatprep.subr.bf16.mxu0 0
      %1696 = vmatpush1.bf16.xpose.msra.mxu0 0
      %1697 = vmatprep.subr.bf16.mxu0 0
      %1698 = vmatpush1.bf16.xpose.msra.mxu0 0
      %1699 = vmatprep.subr.bf16.mxu0 0
      %1700 = vmatpush1.bf16.xpose.msra.mxu0 0
      %1701 = vmatprep.subr.bf16.mxu0 0
      %1702 = vmatpush1.bf16.xpose.msra.mxu0 0
      %1703 = vmatprep.subr.bf16.mxu0 0
      %1704 = vmatpush1.bf16.xpose.msra.mxu0 0
      %1705 = vmatprep.subr.bf16.mxu0 0
      %1706 = vmatpush1.bf16.xpose.msra.mxu0 0
      %1707 = vmatprep.subr.bf16.mxu0 0
      %1708 = vmatpush1.bf16.xpose.msra.mxu0 0
      %1709 = vmatprep.subr.bf16.mxu0 0
      %1710 = vmatpush1.bf16.xpose.msra.mxu0 0
      %1711 = vmatprep.subr.bf16.mxu0 0
      %1712 = vmatpush1.bf16.xpose.msra.mxu0 0
      %1713 = vmatprep.subr.bf16.mxu0 0
      %1714 = vmatpush1.bf16.xpose.msra.mxu0 0
      %1715 = vmatprep.subr.bf16.mxu0 0
      %1716 = vmatpush1.bf16.xpose.msra.mxu0 0
      %1717 = vmatprep.subr.bf16.mxu0 0
      %1718 = vmatpush1.bf16.xpose.msra.mxu0 0
      %1719 = vmatprep.mubr.bf16.mxu0 0
      %1720 = vmatmul.mubr.bf16.gmra.mrb[0].mxu0 %v1676
      %v1721 = vpop.f32.mrb[0].mxu0
      %v1722 = vadd.f32 0.0, %v1721
      %v1723 = vpop.f32.mrb[0].mxu0
      %v1724 = vpop.f32.mrb[0].mxu0
      %v1725 = vadd.f32 0.0, %v1724
      %v1726 = vpop.f32.mrb[0].mxu0
      %1727 = vmatprep.mubr.bf16.mxu0 0
      %1728 = vmatmul.mubr.bf16.gmra.mrb[0].mxu0 %v1679
      %v1729 = vpop.f32.mrb[0].mxu0
      %v1730 = vadd.f32 0.0, %v1729
      %v1731 = vpop.f32.mrb[0].mxu0
      %v1732 = vpop.f32.mrb[0].mxu0
      %v1733 = vpop.f32.mrb[0].mxu0
      %1734 = vdwg.mxu0
      %1737 = vrot.lane.b32.xlu0 %v1334, 96
      %v1738 = vpop.permute.xlu0 %1737
      %1739 = vrot.lane.b32.xlu0 %v1335, 96
      %v1740 = vpop.permute.xlu0 %1739
      %v1742 = vsel %vm1344, %v1318, 0
      %v1745 = vsel %vm1344, %v1319, 0
      %v1748 = vsel %vm1344, %v1738, 0
      %v1751 = vsel %vm1344, %v1740, 0
      %1753 = vmatprep.subr.bf16.mxu0 0
      %1754 = vmatpush1.bf16.xpose.msra.mxu0 %v1748
      %1755 = vmatprep.subr.bf16.mxu0 0
      %1756 = vmatpush1.bf16.xpose.msra.mxu0 %v1751
      %1757 = vmatprep.subr.bf16.mxu0 0
      %1758 = vmatpush1.bf16.xpose.msra.mxu0 0
      %1759 = vmatprep.subr.bf16.mxu0 0
      %1760 = vmatpush1.bf16.xpose.msra.mxu0 0
      %1761 = vmatprep.subr.bf16.mxu0 0
      %1762 = vmatpush1.bf16.xpose.msra.mxu0 0
      %1763 = vmatprep.subr.bf16.mxu0 0
      %1764 = vmatpush1.bf16.xpose.msra.mxu0 0
      %1765 = vmatprep.subr.bf16.mxu0 0
      %1766 = vmatpush1.bf16.xpose.msra.mxu0 0
      %1767 = vmatprep.subr.bf16.mxu0 0
      %1768 = vmatpush1.bf16.xpose.msra.mxu0 0
      %1769 = vmatprep.subr.bf16.mxu0 0
      %1770 = vmatpush1.bf16.xpose.msra.mxu0 0
      %1771 = vmatprep.subr.bf16.mxu0 0
      %1772 = vmatpush1.bf16.xpose.msra.mxu0 0
      %1773 = vmatprep.subr.bf16.mxu0 0
      %1774 = vmatpush1.bf16.xpose.msra.mxu0 0
      %1775 = vmatprep.subr.bf16.mxu0 0
      %1776 = vmatpush1.bf16.xpose.msra.mxu0 0
      %1777 = vmatprep.subr.bf16.mxu0 0
      %1778 = vmatpush1.bf16.xpose.msra.mxu0 0
      %1779 = vmatprep.subr.bf16.mxu0 0
      %1780 = vmatpush1.bf16.xpose.msra.mxu0 0
      %1781 = vmatprep.subr.bf16.mxu0 0
      %1782 = vmatpush1.bf16.xpose.msra.mxu0 0
      %1783 = vmatprep.subr.bf16.mxu0 0
      %1784 = vmatpush1.bf16.xpose.msra.mxu0 0
      %1785 = vmatprep.mubr.bf16.mxu0 0
      %1786 = vmatmul.mubr.bf16.gmra.mrb[0].mxu0 %v1742
      %v1787 = vpop.f32.mrb[0].mxu0
      %v1788 = vadd.f32 0.0, %v1787
      %v1789 = vpop.f32.mrb[0].mxu0
      %v1790 = vpop.f32.mrb[0].mxu0
      %v1791 = vadd.f32 0.0, %v1790
      %v1792 = vpop.f32.mrb[0].mxu0
      %1793 = vmatprep.mubr.bf16.mxu0 0
      %1794 = vmatmul.mubr.bf16.gmra.mrb[0].mxu0 %v1745
      %v1795 = vpop.f32.mrb[0].mxu0
      %v1796 = vadd.f32 0.0, %v1795
      %v1797 = vpop.f32.mrb[0].mxu0
      %v1798 = vpop.f32.mrb[0].mxu0
      %v1799 = vpop.f32.mrb[0].mxu0
      %1800 = vdwg.mxu0
      %1803 = vrot.lane.b32.xlu0 %v1336, 96
      %v1804 = vpop.permute.xlu0 %1803
      %1805 = vrot.lane.b32.xlu0 %v1337, 96
      %v1806 = vpop.permute.xlu0 %1805
      %v1808 = vsel %vm1344, %v1320, 0
      %v1811 = vsel %vm1344, %v1321, 0
      %v1814 = vsel %vm1344, %v1804, 0
      %v1817 = vsel %vm1344, %v1806, 0
      %1819 = vmatprep.subr.bf16.mxu0 0
      %1820 = vmatpush1.bf16.xpose.msra.mxu0 %v1814
      %1821 = vmatprep.subr.bf16.mxu0 0
      %1822 = vmatpush1.bf16.xpose.msra.mxu0 %v1817
      %1823 = vmatprep.subr.bf16.mxu0 0
      %1824 = vmatpush1.bf16.xpose.msra.mxu0 0
      %1825 = vmatprep.subr.bf16.mxu0 0
      %1826 = vmatpush1.bf16.xpose.msra.mxu0 0
      %1827 = vmatprep.subr.bf16.mxu0 0
      %1828 = vmatpush1.bf16.xpose.msra.mxu0 0
      %1829 = vmatprep.subr.bf16.mxu0 0
      %1830 = vmatpush1.bf16.xpose.msra.mxu0 0
      %1831 = vmatprep.subr.bf16.mxu0 0
      %1832 = vmatpush1.bf16.xpose.msra.mxu0 0
      %1833 = vmatprep.subr.bf16.mxu0 0
      %1834 = vmatpush1.bf16.xpose.msra.mxu0 0
      %1835 = vmatprep.subr.bf16.mxu0 0
      %1836 = vmatpush1.bf16.xpose.msra.mxu0 0
      %1837 = vmatprep.subr.bf16.mxu0 0
      %1838 = vmatpush1.bf16.xpose.msra.mxu0 0
      %1839 = vmatprep.subr.bf16.mxu0 0
      %1840 = vmatpush1.bf16.xpose.msra.mxu0 0
      %1841 = vmatprep.subr.bf16.mxu0 0
      %1842 = vmatpush1.bf16.xpose.msra.mxu0 0
      %1843 = vmatprep.subr.bf16.mxu0 0
      %1844 = vmatpush1.bf16.xpose.msra.mxu0 0
      %1845 = vmatprep.subr.bf16.mxu0 0
      %1846 = vmatpush1.bf16.xpose.msra.mxu0 0
      %1847 = vmatprep.subr.bf16.mxu0 0
      %1848 = vmatpush1.bf16.xpose.msra.mxu0 0
      %1849 = vmatprep.subr.bf16.mxu0 0
      %1850 = vmatpush1.bf16.xpose.msra.mxu0 0
      %1851 = vmatprep.mubr.bf16.mxu0 0
      %1852 = vmatmul.mubr.bf16.gmra.mrb[0].mxu0 %v1808
      %v1853 = vpop.f32.mrb[0].mxu0
      %v1854 = vadd.f32 0.0, %v1853
      %v1855 = vpop.f32.mrb[0].mxu0
      %v1856 = vpop.f32.mrb[0].mxu0
      %v1857 = vadd.f32 0.0, %v1856
      %v1858 = vpop.f32.mrb[0].mxu0
      %1859 = vmatprep.mubr.bf16.mxu0 0
      %1860 = vmatmul.mubr.bf16.gmra.mrb[0].mxu0 %v1811
      %v1861 = vpop.f32.mrb[0].mxu0
      %v1862 = vadd.f32 0.0, %v1861
      %v1863 = vpop.f32.mrb[0].mxu0
      %v1864 = vpop.f32.mrb[0].mxu0
      %v1865 = vpop.f32.mrb[0].mxu0
      %1866 = vdwg.mxu0
      %vm1867 = vcmask 138240
      %v1868 = vsel %vm1867, %v1392, -inf
      %1869 = vmax.xlane.f32.xlu0 %v1868
      %v1870 = vpop.xlane.xlu0 %1869
      %v1871 = vsel %vm1867, %v1395, -inf
      %1872 = vmax.xlane.f32.xlu0 %v1871
      %v1873 = vpop.xlane.xlu0 %1872
      %vm1874 = vcmask 131072
      %v1875 = vsel %vm1874, %v1400, -inf
      %1876 = vmax.xlane.f32.xlu0 %v1875
      %v1877 = vpop.xlane.xlu0 %1876
      %v1878 = vsel %vm1867, %v1458, -inf
      %1879 = vmax.xlane.f32.xlu0 %v1878
      %v1880 = vpop.xlane.xlu0 %1879
      %v1881 = vsel %vm1867, %v1461, -inf
      %1882 = vmax.xlane.f32.xlu0 %v1881
      %v1883 = vpop.xlane.xlu0 %1882
      %v1884 = vsel %vm1874, %v1466, -inf
      %1885 = vmax.xlane.f32.xlu0 %v1884
      %v1886 = vpop.xlane.xlu0 %1885
      %v1887 = vsel %vm1867, %v1524, -inf
      %1888 = vmax.xlane.f32.xlu0 %v1887
      %v1889 = vpop.xlane.xlu0 %1888
      %v1890 = vsel %vm1867, %v1527, -inf
      %1891 = vmax.xlane.f32.xlu0 %v1890
      %v1892 = vpop.xlane.xlu0 %1891
      %v1893 = vsel %vm1874, %v1532, -inf
      %1894 = vmax.xlane.f32.xlu0 %v1893
      %v1895 = vpop.xlane.xlu0 %1894
      %v1896 = vsel %vm1867, %v1590, -inf
      %1897 = vmax.xlane.f32.xlu0 %v1896
      %v1898 = vpop.xlane.xlu0 %1897
      %v1899 = vsel %vm1867, %v1593, -inf
      %1900 = vmax.xlane.f32.xlu0 %v1899
      %v1901 = vpop.xlane.xlu0 %1900
      %v1902 = vsel %vm1874, %v1598, -inf
      %1903 = vmax.xlane.f32.xlu0 %v1902
      %v1904 = vpop.xlane.xlu0 %1903
      %v1905 = vsel %vm1867, %v1656, -inf
      %1906 = vmax.xlane.f32.xlu0 %v1905
      %v1907 = vpop.xlane.xlu0 %1906
      %v1908 = vsel %vm1867, %v1659, -inf
      %1909 = vmax.xlane.f32.xlu0 %v1908
      %v1910 = vpop.xlane.xlu0 %1909
      %v1911 = vsel %vm1874, %v1664, -inf
      %1912 = vmax.xlane.f32.xlu0 %v1911
      %v1913 = vpop.xlane.xlu0 %1912
      %v1914 = vsel %vm1867, %v1722, -inf
      %1915 = vmax.xlane.f32.xlu0 %v1914
      %v1916 = vpop.xlane.xlu0 %1915
      %v1917 = vsel %vm1867, %v1725, -inf
      %1918 = vmax.xlane.f32.xlu0 %v1917
      %v1919 = vpop.xlane.xlu0 %1918
      %v1920 = vsel %vm1874, %v1730, -inf
      %1921 = vmax.xlane.f32.xlu0 %v1920
      %v1922 = vpop.xlane.xlu0 %1921
      %v1923 = vsel %vm1867, %v1788, -inf
      %1924 = vmax.xlane.f32.xlu0 %v1923
      %v1925 = vpop.xlane.xlu0 %1924
      %v1926 = vsel %vm1867, %v1791, -inf
      %1927 = vmax.xlane.f32.xlu0 %v1926
      %v1928 = vpop.xlane.xlu0 %1927
      %v1929 = vsel %vm1874, %v1796, -inf
      %1930 = vmax.xlane.f32.xlu0 %v1929
      %v1931 = vpop.xlane.xlu0 %1930
      %v1932 = vsel %vm1867, %v1854, -inf
      %1933 = vmax.xlane.f32.xlu0 %v1932
      %v1934 = vpop.xlane.xlu0 %1933
      %v1935 = vsel %vm1867, %v1857, -inf
      %1936 = vmax.xlane.f32.xlu0 %v1935
      %v1937 = vpop.xlane.xlu0 %1936
      %v1938 = vsel %vm1874, %v1862, -inf
      %1939 = vmax.xlane.f32.xlu0 %v1938
      %v1940 = vpop.xlane.xlu0 %1939
      %v1941 = vsub.f32 %v1392, %v1870
      %v1942 = vsub.f32 %v1395, %v1873
      %v1943 = vsub.f32 %v1400, %v1877
      %v1944 = vsub.f32 %v1458, %v1880
      %v1945 = vsub.f32 %v1461, %v1883
      %v1946 = vsub.f32 %v1466, %v1886
      %v1947 = vsub.f32 %v1524, %v1889
      %v1948 = vsub.f32 %v1527, %v1892
      %v1949 = vsub.f32 %v1532, %v1895
      %v1950 = vsub.f32 %v1590, %v1898
      %v1951 = vsub.f32 %v1593, %v1901
      %v1952 = vsub.f32 %v1598, %v1904
      %v1953 = vsub.f32 %v1656, %v1907
      %v1954 = vsub.f32 %v1659, %v1910
      %v1955 = vsub.f32 %v1664, %v1913
      %v1956 = vsub.f32 %v1722, %v1916
      %v1957 = vsub.f32 %v1725, %v1919
      %v1958 = vsub.f32 %v1730, %v1922
      %v1959 = vsub.f32 %v1788, %v1925
      %v1960 = vsub.f32 %v1791, %v1928
      %v1961 = vsub.f32 %v1796, %v1931
      %v1962 = vsub.f32 %v1854, %v1934
      %v1963 = vsub.f32 %v1857, %v1937
      %v1964 = vsub.f32 %v1862, %v1940
      %v1965 = vmul.f32 %v1941, 1.442695
      %v1966 = vpow.pop %v1965
      %v1967 = vmul.f32 %v1942, 1.442695
      %v1968 = vpow.pop %v1967
      %v1969 = vmul.f32 %v1943, 1.442695
      %v1970 = vpow.pop %v1969
      %v1971 = vmul.f32 %v1944, 1.442695
      %v1972 = vpow.pop %v1971
      %v1973 = vmul.f32 %v1945, 1.442695
      %v1974 = vpow.pop %v1973
      %v1975 = vmul.f32 %v1946, 1.442695
      %v1976 = vpow.pop %v1975
      %v1977 = vmul.f32 %v1947, 1.442695
      %v1978 = vpow.pop %v1977
      %v1979 = vmul.f32 %v1948, 1.442695
      %v1980 = vpow.pop %v1979
      %v1981 = vmul.f32 %v1949, 1.442695
      %v1982 = vpow.pop %v1981
      %v1983 = vmul.f32 %v1950, 1.442695
      %v1984 = vpow.pop %v1983
      %v1985 = vmul.f32 %v1951, 1.442695
      %v1986 = vpow.pop %v1985
      %v1987 = vmul.f32 %v1952, 1.442695
      %v1988 = vpow.pop %v1987
      %v1989 = vmul.f32 %v1953, 1.442695
      %v1990 = vpow.pop %v1989
      %v1991 = vmul.f32 %v1954, 1.442695
      %v1992 = vpow.pop %v1991
      %v1993 = vmul.f32 %v1955, 1.442695
      %v1994 = vpow.pop %v1993
      %v1995 = vmul.f32 %v1956, 1.442695
      %v1996 = vpow.pop %v1995
      %v1997 = vmul.f32 %v1957, 1.442695
      %v1998 = vpow.pop %v1997
      %v1999 = vmul.f32 %v1958, 1.442695
      %v2000 = vpow.pop %v1999
      %v2001 = vmul.f32 %v1959, 1.442695
      %v2002 = vpow.pop %v2001
      %v2003 = vmul.f32 %v1960, 1.442695
      %v2004 = vpow.pop %v2003
      %v2005 = vmul.f32 %v1961, 1.442695
      %v2006 = vpow.pop %v2005
      %v2007 = vmul.f32 %v1962, 1.442695
      %v2008 = vpow.pop %v2007
      %v2009 = vmul.f32 %v1963, 1.442695
      %v2010 = vpow.pop %v2009
      %v2011 = vmul.f32 %v1964, 1.442695
      %v2012 = vpow.pop %v2011
      %v2013 = vsel %vm1867, %v1966, 0.0
      %2014 = vadd.xlane.f32.xlu0 %v2013
      %v2015 = vpop.xlane.xlu0 %2014
      %v2016 = vsel %vm1867, %v1968, 0.0
      %2017 = vadd.xlane.f32.xlu0 %v2016
      %v2018 = vpop.xlane.xlu0 %2017
      %v2019 = vsel %vm1874, %v1970, 0.0
      %2020 = vadd.xlane.f32.xlu0 %v2019
      %v2021 = vpop.xlane.xlu0 %2020
      %v2022 = vsel %vm1867, %v1972, 0.0
      %2023 = vadd.xlane.f32.xlu0 %v2022
      %v2024 = vpop.xlane.xlu0 %2023
      %v2025 = vsel %vm1867, %v1974, 0.0
      %2026 = vadd.xlane.f32.xlu0 %v2025
      %v2027 = vpop.xlane.xlu0 %2026
      %v2028 = vsel %vm1874, %v1976, 0.0
      %2029 = vadd.xlane.f32.xlu0 %v2028
      %v2030 = vpop.xlane.xlu0 %2029
      %v2031 = vsel %vm1867, %v1978, 0.0
      %2032 = vadd.xlane.f32.xlu0 %v2031
      %v2033 = vpop.xlane.xlu0 %2032
      %v2034 = vsel %vm1867, %v1980, 0.0
      %2035 = vadd.xlane.f32.xlu0 %v2034
      %v2036 = vpop.xlane.xlu0 %2035
      %v2037 = vsel %vm1874, %v1982, 0.0
      %2038 = vadd.xlane.f32.xlu0 %v2037
      %v2039 = vpop.xlane.xlu0 %2038
      %v2040 = vsel %vm1867, %v1984, 0.0
      %2041 = vadd.xlane.f32.xlu0 %v2040
      %v2042 = vpop.xlane.xlu0 %2041
      %v2043 = vsel %vm1867, %v1986, 0.0
      %2044 = vadd.xlane.f32.xlu0 %v2043
      %v2045 = vpop.xlane.xlu0 %2044
      %v2046 = vsel %vm1874, %v1988, 0.0
      %2047 = vadd.xlane.f32.xlu0 %v2046
      %v2048 = vpop.xlane.xlu0 %2047
      %v2049 = vsel %vm1867, %v1990, 0.0
      %2050 = vadd.xlane.f32.xlu0 %v2049
      %v2051 = vpop.xlane.xlu0 %2050
      %v2052 = vsel %vm1867, %v1992, 0.0
      %2053 = vadd.xlane.f32.xlu0 %v2052
      %v2054 = vpop.xlane.xlu0 %2053
      %v2055 = vsel %vm1874, %v1994, 0.0
      %2056 = vadd.xlane.f32.xlu0 %v2055
      %v2057 = vpop.xlane.xlu0 %2056
      %v2058 = vsel %vm1867, %v1996, 0.0
      %2059 = vadd.xlane.f32.xlu0 %v2058
      %v2060 = vpop.xlane.xlu0 %2059
      %v2061 = vsel %vm1867, %v1998, 0.0
      %2062 = vadd.xlane.f32.xlu0 %v2061
      %v2063 = vpop.xlane.xlu0 %2062
      %v2064 = vsel %vm1874, %v2000, 0.0
      %2065 = vadd.xlane.f32.xlu0 %v2064
      %v2066 = vpop.xlane.xlu0 %2065
      %v2067 = vsel %vm1867, %v2002, 0.0
      %2068 = vadd.xlane.f32.xlu0 %v2067
      %v2069 = vpop.xlane.xlu0 %2068
      %v2070 = vsel %vm1867, %v2004, 0.0
      %2071 = vadd.xlane.f32.xlu0 %v2070
      %v2072 = vpop.xlane.xlu0 %2071
      %v2073 = vsel %vm1874, %v2006, 0.0
      %2074 = vadd.xlane.f32.xlu0 %v2073
      %v2075 = vpop.xlane.xlu0 %2074
      %v2076 = vsel %vm1867, %v2008, 0.0
      %2077 = vadd.xlane.f32.xlu0 %v2076
      %v2078 = vpop.xlane.xlu0 %2077
      %v2079 = vsel %vm1867, %v2010, 0.0
      %2080 = vadd.xlane.f32.xlu0 %v2079
      %v2081 = vpop.xlane.xlu0 %2080
      %v2082 = vsel %vm1874, %v2012, 0.0
      %2083 = vadd.xlane.f32.xlu0 %v2082
      %v2084 = vpop.xlane.xlu0 %2083
      %v2085 = vrcp.pop %v2015
      %v2086 = vmul.f32 %v1966, %v2085
      %v2087 = vrcp.pop %v2018
      %v2088 = vmul.f32 %v1968, %v2087
      %v2089 = vrcp.pop %v2021
      %v2090 = vmul.f32 %v1970, %v2089
      %v2091 = vrcp.pop %v2024
      %v2092 = vmul.f32 %v1972, %v2091
      %v2093 = vrcp.pop %v2027
      %v2094 = vmul.f32 %v1974, %v2093
      %v2095 = vrcp.pop %v2030
      %v2096 = vmul.f32 %v1976, %v2095
      %v2097 = vrcp.pop %v2033
      %v2098 = vmul.f32 %v1978, %v2097
      %v2099 = vrcp.pop %v2036
      %v2100 = vmul.f32 %v1980, %v2099
      %v2101 = vrcp.pop %v2039
      %v2102 = vmul.f32 %v1982, %v2101
      %v2103 = vrcp.pop %v2042
      %v2104 = vmul.f32 %v1984, %v2103
      %v2105 = vrcp.pop %v2045
      %v2106 = vmul.f32 %v1986, %v2105
      %v2107 = vrcp.pop %v2048
      %v2108 = vmul.f32 %v1988, %v2107
      %v2109 = vrcp.pop %v2051
      %v2110 = vmul.f32 %v1990, %v2109
      %v2111 = vrcp.pop %v2054
      %v2112 = vmul.f32 %v1992, %v2111
      %v2113 = vrcp.pop %v2057
      %v2114 = vmul.f32 %v1994, %v2113
      %v2115 = vrcp.pop %v2060
      %v2116 = vmul.f32 %v1996, %v2115
      %v2117 = vrcp.pop %v2063
      %v2118 = vmul.f32 %v1998, %v2117
      %v2119 = vrcp.pop %v2066
      %v2120 = vmul.f32 %v2000, %v2119
      %v2121 = vrcp.pop %v2069
      %v2122 = vmul.f32 %v2002, %v2121
      %v2123 = vrcp.pop %v2072
      %v2124 = vmul.f32 %v2004, %v2123
      %v2125 = vrcp.pop %v2075
      %v2126 = vmul.f32 %v2006, %v2125
      %v2127 = vrcp.pop %v2078
      %v2128 = vmul.f32 %v2008, %v2127
      %v2129 = vrcp.pop %v2081
      %v2130 = vmul.f32 %v2010, %v2129
      %v2131 = vrcp.pop %v2084
      %v2132 = vmul.f32 %v2012, %v2131
      %v2133 = vpack.c.bf16 %v2088, %v2086
      %v2134 = vpack.c.bf16 %v2090, %v2090
      %v2135 = vpack.c.bf16 %v2094, %v2092
      %v2136 = vpack.c.bf16 %v2096, %v2096
      %v2137 = vpack.c.bf16 %v2100, %v2098
      %v2138 = vpack.c.bf16 %v2102, %v2102
      %v2139 = vpack.c.bf16 %v2106, %v2104
      %v2140 = vpack.c.bf16 %v2108, %v2108
      %v2141 = vpack.c.bf16 %v2112, %v2110
      %v2142 = vpack.c.bf16 %v2114, %v2114
      %v2143 = vpack.c.bf16 %v2118, %v2116
      %v2144 = vpack.c.bf16 %v2120, %v2120
      %v2145 = vpack.c.bf16 %v2124, %v2122
      %v2146 = vpack.c.bf16 %v2126, %v2126
      %v2147 = vpack.c.bf16 %v2130, %v2128
      %v2148 = vpack.c.bf16 %v2132, %v2132
      %2149 = vrot.lane.b32.xlu0 %v1322, 64
      %v2150 = vpop.permute.xlu0 %2149
      %2151 = vrot.lane.b32.xlu0 %v1323, 64
      %v2152 = vpop.permute.xlu0 %2151
      %v2155 = vsel %vm1867, %v2133, 0
      %v2158 = vsel %vm1867, %v2134, 0
      %vm2160 = vcmask 1040384
      %v2161 = vsel 0, 4294967295, 65535
      %v2162 = vsel %vm2160, %v2161, 0
      %v2164 = vand.u32 %v2152, %v2162
      %2166 = vmatprep.subr.bf16.mxu0 0
      %2167 = vmatpush1.bf16.msra.mxu0 %v2150
      %2168 = vmatprep.subr.bf16.mxu0 0
      %2169 = vmatpush1.bf16.msra.mxu0 %v2164
      %2170 = vmatprep.subr.bf16.mxu0 0
      %2171 = vmatpush1.bf16.msra.mxu0 0
      %2172 = vmatprep.subr.bf16.mxu0 0
      %2173 = vmatpush1.bf16.msra.mxu0 0
      %2174 = vmatprep.subr.bf16.mxu0 0
      %2175 = vmatpush1.bf16.msra.mxu0 0
      %2176 = vmatprep.subr.bf16.mxu0 0
      %2177 = vmatpush1.bf16.msra.mxu0 0
      %2178 = vmatprep.subr.bf16.mxu0 0
      %2179 = vmatpush1.bf16.msra.mxu0 0
      %2180 = vmatprep.subr.bf16.mxu0 0
      %2181 = vmatpush1.bf16.msra.mxu0 0
      %2182 = vmatprep.subr.bf16.mxu0 0
      %2183 = vmatpush1.bf16.msra.mxu0 0
      %2184 = vmatprep.subr.bf16.mxu0 0
      %2185 = vmatpush1.bf16.msra.mxu0 0
      %2186 = vmatprep.subr.bf16.mxu0 0
      %2187 = vmatpush1.bf16.msra.mxu0 0
      %2188 = vmatprep.subr.bf16.mxu0 0
      %2189 = vmatpush1.bf16.msra.mxu0 0
      %2190 = vmatprep.subr.bf16.mxu0 0
      %2191 = vmatpush1.bf16.msra.mxu0 0
      %2192 = vmatprep.subr.bf16.mxu0 0
      %2193 = vmatpush1.bf16.msra.mxu0 0
      %2194 = vmatprep.subr.bf16.mxu0 0
      %2195 = vmatpush1.bf16.msra.mxu0 0
      %2196 = vmatprep.subr.bf16.mxu0 0
      %2197 = vmatpush1.bf16.msra.mxu0 0
      %2198 = vmatprep.mubr.bf16.mxu0 0
      %2199 = vmatmul.mubr.bf16.gmra.mrb[0].mxu0 %v2155
      %v2200 = vpop.f32.mrb[0].mxu0
      %v2201 = vadd.f32 0.0, %v2200
      %v2202 = vpop.f32.mrb[0].mxu0
      %v2203 = vpop.f32.mrb[0].mxu0
      %v2204 = vadd.f32 0.0, %v2203
      %v2205 = vpop.f32.mrb[0].mxu0
      %2206 = vmatprep.mubr.bf16.mxu0 0
      %2207 = vmatmul.mubr.bf16.gmra.mrb[0].mxu0 %v2158
      %v2208 = vpop.f32.mrb[0].mxu0
      %v2209 = vadd.f32 0.0, %v2208
      %v2210 = vpop.f32.mrb[0].mxu0
      %v2211 = vpop.f32.mrb[0].mxu0
      %v2212 = vpop.f32.mrb[0].mxu0
      %2213 = vdwg.mxu0
      %2214 = vrot.lane.b32.xlu0 %v1324, 64
      %v2215 = vpop.permute.xlu0 %2214
      %2216 = vrot.lane.b32.xlu0 %v1325, 64
      %v2217 = vpop.permute.xlu0 %2216
      %v2220 = vsel %vm1867, %v2135, 0
      %v2223 = vsel %vm1867, %v2136, 0
      %v2226 = vand.u32 %v2217, %v2162
      %2228 = vmatprep.subr.bf16.mxu0 0
      %2229 = vmatpush1.bf16.msra.mxu0 %v2215
      %2230 = vmatprep.subr.bf16.mxu0 0
      %2231 = vmatpush1.bf16.msra.mxu0 %v2226
      %2232 = vmatprep.subr.bf16.mxu0 0
      %2233 = vmatpush1.bf16.msra.mxu0 0
      %2234 = vmatprep.subr.bf16.mxu0 0
      %2235 = vmatpush1.bf16.msra.mxu0 0
      %2236 = vmatprep.subr.bf16.mxu0 0
      %2237 = vmatpush1.bf16.msra.mxu0 0
      %2238 = vmatprep.subr.bf16.mxu0 0
      %2239 = vmatpush1.bf16.msra.mxu0 0
      %2240 = vmatprep.subr.bf16.mxu0 0
      %2241 = vmatpush1.bf16.msra.mxu0 0
      %2242 = vmatprep.subr.bf16.mxu0 0
      %2243 = vmatpush1.bf16.msra.mxu0 0
      %2244 = vmatprep.subr.bf16.mxu0 0
      %2245 = vmatpush1.bf16.msra.mxu0 0
      %2246 = vmatprep.subr.bf16.mxu0 0
      %2247 = vmatpush1.bf16.msra.mxu0 0
      %2248 = vmatprep.subr.bf16.mxu0 0
      %2249 = vmatpush1.bf16.msra.mxu0 0
      %2250 = vmatprep.subr.bf16.mxu0 0
      %2251 = vmatpush1.bf16.msra.mxu0 0
      %2252 = vmatprep.subr.bf16.mxu0 0
      %2253 = vmatpush1.bf16.msra.mxu0 0
      %2254 = vmatprep.subr.bf16.mxu0 0
      %2255 = vmatpush1.bf16.msra.mxu0 0
      %2256 = vmatprep.subr.bf16.mxu0 0
      %2257 = vmatpush1.bf16.msra.mxu0 0
      %2258 = vmatprep.subr.bf16.mxu0 0
      %2259 = vmatpush1.bf16.msra.mxu0 0
      %2260 = vmatprep.mubr.bf16.mxu0 0
      %2261 = vmatmul.mubr.bf16.gmra.mrb[0].mxu0 %v2220
      %v2262 = vpop.f32.mrb[0].mxu0
      %v2263 = vadd.f32 0.0, %v2262
      %v2264 = vpop.f32.mrb[0].mxu0
      %v2265 = vpop.f32.mrb[0].mxu0
      %v2266 = vadd.f32 0.0, %v2265
      %v2267 = vpop.f32.mrb[0].mxu0
      %2268 = vmatprep.mubr.bf16.mxu0 0
      %2269 = vmatmul.mubr.bf16.gmra.mrb[0].mxu0 %v2223
      %v2270 = vpop.f32.mrb[0].mxu0
      %v2271 = vadd.f32 0.0, %v2270
      %v2272 = vpop.f32.mrb[0].mxu0
      %v2273 = vpop.f32.mrb[0].mxu0
      %v2274 = vpop.f32.mrb[0].mxu0
      %2275 = vdwg.mxu0
      %2276 = vrot.lane.b32.xlu0 %v1326, 64
      %v2277 = vpop.permute.xlu0 %2276
      %2278 = vrot.lane.b32.xlu0 %v1327, 64
      %v2279 = vpop.permute.xlu0 %2278
      %v2282 = vsel %vm1867, %v2137, 0
      %v2285 = vsel %vm1867, %v2138, 0
      %v2288 = vand.u32 %v2279, %v2162
      %2290 = vmatprep.subr.bf16.mxu0 0
      %2291 = vmatpush1.bf16.msra.mxu0 %v2277
      %2292 = vmatprep.subr.bf16.mxu0 0
      %2293 = vmatpush1.bf16.msra.mxu0 %v2288
      %2294 = vmatprep.subr.bf16.mxu0 0
      %2295 = vmatpush1.bf16.msra.mxu0 0
      %2296 = vmatprep.subr.bf16.mxu0 0
      %2297 = vmatpush1.bf16.msra.mxu0 0
      %2298 = vmatprep.subr.bf16.mxu0 0
      %2299 = vmatpush1.bf16.msra.mxu0 0
      %2300 = vmatprep.subr.bf16.mxu0 0
      %2301 = vmatpush1.bf16.msra.mxu0 0
      %2302 = vmatprep.subr.bf16.mxu0 0
      %2303 = vmatpush1.bf16.msra.mxu0 0
      %2304 = vmatprep.subr.bf16.mxu0 0
      %2305 = vmatpush1.bf16.msra.mxu0 0
      %2306 = vmatprep.subr.bf16.mxu0 0
      %2307 = vmatpush1.bf16.msra.mxu0 0
      %2308 = vmatprep.subr.bf16.mxu0 0
      %2309 = vmatpush1.bf16.msra.mxu0 0
      %2310 = vmatprep.subr.bf16.mxu0 0
      %2311 = vmatpush1.bf16.msra.mxu0 0
      %2312 = vmatprep.subr.bf16.mxu0 0
      %2313 = vmatpush1.bf16.msra.mxu0 0
      %2314 = vmatprep.subr.bf16.mxu0 0
      %2315 = vmatpush1.bf16.msra.mxu0 0
      %2316 = vmatprep.subr.bf16.mxu0 0
      %2317 = vmatpush1.bf16.msra.mxu0 0
      %2318 = vmatprep.subr.bf16.mxu0 0
      %2319 = vmatpush1.bf16.msra.mxu0 0
      %2320 = vmatprep.subr.bf16.mxu0 0
      %2321 = vmatpush1.bf16.msra.mxu0 0
      %2322 = vmatprep.mubr.bf16.mxu0 0
      %2323 = vmatmul.mubr.bf16.gmra.mrb[0].mxu0 %v2282
      %v2324 = vpop.f32.mrb[0].mxu0
      %v2325 = vadd.f32 0.0, %v2324
      %v2326 = vpop.f32.mrb[0].mxu0
      %v2327 = vpop.f32.mrb[0].mxu0
      %v2328 = vadd.f32 0.0, %v2327
      %v2329 = vpop.f32.mrb[0].mxu0
      %2330 = vmatprep.mubr.bf16.mxu0 0
      %2331 = vmatmul.mubr.bf16.gmra.mrb[0].mxu0 %v2285
      %v2332 = vpop.f32.mrb[0].mxu0
      %v2333 = vadd.f32 0.0, %v2332
      %v2334 = vpop.f32.mrb[0].mxu0
      %v2335 = vpop.f32.mrb[0].mxu0
      %v2336 = vpop.f32.mrb[0].mxu0
      %2337 = vdwg.mxu0
      %2338 = vrot.lane.b32.xlu0 %v1328, 64
      %v2339 = vpop.permute.xlu0 %2338
      %2340 = vrot.lane.b32.xlu0 %v1329, 64
      %v2341 = vpop.permute.xlu0 %2340
      %v2344 = vsel %vm1867, %v2139, 0
      %v2347 = vsel %vm1867, %v2140, 0
      %v2350 = vand.u32 %v2341, %v2162
      %2352 = vmatprep.subr.bf16.mxu0 0
      %2353 = vmatpush1.bf16.msra.mxu0 %v2339
      %2354 = vmatprep.subr.bf16.mxu0 0
      %2355 = vmatpush1.bf16.msra.mxu0 %v2350
      %2356 = vmatprep.subr.bf16.mxu0 0
      %2357 = vmatpush1.bf16.msra.mxu0 0
      %2358 = vmatprep.subr.bf16.mxu0 0
      %2359 = vmatpush1.bf16.msra.mxu0 0
      %2360 = vmatprep.subr.bf16.mxu0 0
      %2361 = vmatpush1.bf16.msra.mxu0 0
      %2362 = vmatprep.subr.bf16.mxu0 0
      %2363 = vmatpush1.bf16.msra.mxu0 0
      %2364 = vmatprep.subr.bf16.mxu0 0
      %2365 = vmatpush1.bf16.msra.mxu0 0
      %2366 = vmatprep.subr.bf16.mxu0 0
      %2367 = vmatpush1.bf16.msra.mxu0 0
      %2368 = vmatprep.subr.bf16.mxu0 0
      %2369 = vmatpush1.bf16.msra.mxu0 0
      %2370 = vmatprep.subr.bf16.mxu0 0
      %2371 = vmatpush1.bf16.msra.mxu0 0
      %2372 = vmatprep.subr.bf16.mxu0 0
      %2373 = vmatpush1.bf16.msra.mxu0 0
      %2374 = vmatprep.subr.bf16.mxu0 0
      %2375 = vmatpush1.bf16.msra.mxu0 0
      %2376 = vmatprep.subr.bf16.mxu0 0
      %2377 = vmatpush1.bf16.msra.mxu0 0
      %2378 = vmatprep.subr.bf16.mxu0 0
      %2379 = vmatpush1.bf16.msra.mxu0 0
      %2380 = vmatprep.subr.bf16.mxu0 0
      %2381 = vmatpush1.bf16.msra.mxu0 0
      %2382 = vmatprep.subr.bf16.mxu0 0
      %2383 = vmatpush1.bf16.msra.mxu0 0
      %2384 = vmatprep.mubr.bf16.mxu0 0
      %2385 = vmatmul.mubr.bf16.gmra.mrb[0].mxu0 %v2344
      %v2386 = vpop.f32.mrb[0].mxu0
      %v2387 = vadd.f32 0.0, %v2386
      %v2388 = vpop.f32.mrb[0].mxu0
      %v2389 = vpop.f32.mrb[0].mxu0
      %v2390 = vadd.f32 0.0, %v2389
      %v2391 = vpop.f32.mrb[0].mxu0
      %2392 = vmatprep.mubr.bf16.mxu0 0
      %2393 = vmatmul.mubr.bf16.gmra.mrb[0].mxu0 %v2347
      %v2394 = vpop.f32.mrb[0].mxu0
      %v2395 = vadd.f32 0.0, %v2394
      %v2396 = vpop.f32.mrb[0].mxu0
      %v2397 = vpop.f32.mrb[0].mxu0
      %v2398 = vpop.f32.mrb[0].mxu0
      %2399 = vdwg.mxu0
      %2400 = vrot.lane.b32.xlu0 %v1330, 64
      %v2401 = vpop.permute.xlu0 %2400
      %2402 = vrot.lane.b32.xlu0 %v1331, 64
      %v2403 = vpop.permute.xlu0 %2402
      %v2406 = vsel %vm1867, %v2141, 0
      %v2409 = vsel %vm1867, %v2142, 0
      %v2412 = vand.u32 %v2403, %v2162
      %2414 = vmatprep.subr.bf16.mxu0 0
      %2415 = vmatpush1.bf16.msra.mxu0 %v2401
      %2416 = vmatprep.subr.bf16.mxu0 0
      %2417 = vmatpush1.bf16.msra.mxu0 %v2412
      %2418 = vmatprep.subr.bf16.mxu0 0
      %2419 = vmatpush1.bf16.msra.mxu0 0
      %2420 = vmatprep.subr.bf16.mxu0 0
      %2421 = vmatpush1.bf16.msra.mxu0 0
      %2422 = vmatprep.subr.bf16.mxu0 0
      %2423 = vmatpush1.bf16.msra.mxu0 0
      %2424 = vmatprep.subr.bf16.mxu0 0
      %2425 = vmatpush1.bf16.msra.mxu0 0
      %2426 = vmatprep.subr.bf16.mxu0 0
      %2427 = vmatpush1.bf16.msra.mxu0 0
      %2428 = vmatprep.subr.bf16.mxu0 0
      %2429 = vmatpush1.bf16.msra.mxu0 0
      %2430 = vmatprep.subr.bf16.mxu0 0
      %2431 = vmatpush1.bf16.msra.mxu0 0
      %2432 = vmatprep.subr.bf16.mxu0 0
      %2433 = vmatpush1.bf16.msra.mxu0 0
      %2434 = vmatprep.subr.bf16.mxu0 0
      %2435 = vmatpush1.bf16.msra.mxu0 0
      %2436 = vmatprep.subr.bf16.mxu0 0
      %2437 = vmatpush1.bf16.msra.mxu0 0
      %2438 = vmatprep.subr.bf16.mxu0 0
      %2439 = vmatpush1.bf16.msra.mxu0 0
      %2440 = vmatprep.subr.bf16.mxu0 0
      %2441 = vmatpush1.bf16.msra.mxu0 0
      %2442 = vmatprep.subr.bf16.mxu0 0
      %2443 = vmatpush1.bf16.msra.mxu0 0
      %2444 = vmatprep.subr.bf16.mxu0 0
      %2445 = vmatpush1.bf16.msra.mxu0 0
      %2446 = vmatprep.mubr.bf16.mxu0 0
      %2447 = vmatmul.mubr.bf16.gmra.mrb[0].mxu0 %v2406
      %v2448 = vpop.f32.mrb[0].mxu0
      %v2449 = vadd.f32 0.0, %v2448
      %v2450 = vpop.f32.mrb[0].mxu0
      %v2451 = vpop.f32.mrb[0].mxu0
      %v2452 = vadd.f32 0.0, %v2451
      %v2453 = vpop.f32.mrb[0].mxu0
      %2454 = vmatprep.mubr.bf16.mxu0 0
      %2455 = vmatmul.mubr.bf16.gmra.mrb[0].mxu0 %v2409
      %v2456 = vpop.f32.mrb[0].mxu0
      %v2457 = vadd.f32 0.0, %v2456
      %v2458 = vpop.f32.mrb[0].mxu0
      %v2459 = vpop.f32.mrb[0].mxu0
      %v2460 = vpop.f32.mrb[0].mxu0
      %2461 = vdwg.mxu0
      %2462 = vrot.lane.b32.xlu0 %v1332, 64
      %v2463 = vpop.permute.xlu0 %2462
      %2464 = vrot.lane.b32.xlu0 %v1333, 64
      %v2465 = vpop.permute.xlu0 %2464
      %v2468 = vsel %vm1867, %v2143, 0
      %v2471 = vsel %vm1867, %v2144, 0
      %v2474 = vand.u32 %v2465, %v2162
      %2476 = vmatprep.subr.bf16.mxu0 0
      %2477 = vmatpush1.bf16.msra.mxu0 %v2463
      %2478 = vmatprep.subr.bf16.mxu0 0
      %2479 = vmatpush1.bf16.msra.mxu0 %v2474
      %2480 = vmatprep.subr.bf16.mxu0 0
      %2481 = vmatpush1.bf16.msra.mxu0 0
      %2482 = vmatprep.subr.bf16.mxu0 0
      %2483 = vmatpush1.bf16.msra.mxu0 0
      %2484 = vmatprep.subr.bf16.mxu0 0
      %2485 = vmatpush1.bf16.msra.mxu0 0
      %2486 = vmatprep.subr.bf16.mxu0 0
      %2487 = vmatpush1.bf16.msra.mxu0 0
      %2488 = vmatprep.subr.bf16.mxu0 0
      %2489 = vmatpush1.bf16.msra.mxu0 0
      %2490 = vmatprep.subr.bf16.mxu0 0
      %2491 = vmatpush1.bf16.msra.mxu0 0
      %2492 = vmatprep.subr.bf16.mxu0 0
      %2493 = vmatpush1.bf16.msra.mxu0 0
      %2494 = vmatprep.subr.bf16.mxu0 0
      %2495 = vmatpush1.bf16.msra.mxu0 0
      %2496 = vmatprep.subr.bf16.mxu0 0
      %2497 = vmatpush1.bf16.msra.mxu0 0
      %2498 = vmatprep.subr.bf16.mxu0 0
      %2499 = vmatpush1.bf16.msra.mxu0 0
      %2500 = vmatprep.subr.bf16.mxu0 0
      %2501 = vmatpush1.bf16.msra.mxu0 0
      %2502 = vmatprep.subr.bf16.mxu0 0
      %2503 = vmatpush1.bf16.msra.mxu0 0
      %2504 = vmatprep.subr.bf16.mxu0 0
      %2505 = vmatpush1.bf16.msra.mxu0 0
      %2506 = vmatprep.subr.bf16.mxu0 0
      %2507 = vmatpush1.bf16.msra.mxu0 0
      %2508 = vmatprep.mubr.bf16.mxu0 0
      %2509 = vmatmul.mubr.bf16.gmra.mrb[0].mxu0 %v2468
      %v2510 = vpop.f32.mrb[0].mxu0
      %v2511 = vadd.f32 0.0, %v2510
      %v2512 = vpop.f32.mrb[0].mxu0
      %v2513 = vpop.f32.mrb[0].mxu0
      %v2514 = vadd.f32 0.0, %v2513
      %v2515 = vpop.f32.mrb[0].mxu0
      %2516 = vmatprep.mubr.bf16.mxu0 0
      %2517 = vmatmul.mubr.bf16.gmra.mrb[0].mxu0 %v2471
      %v2518 = vpop.f32.mrb[0].mxu0
      %v2519 = vadd.f32 0.0, %v2518
      %v2520 = vpop.f32.mrb[0].mxu0
      %v2521 = vpop.f32.mrb[0].mxu0
      %v2522 = vpop.f32.mrb[0].mxu0
      %2523 = vdwg.mxu0
      %2524 = vrot.lane.b32.xlu0 %v1334, 64
      %v2525 = vpop.permute.xlu0 %2524
      %2526 = vrot.lane.b32.xlu0 %v1335, 64
      %v2527 = vpop.permute.xlu0 %2526
      %v2530 = vsel %vm1867, %v2145, 0
      %v2533 = vsel %vm1867, %v2146, 0
      %v2536 = vand.u32 %v2527, %v2162
      %2538 = vmatprep.subr.bf16.mxu0 0
      %2539 = vmatpush1.bf16.msra.mxu0 %v2525
      %2540 = vmatprep.subr.bf16.mxu0 0
      %2541 = vmatpush1.bf16.msra.mxu0 %v2536
      %2542 = vmatprep.subr.bf16.mxu0 0
      %2543 = vmatpush1.bf16.msra.mxu0 0
      %2544 = vmatprep.subr.bf16.mxu0 0
      %2545 = vmatpush1.bf16.msra.mxu0 0
      %2546 = vmatprep.subr.bf16.mxu0 0
      %2547 = vmatpush1.bf16.msra.mxu0 0
      %2548 = vmatprep.subr.bf16.mxu0 0
      %2549 = vmatpush1.bf16.msra.mxu0 0
      %2550 = vmatprep.subr.bf16.mxu0 0
      %2551 = vmatpush1.bf16.msra.mxu0 0
      %2552 = vmatprep.subr.bf16.mxu0 0
      %2553 = vmatpush1.bf16.msra.mxu0 0
      %2554 = vmatprep.subr.bf16.mxu0 0
      %2555 = vmatpush1.bf16.msra.mxu0 0
      %2556 = vmatprep.subr.bf16.mxu0 0
      %2557 = vmatpush1.bf16.msra.mxu0 0
      %2558 = vmatprep.subr.bf16.mxu0 0
      %2559 = vmatpush1.bf16.msra.mxu0 0
      %2560 = vmatprep.subr.bf16.mxu0 0
      %2561 = vmatpush1.bf16.msra.mxu0 0
      %2562 = vmatprep.subr.bf16.mxu0 0
      %2563 = vmatpush1.bf16.msra.mxu0 0
      %2564 = vmatprep.subr.bf16.mxu0 0
      %2565 = vmatpush1.bf16.msra.mxu0 0
      %2566 = vmatprep.subr.bf16.mxu0 0
      %2567 = vmatpush1.bf16.msra.mxu0 0
      %2568 = vmatprep.subr.bf16.mxu0 0
      %2569 = vmatpush1.bf16.msra.mxu0 0
      %2570 = vmatprep.mubr.bf16.mxu0 0
      %2571 = vmatmul.mubr.bf16.gmra.mrb[0].mxu0 %v2530
      %v2572 = vpop.f32.mrb[0].mxu0
      %v2573 = vadd.f32 0.0, %v2572
      %v2574 = vpop.f32.mrb[0].mxu0
      %v2575 = vpop.f32.mrb[0].mxu0
      %v2576 = vadd.f32 0.0, %v2575
      %v2577 = vpop.f32.mrb[0].mxu0
      %2578 = vmatprep.mubr.bf16.mxu0 0
      %2579 = vmatmul.mubr.bf16.gmra.mrb[0].mxu0 %v2533
      %v2580 = vpop.f32.mrb[0].mxu0
      %v2581 = vadd.f32 0.0, %v2580
      %v2582 = vpop.f32.mrb[0].mxu0
      %v2583 = vpop.f32.mrb[0].mxu0
      %v2584 = vpop.f32.mrb[0].mxu0
      %2585 = vdwg.mxu0
      %2586 = vrot.lane.b32.xlu0 %v1336, 64
      %v2587 = vpop.permute.xlu0 %2586
      %2588 = vrot.lane.b32.xlu0 %v1337, 64
      %v2589 = vpop.permute.xlu0 %2588
      %v2592 = vsel %vm1867, %v2147, 0
      %v2595 = vsel %vm1867, %v2148, 0
      %v2598 = vand.u32 %v2589, %v2162
      %2600 = vmatprep.subr.bf16.mxu0 0
      %2601 = vmatpush1.bf16.msra.mxu0 %v2587
      %2602 = vmatprep.subr.bf16.mxu0 0
      %2603 = vmatpush1.bf16.msra.mxu0 %v2598
      %2604 = vmatprep.subr.bf16.mxu0 0
      %2605 = vmatpush1.bf16.msra.mxu0 0
      %2606 = vmatprep.subr.bf16.mxu0 0
      %2607 = vmatpush1.bf16.msra.mxu0 0
      %2608 = vmatprep.subr.bf16.mxu0 0
      %2609 = vmatpush1.bf16.msra.mxu0 0
      %2610 = vmatprep.subr.bf16.mxu0 0
      %2611 = vmatpush1.bf16.msra.mxu0 0
      %2612 = vmatprep.subr.bf16.mxu0 0
      %2613 = vmatpush1.bf16.msra.mxu0 0
      %2614 = vmatprep.subr.bf16.mxu0 0
      %2615 = vmatpush1.bf16.msra.mxu0 0
      %2616 = vmatprep.subr.bf16.mxu0 0
      %2617 = vmatpush1.bf16.msra.mxu0 0
      %2618 = vmatprep.subr.bf16.mxu0 0
      %2619 = vmatpush1.bf16.msra.mxu0 0
      %2620 = vmatprep.subr.bf16.mxu0 0
      %2621 = vmatpush1.bf16.msra.mxu0 0
      %2622 = vmatprep.subr.bf16.mxu0 0
      %2623 = vmatpush1.bf16.msra.mxu0 0
      %2624 = vmatprep.subr.bf16.mxu0 0
      %2625 = vmatpush1.bf16.msra.mxu0 0
      %2626 = vmatprep.subr.bf16.mxu0 0
      %2627 = vmatpush1.bf16.msra.mxu0 0
      %2628 = vmatprep.subr.bf16.mxu0 0
      %2629 = vmatpush1.bf16.msra.mxu0 0
      %2630 = vmatprep.subr.bf16.mxu0 0
      %2631 = vmatpush1.bf16.msra.mxu0 0
      %2632 = vmatprep.mubr.bf16.mxu0 0
      %2633 = vmatmul.mubr.bf16.gmra.mrb[0].mxu0 %v2592
      %v2634 = vpop.f32.mrb[0].mxu0
      %v2635 = vadd.f32 0.0, %v2634
      %v2636 = vpop.f32.mrb[0].mxu0
      %v2637 = vpop.f32.mrb[0].mxu0
      %v2638 = vadd.f32 0.0, %v2637
      %v2639 = vpop.f32.mrb[0].mxu0
      %2640 = vmatprep.mubr.bf16.mxu0 0
      %2641 = vmatmul.mubr.bf16.gmra.mrb[0].mxu0 %v2595
      %v2642 = vpop.f32.mrb[0].mxu0
      %v2643 = vadd.f32 0.0, %v2642
      %v2644 = vpop.f32.mrb[0].mxu0
      %v2645 = vpop.f32.mrb[0].mxu0
      %v2646 = vpop.f32.mrb[0].mxu0
      %2647 = vdwg.mxu0
      %2651 = vrot.lane.b32.xlu0 %v2263, 8
      %v2652 = vpop.permute.xlu0 %2651
      %2653 = vrot.lane.b32.xlu0 %v2266, 8
      %v2654 = vpop.permute.xlu0 %2653
      %2655 = vrot.lane.b32.xlu0 %v2271, 8
      %v2656 = vpop.permute.xlu0 %2655
      %2663 = vrot.lane.b32.xlu0 %v2325, 16
      %v2664 = vpop.permute.xlu0 %2663
      %2665 = vrot.lane.b32.xlu0 %v2328, 16
      %v2666 = vpop.permute.xlu0 %2665
      %2667 = vrot.lane.b32.xlu0 %v2333, 16
      %v2668 = vpop.permute.xlu0 %2667
      %2675 = vrot.lane.b32.xlu0 %v2387, 24
      %v2676 = vpop.permute.xlu0 %2675
      %2677 = vrot.lane.b32.xlu0 %v2390, 24
      %v2678 = vpop.permute.xlu0 %2677
      %2679 = vrot.lane.b32.xlu0 %v2395, 24
      %v2680 = vpop.permute.xlu0 %2679
      %v2684 = vsel %vm1344, %v2201, %v2652
      %v2685 = vsel %vm1344, %v2204, %v2654
      %v2686 = vsel %vm1344, %v2209, %v2656
      %vm2687 = vcmask 130048
      %v2688 = vsel %vm2687, %v2684, %v2664
      %v2689 = vsel %vm2687, %v2685, %v2666
      %v2690 = vsel %vm2687, %v2686, %v2668
      %vm2691 = vcmask 195584
      %v2692 = vsel %vm2691, %v2688, %v2676
      %v2693 = vsel %vm2691, %v2689, %v2678
      %v2694 = vsel %vm2691, %v2690, %v2680
      %2698 = vrot.lane.b32.xlu0 %v2511, 8
      %v2699 = vpop.permute.xlu0 %2698
      %2700 = vrot.lane.b32.xlu0 %v2514, 8
      %v2701 = vpop.permute.xlu0 %2700
      %2702 = vrot.lane.b32.xlu0 %v2519, 8
      %v2703 = vpop.permute.xlu0 %2702
      %2710 = vrot.lane.b32.xlu0 %v2573, 16
      %v2711 = vpop.permute.xlu0 %2710
      %2712 = vrot.lane.b32.xlu0 %v2576, 16
      %v2713 = vpop.permute.xlu0 %2712
      %2714 = vrot.lane.b32.xlu0 %v2581, 16
      %v2715 = vpop.permute.xlu0 %2714
      %2722 = vrot.lane.b32.xlu0 %v2635, 24
      %v2723 = vpop.permute.xlu0 %2722
      %2724 = vrot.lane.b32.xlu0 %v2638, 24
      %v2725 = vpop.permute.xlu0 %2724
      %2726 = vrot.lane.b32.xlu0 %v2643, 24
      %v2727 = vpop.permute.xlu0 %2726
      %v2731 = vsel %vm1344, %v2449, %v2699
      %v2732 = vsel %vm1344, %v2452, %v2701
      %v2733 = vsel %vm1344, %v2457, %v2703
      %v2734 = vsel %vm2687, %v2731, %v2711
      %v2735 = vsel %vm2687, %v2732, %v2713
      %v2736 = vsel %vm2687, %v2733, %v2715
      %v2737 = vsel %vm2691, %v2734, %v2723
      %v2738 = vsel %vm2691, %v2735, %v2725
      %v2739 = vsel %vm2691, %v2736, %v2727
      %v2743 = vrot.slane %v2737, 7
      %v2744 = vrot.slane %v2738, 7
      %v2745 = vsel %vm2160, %v2743, %v2744
      %v2746 = vrot.slane %v2739, 7
      %v2747 = vsel %vm2160, %v2744, %v2746
      %v2751 = vsel %vm2160, %v2694, %v2743
      %v2752 = vpack.c.bf16 %v2693, %v2692
      %v2753 = vpack.c.bf16 %v2745, %v2751
      %v2754 = vpack.c.bf16 %v2747, %v2747
      %v2755 = vld [vmem:[%s790] sm:$0xf]
      %v2756 = vld [vmem:[%s790 + $0x4] sm:$0xf]
      %v2757 = vld [vmem:[%s790 + $0x8] sm:$0xf]
      %v2758 = vld [vmem:[%s790 + $0xc] sm:$0xf]
      %v2763 = vunpack.c.l.b16 %v2755
      %v2764 = vunpack.c.l.b16 %v2756
      %v2765 = vunpack.c.l.b16 %v2757
      %v2766 = vunpack.c.l.b16 %v2758
      %v2767 = vpack.c.b16 %v2764, %v2763
      %v2768 = vpack.c.b16 %v2766, %v2765
      %v2772 = vsel %vm1031, %v2752, 0
      %v2775 = vsel %vm1031, %v2753, 0
      %v2778 = vsel %vm1031, %v2754, 0
      %2780 = vmatprep.subr.bf16.mxu0 0
      %2781 = vmatpush1.bf16.msra.mxu0 %v2767
      %2782 = vmatprep.subr.bf16.mxu0 0
      %2783 = vmatpush1.bf16.msra.mxu0 %v2768
      %2784 = vmatprep.subr.bf16.mxu0 0
      %2785 = vmatpush1.bf16.msra.mxu0 0
      %2786 = vmatprep.subr.bf16.mxu0 0
      %2787 = vmatpush1.bf16.msra.mxu0 0
      %2788 = vmatprep.subr.bf16.mxu0 0
      %2789 = vmatpush1.bf16.msra.mxu0 0
      %2790 = vmatprep.subr.bf16.mxu0 0
      %2791 = vmatpush1.bf16.msra.mxu0 0
      %2792 = vmatprep.subr.bf16.mxu0 0
      %2793 = vmatpush1.bf16.msra.mxu0 0
      %2794 = vmatprep.subr.bf16.mxu0 0
      %2795 = vmatpush1.bf16.msra.mxu0 0
      %2796 = vmatprep.subr.bf16.mxu0 0
      %2797 = vmatpush1.bf16.msra.mxu0 0
      %2798 = vmatprep.subr.bf16.mxu0 0
      %2799 = vmatpush1.bf16.msra.mxu0 0
      %2800 = vmatprep.subr.bf16.mxu0 0
      %2801 = vmatpush1.bf16.msra.mxu0 0
      %2802 = vmatprep.subr.bf16.mxu0 0
      %2803 = vmatpush1.bf16.msra.mxu0 0
      %2804 = vmatprep.subr.bf16.mxu0 0
      %2805 = vmatpush1.bf16.msra.mxu0 0
      %2806 = vmatprep.subr.bf16.mxu0 0
      %2807 = vmatpush1.bf16.msra.mxu0 0
      %2808 = vmatprep.subr.bf16.mxu0 0
      %2809 = vmatpush1.bf16.msra.mxu0 0
      %2810 = vmatprep.subr.bf16.mxu0 0
      %2811 = vmatpush1.bf16.msra.mxu0 0
      %2812 = vmatprep.mubr.bf16.mxu0 0
      %2813 = vmatmul.mubr.bf16.gmra.mrb[0].mxu0 %v2772
      %v2814 = vpop.f32.mrb[0].mxu0
      %v2815 = vadd.f32 0.0, %v2814
      %v2816 = vpop.f32.mrb[0].mxu0
      %v2817 = vpop.f32.mrb[0].mxu0
      %v2818 = vadd.f32 0.0, %v2817
      %v2819 = vpop.f32.mrb[0].mxu0
      %2820 = vmatprep.mubr.bf16.mxu0 0
      %2821 = vmatmul.mubr.bf16.gmra.mrb[0].mxu0 %v2775
      %v2822 = vpop.f32.mrb[0].mxu0
      %v2823 = vadd.f32 0.0, %v2822
      %v2824 = vpop.f32.mrb[0].mxu0
      %v2825 = vpop.f32.mrb[0].mxu0
      %v2826 = vadd.f32 0.0, %v2825
      %v2827 = vpop.f32.mrb[0].mxu0
      %2828 = vmatprep.mubr.bf16.mxu0 0
      %2829 = vmatmul.mubr.bf16.gmra.mrb[0].mxu0 %v2778
      %v2830 = vpop.f32.mrb[0].mxu0
      %v2831 = vadd.f32 0.0, %v2830
      %v2832 = vpop.f32.mrb[0].mxu0
      %v2833 = vpop.f32.mrb[0].mxu0
      %v2834 = vpop.f32.mrb[0].mxu0
      %2835 = vdwg.mxu0
      %v2836 = vadd.f32 %v1026, %v2815
      %v2837 = vadd.f32 %v1027, %v2818
      %v2838 = vadd.f32 %v1028, %v2823
      %v2839 = vadd.f32 %v1029, %v2826
      %v2840 = vadd.f32 %v1030, %v2831
      %v2841 = vld [vmem:[%s793] sm:$0x1]
      %v2843 = vlaneseq
      %v2844 = vshrl.u32 %v2843, 7
      %v2845 = vsub.s32 0, %v2844
      %v2846 = vrot.slane %v2841, %v2845
      %v2848 = vadd.f32 %v2836, %v2846
      %v2849 = vadd.f32 %v2837, %v2846
      %v2850 = vadd.f32 %v2838, %v2846
      %v2851 = vadd.f32 %v2839, %v2846
      %v2852 = vadd.f32 %v2840, %v2846
      %v2853 = vsel %vm1031, %v2848, 0.0
      %2854 = vadd.xlane.f32.xlu0 %v2853
      %v2855 = vpop.xlane.xlu0 %2854
      %v2856 = vsel %vm1031, %v2849, 0.0
      %2857 = vadd.xlane.f32.xlu0 %v2856
      %v2858 = vpop.xlane.xlu0 %2857
      %v2859 = vsel %vm1031, %v2850, 0.0
      %2860 = vadd.xlane.f32.xlu0 %v2859
      %v2861 = vpop.xlane.xlu0 %2860
      %v2862 = vsel %vm1031, %v2851, 0.0
      %2863 = vadd.xlane.f32.xlu0 %v2862
      %v2864 = vpop.xlane.xlu0 %2863
      %v2865 = vsel %vm1044, %v2852, 0.0
      %2866 = vadd.xlane.f32.xlu0 %v2865
      %v2867 = vpop.xlane.xlu0 %2866
      %v2868 = vmul.f32 %v2855, %v1048
      %v2869 = vmul.f32 %v2858, %v1048
      %v2870 = vmul.f32 %v2861, %v1048
      %v2871 = vmul.f32 %v2864, %v1048
      %v2872 = vmul.f32 %v2867, %v1048
      %v2873 = vsub.f32 %v2848, %v2868
      %v2874 = vsub.f32 %v2849, %v2869
      %v2875 = vsub.f32 %v2850, %v2870
      %v2876 = vsub.f32 %v2851, %v2871
      %v2877 = vsub.f32 %v2852, %v2872
      %v2878 = vmul.f32 %v2873, %v2873
      %v2879 = vmul.f32 %v2874, %v2874
      %v2880 = vmul.f32 %v2875, %v2875
      %v2881 = vmul.f32 %v2876, %v2876
      %v2882 = vmul.f32 %v2877, %v2877
      %v2883 = vsel %vm1031, %v2878, 0.0
      %2884 = vadd.xlane.f32.xlu0 %v2883
      %v2885 = vpop.xlane.xlu0 %2884
      %v2886 = vsel %vm1031, %v2879, 0.0
      %2887 = vadd.xlane.f32.xlu0 %v2886
      %v2888 = vpop.xlane.xlu0 %2887
      %v2889 = vsel %vm1031, %v2880, 0.0
      %2890 = vadd.xlane.f32.xlu0 %v2889
      %v2891 = vpop.xlane.xlu0 %2890
      %v2892 = vsel %vm1031, %v2881, 0.0
      %2893 = vadd.xlane.f32.xlu0 %v2892
      %v2894 = vpop.xlane.xlu0 %2893
      %v2895 = vsel %vm1044, %v2882, 0.0
      %2896 = vadd.xlane.f32.xlu0 %v2895
      %v2897 = vpop.xlane.xlu0 %2896
      %v2898 = vmul.f32 %v2885, %v1048
      %v2899 = vmul.f32 %v2888, %v1048
      %v2900 = vmul.f32 %v2891, %v1048
      %v2901 = vmul.f32 %v2894, %v1048
      %v2902 = vmul.f32 %v2897, %v1048
      %v2903 = vadd.f32 %v2898, 1e-06
      %v2904 = vadd.f32 %v2899, 1e-06
      %v2905 = vadd.f32 %v2900, 1e-06
      %v2906 = vadd.f32 %v2901, 1e-06
      %v2907 = vadd.f32 %v2902, 1e-06
      %v2908 = vrsqrt.pop %v2903
      %v2909 = vrsqrt.pop %v2904
      %v2910 = vrsqrt.pop %v2905
      %v2911 = vrsqrt.pop %v2906
      %v2912 = vrsqrt.pop %v2907
      %v2913 = vmul.f32 %v2873, %v2908
      %v2914 = vmul.f32 %v2874, %v2909
      %v2915 = vmul.f32 %v2875, %v2910
      %v2916 = vmul.f32 %v2876, %v2911
      %v2917 = vmul.f32 %v2877, %v2912
      %v2918 = vld [vmem:[%s796] sm:$0x1]
      %v2920 = vlaneseq
      %v2921 = vshrl.u32 %v2920, 7
      %v2922 = vsub.s32 0, %v2921
      %v2923 = vrot.slane %v2918, %v2922
      %v2925 = vmul.f32 %v2913, %v2923
      %v2926 = vmul.f32 %v2914, %v2923
      %v2927 = vmul.f32 %v2915, %v2923
      %v2928 = vmul.f32 %v2916, %v2923
      %v2929 = vmul.f32 %v2917, %v2923
      %v2930 = vld [vmem:[%s799] sm:$0x1]
      %v2932 = vlaneseq
      %v2933 = vshrl.u32 %v2932, 7
      %v2934 = vsub.s32 0, %v2933
      %v2935 = vrot.slane %v2930, %v2934
      %v2937 = vadd.f32 %v2925, %v2935
      %v2938 = vadd.f32 %v2926, %v2935
      %v2939 = vadd.f32 %v2927, %v2935
      %v2940 = vadd.f32 %v2928, %v2935
      %v2941 = vadd.f32 %v2929, %v2935
      %v2942 = vpack.c.bf16 %v2938, %v2937
      %v2943 = vpack.c.bf16 %v2940, %v2939
      %v2944 = vpack.c.bf16 %v2941, %v2941
      %v2945 = vld [vmem:[%s804] sm:$0xf]
      %v2946 = vld [vmem:[%s804 + $0x4] sm:$0xf]
      %v2947 = vld [vmem:[%s804 + $0x8] sm:$0xf]
      %v2948 = vld [vmem:[%s804 + $0xc] sm:$0xf]
      %v2949 = vld [vmem:[%s807] sm:$0x1]
      %v2951 = vlaneseq
      %v2952 = vshrl.u32 %v2951, 7
      %v2953 = vsub.s32 0, %v2952
      %v2954 = vrot.slane %v2949, %v2953
      %v2960 = vunpack.c.l.b16 %v2945
      %v2961 = vunpack.c.l.b16 %v2946
      %v2962 = vunpack.c.l.b16 %v2947
      %v2963 = vunpack.c.l.b16 %v2948
      %v2964 = vpack.c.b16 %v2961, %v2960
      %v2965 = vpack.c.b16 %v2963, %v2962
      %v2969 = vsel %vm1031, %v2942, 0
      %v2972 = vsel %vm1031, %v2943, 0
      %v2975 = vsel %vm1031, %v2944, 0
      %2977 = vmatprep.subr.bf16.mxu0 0
      %2978 = vmatpush1.bf16.msra.mxu0 %v2964
      %2979 = vmatprep.subr.bf16.mxu0 0
      %2980 = vmatpush1.bf16.msra.mxu0 %v2965
      %2981 = vmatprep.subr.bf16.mxu0 0
      %2982 = vmatpush1.bf16.msra.mxu0 0
      %2983 = vmatprep.subr.bf16.mxu0 0
      %2984 = vmatpush1.bf16.msra.mxu0 0
      %2985 = vmatprep.subr.bf16.mxu0 0
      %2986 = vmatpush1.bf16.msra.mxu0 0
      %2987 = vmatprep.subr.bf16.mxu0 0
      %2988 = vmatpush1.bf16.msra.mxu0 0
      %2989 = vmatprep.subr.bf16.mxu0 0
      %2990 = vmatpush1.bf16.msra.mxu0 0
      %2991 = vmatprep.subr.bf16.mxu0 0
      %2992 = vmatpush1.bf16.msra.mxu0 0
      %2993 = vmatprep.subr.bf16.mxu0 0
      %2994 = vmatpush1.bf16.msra.mxu0 0
      %2995 = vmatprep.subr.bf16.mxu0 0
      %2996 = vmatpush1.bf16.msra.mxu0 0
      %2997 = vmatprep.subr.bf16.mxu0 0
      %2998 = vmatpush1.bf16.msra.mxu0 0
      %2999 = vmatprep.subr.bf16.mxu0 0
      %3000 = vmatpush1.bf16.msra.mxu0 0
      %3001 = vmatprep.subr.bf16.mxu0 0
      %3002 = vmatpush1.bf16.msra.mxu0 0
      %3003 = vmatprep.subr.bf16.mxu0 0
      %3004 = vmatpush1.bf16.msra.mxu0 0
      %3005 = vmatprep.subr.bf16.mxu0 0
      %3006 = vmatpush1.bf16.msra.mxu0 0
      %3007 = vmatprep.subr.bf16.mxu0 0
      %3008 = vmatpush1.bf16.msra.mxu0 0
      %3009 = vmatprep.mubr.bf16.mxu0 0
      %3010 = vmatmul.mubr.bf16.gmra.mrb[0].mxu0 %v2969
      %v3011 = vpop.f32.mrb[0].mxu0
      %v3012 = vadd.f32 %v2954, %v3011
      %v3013 = vpop.f32.mrb[0].mxu0
      %v3014 = vpop.f32.mrb[0].mxu0
      %v3015 = vadd.f32 %v2954, %v3014
      %v3016 = vpop.f32.mrb[0].mxu0
      %3017 = vmatprep.mubr.bf16.mxu0 0
      %3018 = vmatmul.mubr.bf16.gmra.mrb[0].mxu0 %v2972
      %v3019 = vpop.f32.mrb[0].mxu0
      %v3020 = vadd.f32 %v2954, %v3019
      %v3021 = vpop.f32.mrb[0].mxu0
      %v3022 = vpop.f32.mrb[0].mxu0
      %v3023 = vadd.f32 %v2954, %v3022
      %v3024 = vpop.f32.mrb[0].mxu0
      %3025 = vmatprep.mubr.bf16.mxu0 0
      %3026 = vmatmul.mubr.bf16.gmra.mrb[0].mxu0 %v2975
      %v3027 = vpop.f32.mrb[0].mxu0
      %v3028 = vadd.f32 %v2954, %v3027
      %v3029 = vpop.f32.mrb[0].mxu0
      %v3030 = vpop.f32.mrb[0].mxu0
      %v3031 = vpop.f32.mrb[0].mxu0
      %3032 = vdwg.mxu0
      %v3033 = vmul.f32 %v3012, %v3012
      %v3034 = vmul.f32 %v3015, %v3015
      %v3035 = vmul.f32 %v3020, %v3020
      %v3036 = vmul.f32 %v3023, %v3023
      %v3037 = vmul.f32 %v3028, %v3028
      %v3038 = vmul.f32 %v3012, %v3033
      %v3039 = vmul.f32 %v3015, %v3034
      %v3040 = vmul.f32 %v3020, %v3035
      %v3041 = vmul.f32 %v3023, %v3036
      %v3042 = vmul.f32 %v3028, %v3037
      %v3043 = vmul.f32 %v3038, 0.044715
      %v3044 = vmul.f32 %v3039, 0.044715
      %v3045 = vmul.f32 %v3040, 0.044715
      %v3046 = vmul.f32 %v3041, 0.044715
      %v3047 = vmul.f32 %v3042, 0.044715
      %v3048 = vadd.f32 %v3012, %v3043
      %v3049 = vadd.f32 %v3015, %v3044
      %v3050 = vadd.f32 %v3020, %v3045
      %v3051 = vadd.f32 %v3023, %v3046
      %v3052 = vadd.f32 %v3028, %v3047
      %v3053 = vmul.f32 %v3048, 0.7978846
      %v3054 = vmul.f32 %v3049, 0.7978846
      %v3055 = vmul.f32 %v3050, 0.7978846
      %v3056 = vmul.f32 %v3051, 0.7978846
      %v3057 = vmul.f32 %v3052, 0.7978846
      %v3058 = vtanh.pop %v3053
      %v3059 = vtanh.pop %v3054
      %v3060 = vtanh.pop %v3055
      %v3061 = vtanh.pop %v3056
      %v3062 = vtanh.pop %v3057
      %v3063 = vadd.f32 %v3058, 1.0
      %v3064 = vadd.f32 %v3059, 1.0
      %v3065 = vadd.f32 %v3060, 1.0
      %v3066 = vadd.f32 %v3061, 1.0
      %v3067 = vadd.f32 %v3062, 1.0
      %v3068 = vmul.f32 %v3063, 0.5
      %v3069 = vmul.f32 %v3064, 0.5
      %v3070 = vmul.f32 %v3065, 0.5
      %v3071 = vmul.f32 %v3066, 0.5
      %v3072 = vmul.f32 %v3067, 0.5
      %v3073 = vmul.f32 %v3012, %v3068
      %v3074 = vmul.f32 %v3015, %v3069
      %v3075 = vmul.f32 %v3020, %v3070
      %v3076 = vmul.f32 %v3023, %v3071
      %v3077 = vmul.f32 %v3028, %v3072
      %v3078 = vpack.c.bf16 %v3074, %v3073
      %v3079 = vpack.c.bf16 %v3076, %v3075
      %v3080 = vpack.c.bf16 %v3077, %v3077
      %v3081 = vld [vmem:[%s812] sm:$0xf]
      %v3082 = vld [vmem:[%s812 + $0x4] sm:$0xf]
      %v3083 = vld [vmem:[%s812 + $0x8] sm:$0xf]
      %v3084 = vld [vmem:[%s812 + $0xc] sm:$0xf]
      %v3085 = vld [vmem:[%s812 + $0x10] sm:$0xf]
      %v3086 = vld [vmem:[%s812 + $0x14] sm:$0xf]
      %v3087 = vld [vmem:[%s812 + $0x18] sm:$0xf]
      %v3088 = vld [vmem:[%s812 + $0x1c] sm:$0xf]
      %v3089 = vld [vmem:[%s812 + $0x20] sm:$0xf]
      %v3090 = vld [vmem:[%s812 + $0x24] sm:$0xf]
      %v3091 = vld [vmem:[%s812 + $0x28] sm:$0xf]
      %v3092 = vld [vmem:[%s812 + $0x2c] sm:$0xf]
      %v3093 = vld [vmem:[%s812 + $0x30] sm:$0xf]
      %v3094 = vld [vmem:[%s812 + $0x34] sm:$0xf]
      %v3095 = vld [vmem:[%s812 + $0x38] sm:$0xf]
      %v3096 = vld [vmem:[%s812 + $0x3c] sm:$0xf]
      %v3113 = vunpack.c.l.b16 %v3081
      %v3114 = vunpack.c.l.b16 %v3082
      %v3115 = vunpack.c.l.b16 %v3083
      %v3116 = vunpack.c.l.b16 %v3084
      %v3117 = vunpack.c.l.b16 %v3085
      %v3118 = vunpack.c.l.b16 %v3086
      %v3119 = vunpack.c.l.b16 %v3087
      %v3120 = vunpack.c.l.b16 %v3088
      %v3121 = vunpack.c.l.b16 %v3089
      %v3122 = vunpack.c.l.b16 %v3090
      %v3123 = vunpack.c.l.b16 %v3091
      %v3124 = vunpack.c.l.b16 %v3092
      %v3125 = vunpack.c.l.b16 %v3093
      %v3126 = vunpack.c.l.b16 %v3094
      %v3127 = vunpack.c.l.b16 %v3095
      %v3128 = vunpack.c.l.b16 %v3096
      %v3129 = vpack.c.b16 %v3114, %v3113
      %v3130 = vpack.c.b16 %v3116, %v3115
      %v3131 = vpack.c.b16 %v3118, %v3117
      %v3132 = vpack.c.b16 %v3120, %v3119
      %v3133 = vpack.c.b16 %v3122, %v3121
      %v3134 = vpack.c.b16 %v3124, %v3123
      %v3135 = vpack.c.b16 %v3126, %v3125
      %v3136 = vpack.c.b16 %v3128, %v3127
      %3145 = vmatprep.subr.bf16.mxu0 0
      %3146 = vmatpush1.bf16.msra.mxu0 %v3129
      %3147 = vmatprep.subr.bf16.mxu0 0
      %3148 = vmatpush1.bf16.msra.mxu0 %v3130
      %3149 = vmatprep.subr.bf16.mxu0 0
      %3150 = vmatpush1.bf16.msra.mxu0 %v3131
      %3151 = vmatprep.subr.bf16.mxu0 0
      %3152 = vmatpush1.bf16.msra.mxu0 %v3132
      %3153 = vmatprep.subr.bf16.mxu0 0
      %3154 = vmatpush1.bf16.msra.mxu0 %v3133
      %3155 = vmatprep.subr.bf16.mxu0 0
      %3156 = vmatpush1.bf16.msra.mxu0 %v3134
      %3157 = vmatprep.subr.bf16.mxu0 0
      %3158 = vmatpush1.bf16.msra.mxu0 %v3135
      %3159 = vmatprep.subr.bf16.mxu0 0
      %3160 = vmatpush1.bf16.msra.mxu0 %v3136
      %3161 = vmatprep.subr.bf16.mxu0 0
      %3162 = vmatpush1.bf16.msra.mxu0 0
      %3163 = vmatprep.subr.bf16.mxu0 0
      %3164 = vmatpush1.bf16.msra.mxu0 0
      %3165 = vmatprep.subr.bf16.mxu0 0
      %3166 = vmatpush1.bf16.msra.mxu0 0
      %3167 = vmatprep.subr.bf16.mxu0 0
      %3168 = vmatpush1.bf16.msra.mxu0 0
      %3169 = vmatprep.subr.bf16.mxu0 0
      %3170 = vmatpush1.bf16.msra.mxu0 0
      %3171 = vmatprep.subr.bf16.mxu0 0
      %3172 = vmatpush1.bf16.msra.mxu0 0
      %3173 = vmatprep.subr.bf16.mxu0 0
      %3174 = vmatpush1.bf16.msra.mxu0 0
      %3175 = vmatprep.subr.bf16.mxu0 0
      %3176 = vmatpush1.bf16.msra.mxu0 0
      %3177 = vmatprep.mubr.bf16.mxu0 0
      %3178 = vmatmul.mubr.bf16.gmra.mrb[0].mxu0 %v3078
      %v3179 = vpop.f32.mrb[0].mxu0
      %v3180 = vadd.f32 0.0, %v3179
      %v3181 = vpop.f32.mrb[0].mxu0
      %v3182 = vpop.f32.mrb[0].mxu0
      %v3183 = vadd.f32 0.0, %v3182
      %v3184 = vpop.f32.mrb[0].mxu0
      %3185 = vmatprep.mubr.bf16.mxu0 0
      %3186 = vmatmul.mubr.bf16.gmra.mrb[0].mxu0 %v3079
      %v3187 = vpop.f32.mrb[0].mxu0
      %v3188 = vadd.f32 0.0, %v3187
      %v3189 = vpop.f32.mrb[0].mxu0
      %v3190 = vpop.f32.mrb[0].mxu0
      %v3191 = vadd.f32 0.0, %v3190
      %v3192 = vpop.f32.mrb[0].mxu0
      %3193 = vmatprep.mubr.bf16.mxu0 0
      %3194 = vmatmul.mubr.bf16.gmra.mrb[0].mxu0 %v3080
      %v3195 = vpop.f32.mrb[0].mxu0
      %v3196 = vadd.f32 0.0, %v3195
      %v3197 = vpop.f32.mrb[0].mxu0
      %v3198 = vpop.f32.mrb[0].mxu0
      %v3199 = vpop.f32.mrb[0].mxu0
      %3200 = vdwg.mxu0
      %v3201 = vadd.f32 %v2848, %v3180
      %v3202 = vadd.f32 %v2849, %v3183
      %v3203 = vadd.f32 %v2850, %v3188
      %v3204 = vadd.f32 %v2851, %v3191
      %v3205 = vadd.f32 %v2852, %v3196
      %v3206 = vld [vmem:[%s815] sm:$0x1]
      %v3208 = vlaneseq
      %v3209 = vshrl.u32 %v3208, 7
      %v3210 = vsub.s32 0, %v3209
      %v3211 = vrot.slane %v3206, %v3210
      %v3213 = vadd.f32 %v3201, %v3211
      %v3214 = vadd.f32 %v3202, %v3211
      %v3215 = vadd.f32 %v3203, %v3211
      %v3216 = vadd.f32 %v3204, %v3211
      %v3217 = vadd.f32 %v3205, %v3211
      %3218 = vst.msk [vmem:[#allocation2] sm:$0xff] %vm1031, %v3213
      %3219 = vst.msk [vmem:[#allocation2 + $0x8] sm:$0xff] %vm1031, %v3214
      %3220 = vst.msk [vmem:[#allocation2 + $0x10] sm:$0xff] %vm1031, %v3215
      %3221 = vst.msk [vmem:[#allocation2 + $0x18] sm:$0xff] %vm1031, %v3216
      %3222 = vst.msk [vmem:[#allocation2 + $0x20] sm:$0x3] %vm1044, %v3217
      %v3223 = vrot.slane %v1193, 1
      %v3224 = vrot.slane %v1196, 1
      %v3225 = vsel %vm1246, %v3223, %v3224
      %v3226 = vsel %vm1246, %v3224, %v1247
      %vm3229 = vcmask 1045504
      %v3230 = vrot.slane %v1201, 2
      %v3231 = vrot.slane %v1204, 2
      %v3232 = vsel %vm3229, %v3230, %v3231
      %v3233 = vrot.slane %v1209, 2
      %v3234 = vsel %vm3229, %v3231, %v3233
      %v3237 = vpack.c.bf16 %v3226, %v3225
      %v3238 = vpack.c.bf16 %v3234, %v3232
      %v3239 = vld [vmem:[%s821] sm:$0xf]
      %v3240 = vld [vmem:[%s821 + $0x4] sm:$0xf]
      %v3241 = vld [vmem:[%s821 + $0x8] sm:$0xf]
      %v3242 = vld [vmem:[%s821 + $0xc] sm:$0xf]
      %v3243 = vld [vmem:[%s826] sm:$0x1]
      %v3245 = vlaneseq
      %v3246 = vshrl.u32 %v3245, 7
      %v3247 = vsub.s32 0, %v3246
      %v3248 = vrot.slane %v3243, %v3247
      %3252 = vrot.lane.b32.xlu0 %v3237, 96
      %v3253 = vpop.permute.xlu0 %3252
      %3254 = vrot.lane.b32.xlu0 %v3238, 96
      %v3255 = vpop.permute.xlu0 %3254
      %v3260 = vunpack.c.l.b16 %v3239
      %v3261 = vunpack.c.l.b16 %v3240
      %v3262 = vunpack.c.l.b16 %v3241
      %v3263 = vunpack.c.l.b16 %v3242
      %v3264 = vpack.c.b16 %v3261, %v3260
      %v3265 = vpack.c.b16 %v3263, %v3262
      %v3269 = vsel %vm1031, %v3253, 0
      %v3272 = vsel %vm1031, %v3255, 0
      %3274 = vmatprep.subr.bf16.mxu0 0
      %3275 = vmatpush1.bf16.msra.mxu0 %v3264
      %3276 = vmatprep.subr.bf16.mxu0 0
      %3277 = vmatpush1.bf16.msra.mxu0 %v3265
      %3278 = vmatprep.subr.bf16.mxu0 0
      %3279 = vmatpush1.bf16.msra.mxu0 0
      %3280 = vmatprep.subr.bf16.mxu0 0
      %3281 = vmatpush1.bf16.msra.mxu0 0
      %3282 = vmatprep.subr.bf16.mxu0 0
      %3283 = vmatpush1.bf16.msra.mxu0 0
      %3284 = vmatprep.subr.bf16.mxu0 0
      %3285 = vmatpush1.bf16.msra.mxu0 0
      %3286 = vmatprep.subr.bf16.mxu0 0
      %3287 = vmatpush1.bf16.msra.mxu0 0
      %3288 = vmatprep.subr.bf16.mxu0 0
      %3289 = vmatpush1.bf16.msra.mxu0 0
      %3290 = vmatprep.subr.bf16.mxu0 0
      %3291 = vmatpush1.bf16.msra.mxu0 0
      %3292 = vmatprep.subr.bf16.mxu0 0
      %3293 = vmatpush1.bf16.msra.mxu0 0
      %3294 = vmatprep.subr.bf16.mxu0 0
      %3295 = vmatpush1.bf16.msra.mxu0 0
      %3296 = vmatprep.subr.bf16.mxu0 0
      %3297 = vmatpush1.bf16.msra.mxu0 0
      %3298 = vmatprep.subr.bf16.mxu0 0
      %3299 = vmatpush1.bf16.msra.mxu0 0
      %3300 = vmatprep.subr.bf16.mxu0 0
      %3301 = vmatpush1.bf16.msra.mxu0 0
      %3302 = vmatprep.subr.bf16.mxu0 0
      %3303 = vmatpush1.bf16.msra.mxu0 0
      %3304 = vmatprep.subr.bf16.mxu0 0
      %3305 = vmatpush1.bf16.msra.mxu0 0
      %3306 = vmatprep.mubr.bf16.mxu0 0
      %3307 = vmatmul.mubr.bf16.gmra.mrb[0].mxu0 %v3269
      %v3308 = vpop.f32.mrb[0].mxu0
      %v3309 = vadd.f32 %v3248, %v3308
      %v3310 = vpop.f32.mrb[0].mxu0
      %v3311 = vpop.f32.mrb[0].mxu0
      %v3312 = vadd.f32 %v3248, %v3311
      %v3313 = vpop.f32.mrb[0].mxu0
      %3314 = vmatprep.mubr.bf16.mxu0 0
      %3315 = vmatmul.mubr.bf16.gmra.mrb[0].mxu0 %v3272
      %v3316 = vpop.f32.mrb[0].mxu0
      %v3317 = vadd.f32 %v3248, %v3316
      %v3318 = vpop.f32.mrb[0].mxu0
      %v3319 = vpop.f32.mrb[0].mxu0
      %v3320 = vadd.f32 %v3248, %v3319
      %v3321 = vpop.f32.mrb[0].mxu0
      %3322 = vdwg.mxu0
      %3323 = vst [vmem:[%s833] sm:$0xff] %v3309
      %3324 = vst [vmem:[%s833 + $0x8] sm:$0xff] %v3312
      %3325 = vst [vmem:[%s833 + $0x10] sm:$0xff] %v3317
      %3326 = vst [vmem:[%s833 + $0x18] sm:$0xff] %v3320
      %s3327 = sld [smem:[#allocation4 + %s37]]
      %p3328 = scmp.lt.s32.totalorder %s3327, 2
      %s3329 = scalar_select %p3328, %s3327, 2
      %s3330 = smul.addr %s3329, 4
      %s3331 = smul.addr %s3330, 8
      %s3332 = scalar_lea.vmem %s20, %s3331
      // Predicated region
      $region101: #{feature_backbone_forward.1} parent=95 // pred_check
        %p3333 = pneg %p530
      $region102: #{feature_backbone_forward.1} parent=95 // pred_check_branch
        %3335 = sbr.rel (%p3333) target = $region104
      $region103: #{feature_backbone_forward.1} parent=95 // pred_region
        %s3336 = sld [smem:[#allocation4 + %s37]]
      $region104: #{feature_backbone_forward.1} parent=95 // pred_fallthru
        _
    $region96: #{feature_backbone_forward.1} parent=5 // pred_fallthru
      _
    %p3337 = scmp.le.s32.totalorder 2, %s32
    // Predicated region
    $region105: #{feature_backbone_forward.1} parent=5 // pred_check
      %p3338 = pneg %p3337
    $region106: #{feature_backbone_forward.1} parent=5 // pred_check_branch
      %3340 = sbr.rel (%p3338) target = $region108
    $region107: #{feature_backbone_forward.1} parent=5 // pred_region
      %s3341 = ssub.s32 %s32, 2
      // Predicated region
      $region109: #{feature_backbone_forward.1} parent=107 // pred_check
        %p3342 = pneg %p536
      $region110: #{feature_backbone_forward.1} parent=107 // pred_check_branch
        %3344 = sbr.rel (%p3342) target = $region112
      $region111: #{feature_backbone_forward.1} parent=107 // pred_region
        %s3345 = sld [smem:[#allocation4 + %s38]]
        %p3346 = scmp.lt.s32.totalorder %s3345, 2
        %s3347 = scalar_select %p3346, %s3345, 2
        %s3348 = smul.addr %s3347, 4
        %s3349 = smul.addr %s3348, 8
        %s3350 = scalar_lea.vmem %s20, %s3349
      $region112: #{feature_backbone_forward.1} parent=107 // pred_fallthru
        _
    $region108: #{feature_backbone_forward.1} parent=5 // pred_fallthru
      _
  $region6: #{feature_backbone_forward.1} parent=0 // loop_footer
    %s36 = sadd.s32 1, %s32
  $region7: #{feature_backbone_forward.1} parent=0 // loop_footer_branch
    %31 = sbr.rel target = $region3
  $region8: #{feature_backbone_forward.1} parent=0 // loop_exit
    _

</llo_original>
